<compile_context>
chip_gen: v6e
topology: v6e:2x2x1
jax: 0.10.0
libtpu: 0.0.40
codegen_flags: <defaults>
</compile_context>

<pallas_src>
import numpy as np
import jax
import jax.numpy as jnp
from jax.experimental import pallas as pl
from jax.experimental.pallas import tpu as pltpu


# ----------------------------------------------------------------------------
# Kernel: fused (masked LSTM recurrence + Q head), one invocation per batch
# tile.  x arrives as a contiguous (T*tb, D) slab; gates_x is precomputed in
# one matmul; the unrolled time loop only runs the recurrent matmul.
# ----------------------------------------------------------------------------
def soft_q_kernel(x_ref, len_ref, h0_ref, c0_ref, wih_ref, whh_ref, bg_ref,
                  act_ref, w1h_ref, w1a_ref, b1_ref, w2_ref, b2_ref,
                  q_ref, gx_ref):
    tb, H = h0_ref.shape
    T = gx_ref.shape[0] // tb

    # 1) Hoisted, time-independent input projection (+ bias): one fat MXU
    #    matmul with M = T*tb rows instead of T tiny M=tb matmuls.
    gx_ref[...] = (
        jnp.dot(x_ref[0], wih_ref[...], preferred_element_type=jnp.float32)
        + bg_ref[...].astype(jnp.float32))                  # (T*tb, 4H) f32

    lens = len_ref[...]                                     # (tb, 1) int32
    h = h0_ref[...]                                         # (tb, H) f32 carry
    c = c0_ref[...]

    # 2) Recurrence.  T is static & small, so the loop is fully unrolled at
    #    trace time (same generated code as lax.fori_loop(..., unroll=True));
    #    the entire recurrence runs in ONE kernel invocation — no per-step
    #    grid overhead.  Per step only h @ W_hh^T remains on the MXU.
    for t in range(T):
        gates = gx_ref[pl.ds(t * tb, tb), :] + jnp.dot(
            h.astype(whh_ref.dtype), whh_ref[...],
            preferred_element_type=jnp.float32)             # (tb, 4H) f32
        # PyTorch LSTM gate order: i, f, g, o
        i_g = jax.nn.sigmoid(gates[:, 0 * H:1 * H])
        f_g = jax.nn.sigmoid(gates[:, 1 * H:2 * H])
        g_g = jnp.tanh(gates[:, 2 * H:3 * H])
        o_g = jax.nn.sigmoid(gates[:, 3 * H:4 * H])
        c_new = f_g * c + i_g * g_g
        h_new = o_g * jnp.tanh(c_new)
        # Packed-sequence semantics: state frozen once t >= length.
        valid = t < lens
        h = jnp.where(valid, h_new, h)
        c = jnp.where(valid, c_new, c)

    # 3) Fused Q head (concat replaced by split matmuls).
    # TODO(synk): nn.Dropout(p=0.05) treated as identity (inference mode);
    # PyTorch training-mode RNG masks are not reproduced.
    z = (jnp.dot(h.astype(w1h_ref.dtype), w1h_ref[...],
                 preferred_element_type=jnp.float32)
         + jnp.dot(act_ref[...], w1a_ref[...],
                   preferred_element_type=jnp.float32)
         + b1_ref[...].astype(jnp.float32))
    z = jnp.maximum(z, 0.0)
    # N=1 output column: GEMV on the VPU + lane reduction instead of a
    # 1/128-utilized MXU matmul.
    q = jnp.sum(z * w2_ref[...], axis=-1, keepdims=True) + b2_ref[...]
    q_ref[...] = q.astype(q_ref.dtype)


# ----------------------------------------------------------------------------
# Host-side glue
# ----------------------------------------------------------------------------
def _pad_time_major(embedded_seq):
    """List of [T_i, D] arrays -> time-major padded [T, B, D] + lengths [B]."""
    B = len(embedded_seq)
    D = embedded_seq[0].shape[-1]
    lengths = np.array([int(s.shape[0]) for s in embedded_seq], dtype=np.int32)
    T = int(lengths.max())
    x = np.zeros((T, B, D), dtype=np.float32)
    for b, s in enumerate(embedded_seq):
        x[: s.shape[0], b, :] = np.asarray(s, dtype=np.float32)
    return jnp.asarray(x), jnp.asarray(lengths)


def _round_up(x, m):
    return (x + m - 1) // m * m


def _num_tensorcores():
    # v7x has 2 TensorCores per chip; v5e / v6e have 1.
    try:
        kind = jax.devices()[0].device_kind.lower()
        if "v7" in kind:
            return 2
    except Exception:
        pass
    return 1


def _pick_tb(b_pad, n_cores):
    # One fat batch tile per TensorCore (v5e/v6e -> 1 tile, v7x -> 2 tiles);
    # only split further if a tile would exceed ~256 MXU LHS rows.
    tb = b_pad
    if n_cores >= 2 and b_pad % 16 == 0:
        tb = b_pad // 2
    while tb > 256 and tb % 16 == 0:
        tb //= 2
    return tb


def soft_q_forward(embedded_seq, action, hidden, params, *, tb=None,
                   compute_dtype=jnp.bfloat16,
                   vmem_limit_bytes=32 * 1024 * 1024):
    """embedded_seq: list of B arrays [T_i, state_dim]; action: [B, A];
    hidden: (h0, c0) each [1, B, H]; params: PyTorch-layout weights."""
    x_tm, lengths = _pad_time_major(embedded_seq)         # [T, B, D], [B]
    T, B, D = x_tm.shape
    h0 = hidden[0][0].astype(jnp.float32)                 # [B, H]
    c0 = hidden[1][0].astype(jnp.float32)
    H = h0.shape[-1]
    A = action.shape[-1]

    b_pad = _round_up(B, 8)
    if tb is None:
        tb = _pick_tb(b_pad, _num_tensorcores())
    assert b_pad % tb == 0 and (tb % 8 == 0 or tb == b_pad)
    nb = b_pad // tb

    pad_b = b_pad - B
    if pad_b:
        x_tm = jnp.pad(x_tm, ((0, 0), (0, pad_b), (0, 0)))
        lengths = jnp.pad(lengths, (0, pad_b))
        action = jnp.pad(action, ((0, pad_b), (0, 0)))
        h0 = jnp.pad(h0, ((0, pad_b), (0, 0)))
        c0 = jnp.pad(c0, ((0, pad_b), (0, 0)))

    # Rearrange x so each batch tile sees one contiguous (T*tb, D) slab:
    # [T, b_pad, D] -> [nb, T*tb, D].  Tiny one-off XLA shuffle outside the
    # kernel; also halves the streamed bytes via the compute_dtype cast.
    x_r = (x_tm.reshape(T, nb, tb, D).transpose(1, 0, 2, 3)
           .reshape(nb, T * tb, D).astype(compute_dtype))

    # Weight preprocessing, paid ONCE outside the kernel (pre-transposed; MXU
    # operands in compute_dtype, biases / head GEMV row kept f32).
    wihT = params["wih"].T.astype(compute_dtype)           # [D, 4H]
    whhT = params["whh"].T.astype(compute_dtype)           # [H, 4H]
    bg = (params["bih"] + params["bhh"]).reshape(1, 4 * H).astype(jnp.float32)
    w1 = params["w1"]                                      # [H, H + A]
    w1hT = w1[:, :H].T.astype(compute_dtype)               # [H, H]
    w1aT = w1[:, H:].T.astype(compute_dtype)               # [A, H]
    b1 = params["b1"].reshape(1, H).astype(jnp.float32)
    w2row = params["w2"].reshape(1, H).astype(jnp.float32)
    b2 = params["b2"].reshape(1, 1).astype(jnp.float32)
    act_c = action.astype(compute_dtype)
    lens2d = lengths.astype(jnp.int32).reshape(b_pad, 1)

    q_pad = pl.pallas_call(
        soft_q_kernel,
        out_shape=jax.ShapeDtypeStruct((b_pad, 1), jnp.float32),
        grid=(nb,),
        in_specs=[
            pl.BlockSpec((1, T * tb, D), lambda b: (b, 0, 0)),   # x slab
            pl.BlockSpec((tb, 1), lambda b: (b, 0)),             # lengths
            pl.BlockSpec((tb, H), lambda b: (b, 0)),             # h0
            pl.BlockSpec((tb, H), lambda b: (b, 0)),             # c0
            pl.BlockSpec((D, 4 * H), lambda b: (0, 0)),          # W_ih^T
            pl.BlockSpec((H, 4 * H), lambda b: (0, 0)),          # W_hh^T
            pl.BlockSpec((1, 4 * H), lambda b: (0, 0)),          # gate bias
            pl.BlockSpec((tb, A), lambda b: (b, 0)),             # action
            pl.BlockSpec((H, H), lambda b: (0, 0)),              # W1_h^T
            pl.BlockSpec((A, H), lambda b: (0, 0)),              # W1_a^T
            pl.BlockSpec((1, H), lambda b: (0, 0)),              # b1
            pl.BlockSpec((1, H), lambda b: (0, 0)),              # W2 row
            pl.BlockSpec((1, 1), lambda b: (0, 0)),              # b2
        ],
        out_specs=pl.BlockSpec((tb, 1), lambda b: (b, 0)),
        scratch_shapes=[
            pltpu.VMEM((T * tb, 4 * H), jnp.float32),   # precomputed x-gates
        ],
        compiler_params=pltpu.CompilerParams(
            dimension_semantics=("parallel",),
            vmem_limit_bytes=vmem_limit_bytes,
        ),
    )(x_r, lens2d, h0, c0, wihT, whhT, bg, act_c, w1hT, w1aT, b1, w2row, b2)

    return q_pad[:B, 0]


# ----------------------------------------------------------------------------
# Pure-JAX reference mirroring the PyTorch forward (HIGHEST-precision matmuls)
# ----------------------------------------------------------------------------
def _reference(embedded_seq, action, hidden, params):
    PH = jax.lax.Precision.HIGHEST
    x_tm, lengths = _pad_time_major(embedded_seq)
    T, B, D = x_tm.shape
    h = hidden[0][0].astype(jnp.float32)
    c = hidden[1][0].astype(jnp.float32)
    H = h.shape[-1]
    wih, whh = params["wih"], params["whh"]
    b = params["bih"] + params["bhh"]
    for t in range(T):
        g = (jnp.dot(x_tm[t], wih.T, precision=PH)
             + jnp.dot(h, whh.T, precision=PH) + b)
        i_g = jax.nn.sigmoid(g[:, :H])
        f_g = jax.nn.sigmoid(g[:, H:2 * H])
        g_g = jnp.tanh(g[:, 2 * H:3 * H])
        o_g = jax.nn.sigmoid(g[:, 3 * H:])
        c_new = f_g * c + i_g * g_g
        h_new = o_g * jnp.tanh(c_new)
        m = (t < lengths)[:, None]
        h = jnp.where(m, h_new, h)
        c = jnp.where(m, c_new, c)
    hs = jnp.concatenate([h, action], axis=-1)
    z = jnp.maximum(jnp.dot(hs, params["w1"].T, precision=PH)
                    + params["b1"], 0.0)
    return (jnp.dot(z, params["w2"].T, precision=PH) + params["b2"])[:, 0]


if __name__ == "__main__":
    B, D, H, A, T_MAX = 16, 16, 128, 8, 8   # H lane-dense (128 lanes)
    key = jax.random.PRNGKey(0)
    ks = jax.random.split(key, 10)

    # np.array (not np.asarray) -> writable host copy of the device array.
    lengths_np = np.array(jax.random.randint(ks[0], (B,), 1, T_MAX + 1),
                          dtype=np.int32)
    lengths_np[0] = T_MAX  # make the max length deterministic
    embedded_seq = [
        jax.random.normal(jax.random.fold_in(ks[1], b),
                          (int(lengths_np[b]), D), dtype=jnp.float32)
        for b in range(B)
    ]
    action = jax.random.normal(ks[2], (B, A), dtype=jnp.float32)
    h0 = jax.random.normal(ks[3], (1, B, H), dtype=jnp.float32)
    c0 = jax.random.normal(ks[4], (1, B, H), dtype=jnp.float32)

    def xavier(k, shape, gain=1.0):
        fan_out, fan_in = shape
        std = gain * (2.0 / (fan_in + fan_out)) ** 0.5
        return std * jax.random.normal(k, shape, dtype=jnp.float32)

    relu_gain = 2.0 ** 0.5
    params = dict(
        wih=xavier(ks[5], (4 * H, D)),
        whh=xavier(ks[6], (4 * H, H)),
        bih=jnp.zeros((4 * H,), jnp.float32),
        bhh=jnp.zeros((4 * H,), jnp.float32),
        w1=xavier(ks[7], (H, H + A), gain=relu_gain),
        b1=jnp.zeros((H,), jnp.float32),
        w2=xavier(ks[8], (1, H), gain=relu_gain),
        b2=jnp.zeros((1,), jnp.float32),
    )

    # f32 path: tight numerical check against the reference.
    q_f32 = soft_q_forward(embedded_seq, action, (h0, c0), params,
                           compute_dtype=jnp.float32)
    q_f32 = jax.block_until_ready(q_f32)

    # bf16 MXU path (default perf configuration): looser, scale-aware check.
    q_bf16 = soft_q_forward(embedded_seq, action, (h0, c0), params,
                            compute_dtype=jnp.bfloat16)
    q_bf16 = jax.block_until_ready(q_bf16)

    ref = _reference(embedded_seq, action, (h0, c0), params)

    assert q_f32.shape == (B,) and q_bf16.shape == (B,)
    assert bool(jnp.allclose(q_f32, ref, atol=5e-3, rtol=5e-3))
    scale = float(jnp.max(jnp.abs(ref))) + 1.0
    assert float(jnp.max(jnp.abs(q_bf16 - ref))) < 0.15 * scale

    print("KERNEL_OK")
</pallas_src>

<mosaic_0001>
module attributes {stable_mosaic.version = 11 : i64} {
  func.func @soft_q_kernel(%arg0: i32, %arg1: memref<1x128x16xf32, #tpu.memory_space<vmem>>, %arg2: memref<16x1xi32, #tpu.memory_space<vmem>>, %arg3: memref<16x128xf32, #tpu.memory_space<vmem>>, %arg4: memref<16x128xf32, #tpu.memory_space<vmem>>, %arg5: memref<16x512xf32, #tpu.memory_space<vmem>>, %arg6: memref<128x512xf32, #tpu.memory_space<vmem>>, %arg7: memref<1x512xf32, #tpu.memory_space<vmem>>, %arg8: memref<16x8xf32, #tpu.memory_space<vmem>>, %arg9: memref<128x128xf32, #tpu.memory_space<vmem>>, %arg10: memref<8x128xf32, #tpu.memory_space<vmem>>, %arg11: memref<1x128xf32, #tpu.memory_space<vmem>>, %arg12: memref<1x128xf32, #tpu.memory_space<vmem>>, %arg13: memref<1x1xf32, #tpu.memory_space<vmem>>, %arg14: memref<16x1xf32, #tpu.memory_space<vmem>>, %arg15: memref<128x512xf32, #tpu.memory_space<vmem>>) attributes {dimension_semantics = [#tpu.dimension_semantics<parallel>], iteration_bounds = array<i64: 1>, scalar_prefetch = 0 : i64, scratch_operands = 1 : i64, tpu.core_type = #tpu.core_type<tc>, window_params = [{transform_indices = @transform_0, window_bounds = array<i64: 1, 128, 16>}, {transform_indices = @transform_1, window_bounds = array<i64: 16, 1>}, {transform_indices = @transform_2, window_bounds = array<i64: 16, 128>}, {transform_indices = @transform_3, window_bounds = array<i64: 16, 128>}, {pipeline_mode = #tpu.pipeline_mode<synchronous>, transform_indices = @transform_4, window_bounds = array<i64: 16, 512>}, {pipeline_mode = #tpu.pipeline_mode<synchronous>, transform_indices = @transform_5, window_bounds = array<i64: 128, 512>}, {pipeline_mode = #tpu.pipeline_mode<synchronous>, transform_indices = @transform_6, window_bounds = array<i64: 1, 512>}, {transform_indices = @transform_7, window_bounds = array<i64: 16, 8>}, {pipeline_mode = #tpu.pipeline_mode<synchronous>, transform_indices = @transform_8, window_bounds = array<i64: 128, 128>}, {pipeline_mode = #tpu.pipeline_mode<synchronous>, transform_indices = @transform_9, window_bounds = array<i64: 8, 128>}, {pipeline_mode = #tpu.pipeline_mode<synchronous>, transform_indices = @transform_10, window_bounds = array<i64: 1, 128>}, {pipeline_mode = #tpu.pipeline_mode<synchronous>, transform_indices = @transform_11, window_bounds = array<i64: 1, 128>}, {pipeline_mode = #tpu.pipeline_mode<synchronous>, transform_indices = @transform_12, window_bounds = array<i64: 1, 1>}, {transform_indices = @transform_13, window_bounds = array<i64: 16, 1>}]} {
    %c0 = arith.constant 0 : index
    %c0_0 = arith.constant 0 : index
    %c0_1 = arith.constant 0 : index
    %0 = vector.load %arg1[%c0, %c0_0, %c0_1] : memref<1x128x16xf32, #tpu.memory_space<vmem>>, vector<1x128x16xf32>
    %1 = vector.shape_cast %0 : vector<1x128x16xf32> to vector<128x16xf32>
    %c0_2 = arith.constant 0 : index
    %c0_3 = arith.constant 0 : index
    %2 = vector.load %arg5[%c0_2, %c0_3] : memref<16x512xf32, #tpu.memory_space<vmem>>, vector<16x512xf32>
    %cst = arith.constant dense<0.000000e+00> : vector<128x512xf32>
    %3 = tpu.matmul %1, %2, %cst {dimension_numbers = #tpu.dot_dimension_numbers<[1], [0], [0], [1], [0, 0, 1, 1], [], []>} : vector<128x16xf32>, vector<16x512xf32>, vector<128x512xf32> -> vector<128x512xf32>
    %c0_4 = arith.constant 0 : index
    %c0_5 = arith.constant 0 : index
    %4 = vector.load %arg7[%c0_4, %c0_5] : memref<1x512xf32, #tpu.memory_space<vmem>>, vector<1x512xf32>
    %5 = vector.broadcast %4 : vector<1x512xf32> to vector<128x512xf32>
    %6 = arith.addf %3, %5 : vector<128x512xf32>
    %c0_6 = arith.constant 0 : index
    %c0_7 = arith.constant 0 : index
    %7 = vector.load %arg15[%c0_6, %c0_7] : memref<128x512xf32, #tpu.memory_space<vmem>>, vector<128x512xf32>
    tpu.vector_store %arg15[%c0_6, %c0_7], %6 {strides = array<i32>} : memref<128x512xf32, #tpu.memory_space<vmem>>, vector<128x512xf32>,
    %c0_8 = arith.constant 0 : index
    %c0_9 = arith.constant 0 : index
    %8 = vector.load %arg2[%c0_8, %c0_9] : memref<16x1xi32, #tpu.memory_space<vmem>>, vector<16x1xi32>
    %c0_10 = arith.constant 0 : index
    %c0_11 = arith.constant 0 : index
    %9 = vector.load %arg3[%c0_10, %c0_11] : memref<16x128xf32, #tpu.memory_space<vmem>>, vector<16x128xf32>
    %c0_12 = arith.constant 0 : index
    %c0_13 = arith.constant 0 : index
    %10 = vector.load %arg4[%c0_12, %c0_13] : memref<16x128xf32, #tpu.memory_space<vmem>>, vector<16x128xf32>
    %c0_14 = arith.constant 0 : index
    %c0_15 = arith.constant 0 : index
    %11 = vector.load %arg15[%c0_14, %c0_15] : memref<128x512xf32, #tpu.memory_space<vmem>>, vector<16x512xf32>
    %c0_16 = arith.constant 0 : index
    %c0_17 = arith.constant 0 : index
    %12 = vector.load %arg6[%c0_16, %c0_17] : memref<128x512xf32, #tpu.memory_space<vmem>>, vector<128x512xf32>
    %cst_18 = arith.constant dense<0.000000e+00> : vector<16x512xf32>
    %13 = tpu.matmul %9, %12, %cst_18 {dimension_numbers = #tpu.dot_dimension_numbers<[1], [0], [0], [1], [0, 0, 1, 1], [], []>} : vector<16x128xf32>, vector<128x512xf32>, vector<16x512xf32> -> vector<16x512xf32>
    %14 = arith.addf %11, %13 : vector<16x512xf32>
    %15 = vector.extract_strided_slice %14 {offsets = [0, 0], sizes = [16, 128], strides = [1, 1]} : vector<16x512xf32> to vector<16x128xf32>
    %16 = arith.negf %15 : vector<16x128xf32>
    %17 = math.exp %16 : vector<16x128xf32>
    %cst_19 = arith.constant 1.000000e+00 : f32
    %18 = vector.broadcast %cst_19 : f32 to vector<16x128xf32>
    %19 = arith.addf %18, %17 : vector<16x128xf32>
    %20 = arith.divf %18, %19 : vector<16x128xf32>
    %21 = vector.extract_strided_slice %14 {offsets = [0, 128], sizes = [16, 128], strides = [1, 1]} : vector<16x512xf32> to vector<16x128xf32>
    %22 = arith.negf %21 : vector<16x128xf32>
    %23 = math.exp %22 : vector<16x128xf32>
    %cst_20 = arith.constant 1.000000e+00 : f32
    %24 = vector.broadcast %cst_20 : f32 to vector<16x128xf32>
    %25 = arith.addf %24, %23 : vector<16x128xf32>
    %26 = arith.divf %24, %25 : vector<16x128xf32>
    %27 = vector.extract_strided_slice %14 {offsets = [0, 256], sizes = [16, 128], strides = [1, 1]} : vector<16x512xf32> to vector<16x128xf32>
    %28 = math.tanh %27 : vector<16x128xf32>
    %29 = vector.extract_strided_slice %14 {offsets = [0, 384], sizes = [16, 128], strides = [1, 1]} : vector<16x512xf32> to vector<16x128xf32>
    %30 = arith.negf %29 : vector<16x128xf32>
    %31 = math.exp %30 : vector<16x128xf32>
    %cst_21 = arith.constant 1.000000e+00 : f32
    %32 = vector.broadcast %cst_21 : f32 to vector<16x128xf32>
    %33 = arith.addf %32, %31 : vector<16x128xf32>
    %34 = arith.divf %32, %33 : vector<16x128xf32>
    %35 = arith.mulf %26, %10 : vector<16x128xf32>
    %36 = arith.mulf %20, %28 : vector<16x128xf32>
    %37 = arith.addf %35, %36 : vector<16x128xf32>
    %38 = math.tanh %37 : vector<16x128xf32>
    %39 = arith.mulf %34, %38 : vector<16x128xf32>
    %c0_i32 = arith.constant 0 : i32
    %40 = vector.broadcast %c0_i32 : i32 to vector<16x1xi32>
    %41 = arith.cmpi sgt, %8, %40 : vector<16x1xi32>
    %42 = vector.shape_cast %41 : vector<16x1xi1> to vector<16x1xi1>
    %43 = vector.broadcast %42 : vector<16x1xi1> to vector<16x128xi1>
    %44 = arith.select %43, %39, %9 : vector<16x128xi1>, vector<16x128xf32>
    %45 = vector.shape_cast %41 : vector<16x1xi1> to vector<16x1xi1>
    %46 = vector.broadcast %45 : vector<16x1xi1> to vector<16x128xi1>
    %47 = arith.select %46, %37, %10 : vector<16x128xi1>, vector<16x128xf32>
    %c16 = arith.constant 16 : index
    %c0_22 = arith.constant 0 : index
    %48 = vector.load %arg15[%c16, %c0_22] : memref<128x512xf32, #tpu.memory_space<vmem>>, vector<16x512xf32>
    %c0_23 = arith.constant 0 : index
    %c0_24 = arith.constant 0 : index
    %49 = vector.load %arg6[%c0_23, %c0_24] : memref<128x512xf32, #tpu.memory_space<vmem>>, vector<128x512xf32>
    %cst_25 = arith.constant dense<0.000000e+00> : vector<16x512xf32>
    %50 = tpu.matmul %44, %49, %cst_25 {dimension_numbers = #tpu.dot_dimension_numbers<[1], [0], [0], [1], [0, 0, 1, 1], [], []>} : vector<16x128xf32>, vector<128x512xf32>, vector<16x512xf32> -> vector<16x512xf32>
    %51 = arith.addf %48, %50 : vector<16x512xf32>
    %52 = vector.extract_strided_slice %51 {offsets = [0, 0], sizes = [16, 128], strides = [1, 1]} : vector<16x512xf32> to vector<16x128xf32>
    %53 = arith.negf %52 : vector<16x128xf32>
    %54 = math.exp %53 : vector<16x128xf32>
    %cst_26 = arith.constant 1.000000e+00 : f32
    %55 = vector.broadcast %cst_26 : f32 to vector<16x128xf32>
    %56 = arith.addf %55, %54 : vector<16x128xf32>
    %57 = arith.divf %55, %56 : vector<16x128xf32>
    %58 = vector.extract_strided_slice %51 {offsets = [0, 128], sizes = [16, 128], strides = [1, 1]} : vector<16x512xf32> to vector<16x128xf32>
    %59 = arith.negf %58 : vector<16x128xf32>
    %60 = math.exp %59 : vector<16x128xf32>
    %cst_27 = arith.constant 1.000000e+00 : f32
    %61 = vector.broadcast %cst_27 : f32 to vector<16x128xf32>
    %62 = arith.addf %61, %60 : vector<16x128xf32>
    %63 = arith.divf %61, %62 : vector<16x128xf32>
    %64 = vector.extract_strided_slice %51 {offsets = [0, 256], sizes = [16, 128], strides = [1, 1]} : vector<16x512xf32> to vector<16x128xf32>
    %65 = math.tanh %64 : vector<16x128xf32>
    %66 = vector.extract_strided_slice %51 {offsets = [0, 384], sizes = [16, 128], strides = [1, 1]} : vector<16x512xf32> to vector<16x128xf32>
    %67 = arith.negf %66 : vector<16x128xf32>
    %68 = math.exp %67 : vector<16x128xf32>
    %cst_28 = arith.constant 1.000000e+00 : f32
    %69 = vector.broadcast %cst_28 : f32 to vector<16x128xf32>
    %70 = arith.addf %69, %68 : vector<16x128xf32>
    %71 = arith.divf %69, %70 : vector<16x128xf32>
    %72 = arith.mulf %63, %47 : vector<16x128xf32>
    %73 = arith.mulf %57, %65 : vector<16x128xf32>
    %74 = arith.addf %72, %73 : vector<16x128xf32>
    %75 = math.tanh %74 : vector<16x128xf32>
    %76 = arith.mulf %71, %75 : vector<16x128xf32>
    %c1_i32 = arith.constant 1 : i32
    %77 = vector.broadcast %c1_i32 : i32 to vector<16x1xi32>
    %78 = arith.cmpi sgt, %8, %77 : vector<16x1xi32>
    %79 = vector.shape_cast %78 : vector<16x1xi1> to vector<16x1xi1>
    %80 = vector.broadcast %79 : vector<16x1xi1> to vector<16x128xi1>
    %81 = arith.select %80, %76, %44 : vector<16x128xi1>, vector<16x128xf32>
    %82 = vector.shape_cast %78 : vector<16x1xi1> to vector<16x1xi1>
    %83 = vector.broadcast %82 : vector<16x1xi1> to vector<16x128xi1>
    %84 = arith.select %83, %74, %47 : vector<16x128xi1>, vector<16x128xf32>
    %c32 = arith.constant 32 : index
    %c0_29 = arith.constant 0 : index
    %85 = vector.load %arg15[%c32, %c0_29] : memref<128x512xf32, #tpu.memory_space<vmem>>, vector<16x512xf32>
    %c0_30 = arith.constant 0 : index
    %c0_31 = arith.constant 0 : index
    %86 = vector.load %arg6[%c0_30, %c0_31] : memref<128x512xf32, #tpu.memory_space<vmem>>, vector<128x512xf32>
    %cst_32 = arith.constant dense<0.000000e+00> : vector<16x512xf32>
    %87 = tpu.matmul %81, %86, %cst_32 {dimension_numbers = #tpu.dot_dimension_numbers<[1], [0], [0], [1], [0, 0, 1, 1], [], []>} : vector<16x128xf32>, vector<128x512xf32>, vector<16x512xf32> -> vector<16x512xf32>
    %88 = arith.addf %85, %87 : vector<16x512xf32>
    %89 = vector.extract_strided_slice %88 {offsets = [0, 0], sizes = [16, 128], strides = [1, 1]} : vector<16x512xf32> to vector<16x128xf32>
    %90 = arith.negf %89 : vector<16x128xf32>
    %91 = math.exp %90 : vector<16x128xf32>
    %cst_33 = arith.constant 1.000000e+00 : f32
    %92 = vector.broadcast %cst_33 : f32 to vector<16x128xf32>
    %93 = arith.addf %92, %91 : vector<16x128xf32>
    %94 = arith.divf %92, %93 : vector<16x128xf32>
    %95 = vector.extract_strided_slice %88 {offsets = [0, 128], sizes = [16, 128], strides = [1, 1]} : vector<16x512xf32> to vector<16x128xf32>
    %96 = arith.negf %95 : vector<16x128xf32>
    %97 = math.exp %96 : vector<16x128xf32>
    %cst_34 = arith.constant 1.000000e+00 : f32
    %98 = vector.broadcast %cst_34 : f32 to vector<16x128xf32>
    %99 = arith.addf %98, %97 : vector<16x128xf32>
    %100 = arith.divf %98, %99 : vector<16x128xf32>
    %101 = vector.extract_strided_slice %88 {offsets = [0, 256], sizes = [16, 128], strides = [1, 1]} : vector<16x512xf32> to vector<16x128xf32>
    %102 = math.tanh %101 : vector<16x128xf32>
    %103 = vector.extract_strided_slice %88 {offsets = [0, 384], sizes = [16, 128], strides = [1, 1]} : vector<16x512xf32> to vector<16x128xf32>
    %104 = arith.negf %103 : vector<16x128xf32>
    %105 = math.exp %104 : vector<16x128xf32>
    %cst_35 = arith.constant 1.000000e+00 : f32
    %106 = vector.broadcast %cst_35 : f32 to vector<16x128xf32>
    %107 = arith.addf %106, %105 : vector<16x128xf32>
    %108 = arith.divf %106, %107 : vector<16x128xf32>
    %109 = arith.mulf %100, %84 : vector<16x128xf32>
    %110 = arith.mulf %94, %102 : vector<16x128xf32>
    %111 = arith.addf %109, %110 : vector<16x128xf32>
    %112 = math.tanh %111 : vector<16x128xf32>
    %113 = arith.mulf %108, %112 : vector<16x128xf32>
    %c2_i32 = arith.constant 2 : i32
    %114 = vector.broadcast %c2_i32 : i32 to vector<16x1xi32>
    %115 = arith.cmpi sgt, %8, %114 : vector<16x1xi32>
    %116 = vector.shape_cast %115 : vector<16x1xi1> to vector<16x1xi1>
    %117 = vector.broadcast %116 : vector<16x1xi1> to vector<16x128xi1>
    %118 = arith.select %117, %113, %81 : vector<16x128xi1>, vector<16x128xf32>
    %119 = vector.shape_cast %115 : vector<16x1xi1> to vector<16x1xi1>
    %120 = vector.broadcast %119 : vector<16x1xi1> to vector<16x128xi1>
    %121 = arith.select %120, %111, %84 : vector<16x128xi1>, vector<16x128xf32>
    %c48 = arith.constant 48 : index
    %c0_36 = arith.constant 0 : index
    %122 = vector.load %arg15[%c48, %c0_36] : memref<128x512xf32, #tpu.memory_space<vmem>>, vector<16x512xf32>
    %c0_37 = arith.constant 0 : index
    %c0_38 = arith.constant 0 : index
    %123 = vector.load %arg6[%c0_37, %c0_38] : memref<128x512xf32, #tpu.memory_space<vmem>>, vector<128x512xf32>
    %cst_39 = arith.constant dense<0.000000e+00> : vector<16x512xf32>
    %124 = tpu.matmul %118, %123, %cst_39 {dimension_numbers = #tpu.dot_dimension_numbers<[1], [0], [0], [1], [0, 0, 1, 1], [], []>} : vector<16x128xf32>, vector<128x512xf32>, vector<16x512xf32> -> vector<16x512xf32>
    %125 = arith.addf %122, %124 : vector<16x512xf32>
    %126 = vector.extract_strided_slice %125 {offsets = [0, 0], sizes = [16, 128], strides = [1, 1]} : vector<16x512xf32> to vector<16x128xf32>
    %127 = arith.negf %126 : vector<16x128xf32>
    %128 = math.exp %127 : vector<16x128xf32>
    %cst_40 = arith.constant 1.000000e+00 : f32
    %129 = vector.broadcast %cst_40 : f32 to vector<16x128xf32>
    %130 = arith.addf %129, %128 : vector<16x128xf32>
    %131 = arith.divf %129, %130 : vector<16x128xf32>
    %132 = vector.extract_strided_slice %125 {offsets = [0, 128], sizes = [16, 128], strides = [1, 1]} : vector<16x512xf32> to vector<16x128xf32>
    %133 = arith.negf %132 : vector<16x128xf32>
    %134 = math.exp %133 : vector<16x128xf32>
    %cst_41 = arith.constant 1.000000e+00 : f32
    %135 = vector.broadcast %cst_41 : f32 to vector<16x128xf32>
    %136 = arith.addf %135, %134 : vector<16x128xf32>
    %137 = arith.divf %135, %136 : vector<16x128xf32>
    %138 = vector.extract_strided_slice %125 {offsets = [0, 256], sizes = [16, 128], strides = [1, 1]} : vector<16x512xf32> to vector<16x128xf32>
    %139 = math.tanh %138 : vector<16x128xf32>
    %140 = vector.extract_strided_slice %125 {offsets = [0, 384], sizes = [16, 128], strides = [1, 1]} : vector<16x512xf32> to vector<16x128xf32>
    %141 = arith.negf %140 : vector<16x128xf32>
    %142 = math.exp %141 : vector<16x128xf32>
    %cst_42 = arith.constant 1.000000e+00 : f32
    %143 = vector.broadcast %cst_42 : f32 to vector<16x128xf32>
    %144 = arith.addf %143, %142 : vector<16x128xf32>
    %145 = arith.divf %143, %144 : vector<16x128xf32>
    %146 = arith.mulf %137, %121 : vector<16x128xf32>
    %147 = arith.mulf %131, %139 : vector<16x128xf32>
    %148 = arith.addf %146, %147 : vector<16x128xf32>
    %149 = math.tanh %148 : vector<16x128xf32>
    %150 = arith.mulf %145, %149 : vector<16x128xf32>
    %c3_i32 = arith.constant 3 : i32
    %151 = vector.broadcast %c3_i32 : i32 to vector<16x1xi32>
    %152 = arith.cmpi sgt, %8, %151 : vector<16x1xi32>
    %153 = vector.shape_cast %152 : vector<16x1xi1> to vector<16x1xi1>
    %154 = vector.broadcast %153 : vector<16x1xi1> to vector<16x128xi1>
    %155 = arith.select %154, %150, %118 : vector<16x128xi1>, vector<16x128xf32>
    %156 = vector.shape_cast %152 : vector<16x1xi1> to vector<16x1xi1>
    %157 = vector.broadcast %156 : vector<16x1xi1> to vector<16x128xi1>
    %158 = arith.select %157, %148, %121 : vector<16x128xi1>, vector<16x128xf32>
    %c64 = arith.constant 64 : index
    %c0_43 = arith.constant 0 : index
    %159 = vector.load %arg15[%c64, %c0_43] : memref<128x512xf32, #tpu.memory_space<vmem>>, vector<16x512xf32>
    %c0_44 = arith.constant 0 : index
    %c0_45 = arith.constant 0 : index
    %160 = vector.load %arg6[%c0_44, %c0_45] : memref<128x512xf32, #tpu.memory_space<vmem>>, vector<128x512xf32>
    %cst_46 = arith.constant dense<0.000000e+00> : vector<16x512xf32>
    %161 = tpu.matmul %155, %160, %cst_46 {dimension_numbers = #tpu.dot_dimension_numbers<[1], [0], [0], [1], [0, 0, 1, 1], [], []>} : vector<16x128xf32>, vector<128x512xf32>, vector<16x512xf32> -> vector<16x512xf32>
    %162 = arith.addf %159, %161 : vector<16x512xf32>
    %163 = vector.extract_strided_slice %162 {offsets = [0, 0], sizes = [16, 128], strides = [1, 1]} : vector<16x512xf32> to vector<16x128xf32>
    %164 = arith.negf %163 : vector<16x128xf32>
    %165 = math.exp %164 : vector<16x128xf32>
    %cst_47 = arith.constant 1.000000e+00 : f32
    %166 = vector.broadcast %cst_47 : f32 to vector<16x128xf32>
    %167 = arith.addf %166, %165 : vector<16x128xf32>
    %168 = arith.divf %166, %167 : vector<16x128xf32>
    %169 = vector.extract_strided_slice %162 {offsets = [0, 128], sizes = [16, 128], strides = [1, 1]} : vector<16x512xf32> to vector<16x128xf32>
    %170 = arith.negf %169 : vector<16x128xf32>
    %171 = math.exp %170 : vector<16x128xf32>
    %cst_48 = arith.constant 1.000000e+00 : f32
    %172 = vector.broadcast %cst_48 : f32 to vector<16x128xf32>
    %173 = arith.addf %172, %171 : vector<16x128xf32>
    %174 = arith.divf %172, %173 : vector<16x128xf32>
    %175 = vector.extract_strided_slice %162 {offsets = [0, 256], sizes = [16, 128], strides = [1, 1]} : vector<16x512xf32> to vector<16x128xf32>
    %176 = math.tanh %175 : vector<16x128xf32>
    %177 = vector.extract_strided_slice %162 {offsets = [0, 384], sizes = [16, 128], strides = [1, 1]} : vector<16x512xf32> to vector<16x128xf32>
    %178 = arith.negf %177 : vector<16x128xf32>
    %179 = math.exp %178 : vector<16x128xf32>
    %cst_49 = arith.constant 1.000000e+00 : f32
    %180 = vector.broadcast %cst_49 : f32 to vector<16x128xf32>
    %181 = arith.addf %180, %179 : vector<16x128xf32>
    %182 = arith.divf %180, %181 : vector<16x128xf32>
    %183 = arith.mulf %174, %158 : vector<16x128xf32>
    %184 = arith.mulf %168, %176 : vector<16x128xf32>
    %185 = arith.addf %183, %184 : vector<16x128xf32>
    %186 = math.tanh %185 : vector<16x128xf32>
    %187 = arith.mulf %182, %186 : vector<16x128xf32>
    %c4_i32 = arith.constant 4 : i32
    %188 = vector.broadcast %c4_i32 : i32 to vector<16x1xi32>
    %189 = arith.cmpi sgt, %8, %188 : vector<16x1xi32>
    %190 = vector.shape_cast %189 : vector<16x1xi1> to vector<16x1xi1>
    %191 = vector.broadcast %190 : vector<16x1xi1> to vector<16x128xi1>
    %192 = arith.select %191, %187, %155 : vector<16x128xi1>, vector<16x128xf32>
    %193 = vector.shape_cast %189 : vector<16x1xi1> to vector<16x1xi1>
    %194 = vector.broadcast %193 : vector<16x1xi1> to vector<16x128xi1>
    %195 = arith.select %194, %185, %158 : vector<16x128xi1>, vector<16x128xf32>
    %c80 = arith.constant 80 : index
    %c0_50 = arith.constant 0 : index
    %196 = vector.load %arg15[%c80, %c0_50] : memref<128x512xf32, #tpu.memory_space<vmem>>, vector<16x512xf32>
    %c0_51 = arith.constant 0 : index
    %c0_52 = arith.constant 0 : index
    %197 = vector.load %arg6[%c0_51, %c0_52] : memref<128x512xf32, #tpu.memory_space<vmem>>, vector<128x512xf32>
    %cst_53 = arith.constant dense<0.000000e+00> : vector<16x512xf32>
    %198 = tpu.matmul %192, %197, %cst_53 {dimension_numbers = #tpu.dot_dimension_numbers<[1], [0], [0], [1], [0, 0, 1, 1], [], []>} : vector<16x128xf32>, vector<128x512xf32>, vector<16x512xf32> -> vector<16x512xf32>
    %199 = arith.addf %196, %198 : vector<16x512xf32>
    %200 = vector.extract_strided_slice %199 {offsets = [0, 0], sizes = [16, 128], strides = [1, 1]} : vector<16x512xf32> to vector<16x128xf32>
    %201 = arith.negf %200 : vector<16x128xf32>
    %202 = math.exp %201 : vector<16x128xf32>
    %cst_54 = arith.constant 1.000000e+00 : f32
    %203 = vector.broadcast %cst_54 : f32 to vector<16x128xf32>
    %204 = arith.addf %203, %202 : vector<16x128xf32>
    %205 = arith.divf %203, %204 : vector<16x128xf32>
    %206 = vector.extract_strided_slice %199 {offsets = [0, 128], sizes = [16, 128], strides = [1, 1]} : vector<16x512xf32> to vector<16x128xf32>
    %207 = arith.negf %206 : vector<16x128xf32>
    %208 = math.exp %207 : vector<16x128xf32>
    %cst_55 = arith.constant 1.000000e+00 : f32
    %209 = vector.broadcast %cst_55 : f32 to vector<16x128xf32>
    %210 = arith.addf %209, %208 : vector<16x128xf32>
    %211 = arith.divf %209, %210 : vector<16x128xf32>
    %212 = vector.extract_strided_slice %199 {offsets = [0, 256], sizes = [16, 128], strides = [1, 1]} : vector<16x512xf32> to vector<16x128xf32>
    %213 = math.tanh %212 : vector<16x128xf32>
    %214 = vector.extract_strided_slice %199 {offsets = [0, 384], sizes = [16, 128], strides = [1, 1]} : vector<16x512xf32> to vector<16x128xf32>
    %215 = arith.negf %214 : vector<16x128xf32>
    %216 = math.exp %215 : vector<16x128xf32>
    %cst_56 = arith.constant 1.000000e+00 : f32
    %217 = vector.broadcast %cst_56 : f32 to vector<16x128xf32>
    %218 = arith.addf %217, %216 : vector<16x128xf32>
    %219 = arith.divf %217, %218 : vector<16x128xf32>
    %220 = arith.mulf %211, %195 : vector<16x128xf32>
    %221 = arith.mulf %205, %213 : vector<16x128xf32>
    %222 = arith.addf %220, %221 : vector<16x128xf32>
    %223 = math.tanh %222 : vector<16x128xf32>
    %224 = arith.mulf %219, %223 : vector<16x128xf32>
    %c5_i32 = arith.constant 5 : i32
    %225 = vector.broadcast %c5_i32 : i32 to vector<16x1xi32>
    %226 = arith.cmpi sgt, %8, %225 : vector<16x1xi32>
    %227 = vector.shape_cast %226 : vector<16x1xi1> to vector<16x1xi1>
    %228 = vector.broadcast %227 : vector<16x1xi1> to vector<16x128xi1>
    %229 = arith.select %228, %224, %192 : vector<16x128xi1>, vector<16x128xf32>
    %230 = vector.shape_cast %226 : vector<16x1xi1> to vector<16x1xi1>
    %231 = vector.broadcast %230 : vector<16x1xi1> to vector<16x128xi1>
    %232 = arith.select %231, %222, %195 : vector<16x128xi1>, vector<16x128xf32>
    %c96 = arith.constant 96 : index
    %c0_57 = arith.constant 0 : index
    %233 = vector.load %arg15[%c96, %c0_57] : memref<128x512xf32, #tpu.memory_space<vmem>>, vector<16x512xf32>
    %c0_58 = arith.constant 0 : index
    %c0_59 = arith.constant 0 : index
    %234 = vector.load %arg6[%c0_58, %c0_59] : memref<128x512xf32, #tpu.memory_space<vmem>>, vector<128x512xf32>
    %cst_60 = arith.constant dense<0.000000e+00> : vector<16x512xf32>
    %235 = tpu.matmul %229, %234, %cst_60 {dimension_numbers = #tpu.dot_dimension_numbers<[1], [0], [0], [1], [0, 0, 1, 1], [], []>} : vector<16x128xf32>, vector<128x512xf32>, vector<16x512xf32> -> vector<16x512xf32>
    %236 = arith.addf %233, %235 : vector<16x512xf32>
    %237 = vector.extract_strided_slice %236 {offsets = [0, 0], sizes = [16, 128], strides = [1, 1]} : vector<16x512xf32> to vector<16x128xf32>
    %238 = arith.negf %237 : vector<16x128xf32>
    %239 = math.exp %238 : vector<16x128xf32>
    %cst_61 = arith.constant 1.000000e+00 : f32
    %240 = vector.broadcast %cst_61 : f32 to vector<16x128xf32>
    %241 = arith.addf %240, %239 : vector<16x128xf32>
    %242 = arith.divf %240, %241 : vector<16x128xf32>
    %243 = vector.extract_strided_slice %236 {offsets = [0, 128], sizes = [16, 128], strides = [1, 1]} : vector<16x512xf32> to vector<16x128xf32>
    %244 = arith.negf %243 : vector<16x128xf32>
    %245 = math.exp %244 : vector<16x128xf32>
    %cst_62 = arith.constant 1.000000e+00 : f32
    %246 = vector.broadcast %cst_62 : f32 to vector<16x128xf32>
    %247 = arith.addf %246, %245 : vector<16x128xf32>
    %248 = arith.divf %246, %247 : vector<16x128xf32>
    %249 = vector.extract_strided_slice %236 {offsets = [0, 256], sizes = [16, 128], strides = [1, 1]} : vector<16x512xf32> to vector<16x128xf32>
    %250 = math.tanh %249 : vector<16x128xf32>
    %251 = vector.extract_strided_slice %236 {offsets = [0, 384], sizes = [16, 128], strides = [1, 1]} : vector<16x512xf32> to vector<16x128xf32>
    %252 = arith.negf %251 : vector<16x128xf32>
    %253 = math.exp %252 : vector<16x128xf32>
    %cst_63 = arith.constant 1.000000e+00 : f32
    %254 = vector.broadcast %cst_63 : f32 to vector<16x128xf32>
    %255 = arith.addf %254, %253 : vector<16x128xf32>
    %256 = arith.divf %254, %255 : vector<16x128xf32>
    %257 = arith.mulf %248, %232 : vector<16x128xf32>
    %258 = arith.mulf %242, %250 : vector<16x128xf32>
    %259 = arith.addf %257, %258 : vector<16x128xf32>
    %260 = math.tanh %259 : vector<16x128xf32>
    %261 = arith.mulf %256, %260 : vector<16x128xf32>
    %c6_i32 = arith.constant 6 : i32
    %262 = vector.broadcast %c6_i32 : i32 to vector<16x1xi32>
    %263 = arith.cmpi sgt, %8, %262 : vector<16x1xi32>
    %264 = vector.shape_cast %263 : vector<16x1xi1> to vector<16x1xi1>
    %265 = vector.broadcast %264 : vector<16x1xi1> to vector<16x128xi1>
    %266 = arith.select %265, %261, %229 : vector<16x128xi1>, vector<16x128xf32>
    %267 = vector.shape_cast %263 : vector<16x1xi1> to vector<16x1xi1>
    %268 = vector.broadcast %267 : vector<16x1xi1> to vector<16x128xi1>
    %269 = arith.select %268, %259, %232 : vector<16x128xi1>, vector<16x128xf32>
    %c112 = arith.constant 112 : index
    %c0_64 = arith.constant 0 : index
    %270 = vector.load %arg15[%c112, %c0_64] : memref<128x512xf32, #tpu.memory_space<vmem>>, vector<16x512xf32>
    %c0_65 = arith.constant 0 : index
    %c0_66 = arith.constant 0 : index
    %271 = vector.load %arg6[%c0_65, %c0_66] : memref<128x512xf32, #tpu.memory_space<vmem>>, vector<128x512xf32>
    %cst_67 = arith.constant dense<0.000000e+00> : vector<16x512xf32>
    %272 = tpu.matmul %266, %271, %cst_67 {dimension_numbers = #tpu.dot_dimension_numbers<[1], [0], [0], [1], [0, 0, 1, 1], [], []>} : vector<16x128xf32>, vector<128x512xf32>, vector<16x512xf32> -> vector<16x512xf32>
    %273 = arith.addf %270, %272 : vector<16x512xf32>
    %274 = vector.extract_strided_slice %273 {offsets = [0, 0], sizes = [16, 128], strides = [1, 1]} : vector<16x512xf32> to vector<16x128xf32>
    %275 = arith.negf %274 : vector<16x128xf32>
    %276 = math.exp %275 : vector<16x128xf32>
    %cst_68 = arith.constant 1.000000e+00 : f32
    %277 = vector.broadcast %cst_68 : f32 to vector<16x128xf32>
    %278 = arith.addf %277, %276 : vector<16x128xf32>
    %279 = arith.divf %277, %278 : vector<16x128xf32>
    %280 = vector.extract_strided_slice %273 {offsets = [0, 128], sizes = [16, 128], strides = [1, 1]} : vector<16x512xf32> to vector<16x128xf32>
    %281 = arith.negf %280 : vector<16x128xf32>
    %282 = math.exp %281 : vector<16x128xf32>
    %cst_69 = arith.constant 1.000000e+00 : f32
    %283 = vector.broadcast %cst_69 : f32 to vector<16x128xf32>
    %284 = arith.addf %283, %282 : vector<16x128xf32>
    %285 = arith.divf %283, %284 : vector<16x128xf32>
    %286 = vector.extract_strided_slice %273 {offsets = [0, 256], sizes = [16, 128], strides = [1, 1]} : vector<16x512xf32> to vector<16x128xf32>
    %287 = math.tanh %286 : vector<16x128xf32>
    %288 = vector.extract_strided_slice %273 {offsets = [0, 384], sizes = [16, 128], strides = [1, 1]} : vector<16x512xf32> to vector<16x128xf32>
    %289 = arith.negf %288 : vector<16x128xf32>
    %290 = math.exp %289 : vector<16x128xf32>
    %cst_70 = arith.constant 1.000000e+00 : f32
    %291 = vector.broadcast %cst_70 : f32 to vector<16x128xf32>
    %292 = arith.addf %291, %290 : vector<16x128xf32>
    %293 = arith.divf %291, %292 : vector<16x128xf32>
    %294 = arith.mulf %285, %269 : vector<16x128xf32>
    %295 = arith.mulf %279, %287 : vector<16x128xf32>
    %296 = arith.addf %294, %295 : vector<16x128xf32>
    %297 = math.tanh %296 : vector<16x128xf32>
    %298 = arith.mulf %293, %297 : vector<16x128xf32>
    %c7_i32 = arith.constant 7 : i32
    %299 = vector.broadcast %c7_i32 : i32 to vector<16x1xi32>
    %300 = arith.cmpi sgt, %8, %299 : vector<16x1xi32>
    %301 = vector.shape_cast %300 : vector<16x1xi1> to vector<16x1xi1>
    %302 = vector.broadcast %301 : vector<16x1xi1> to vector<16x128xi1>
    %303 = arith.select %302, %298, %266 : vector<16x128xi1>, vector<16x128xf32>
    %c0_71 = arith.constant 0 : index
    %c0_72 = arith.constant 0 : index
    %304 = vector.load %arg9[%c0_71, %c0_72] : memref<128x128xf32, #tpu.memory_space<vmem>>, vector<128x128xf32>
    %cst_73 = arith.constant dense<0.000000e+00> : vector<16x128xf32>
    %305 = tpu.matmul %303, %304, %cst_73 {dimension_numbers = #tpu.dot_dimension_numbers<[1], [0], [0], [1], [0, 0, 1, 1], [], []>} : vector<16x128xf32>, vector<128x128xf32>, vector<16x128xf32> -> vector<16x128xf32>
    %c0_74 = arith.constant 0 : index
    %c0_75 = arith.constant 0 : index
    %306 = vector.load %arg8[%c0_74, %c0_75] : memref<16x8xf32, #tpu.memory_space<vmem>>, vector<16x8xf32>
    %c0_76 = arith.constant 0 : index
    %c0_77 = arith.constant 0 : index
    %307 = vector.load %arg10[%c0_76, %c0_77] : memref<8x128xf32, #tpu.memory_space<vmem>>, vector<8x128xf32>
    %cst_78 = arith.constant dense<0.000000e+00> : vector<16x128xf32>
    %308 = tpu.matmul %306, %307, %cst_78 {dimension_numbers = #tpu.dot_dimension_numbers<[1], [0], [0], [1], [0, 0, 1, 1], [], []>} : vector<16x8xf32>, vector<8x128xf32>, vector<16x128xf32> -> vector<16x128xf32>
    %309 = arith.addf %305, %308 : vector<16x128xf32>
    %c0_79 = arith.constant 0 : index
    %c0_80 = arith.constant 0 : index
    %310 = vector.load %arg11[%c0_79, %c0_80] : memref<1x128xf32, #tpu.memory_space<vmem>>, vector<1x128xf32>
    %311 = vector.broadcast %310 : vector<1x128xf32> to vector<16x128xf32>
    %312 = arith.addf %309, %311 : vector<16x128xf32>
    %cst_81 = arith.constant 0.000000e+00 : f32
    %313 = vector.broadcast %cst_81 : f32 to vector<16x128xf32>
    %314 = arith.maximumf %312, %313 : vector<16x128xf32>
    %c0_82 = arith.constant 0 : index
    %c0_83 = arith.constant 0 : index
    %315 = vector.load %arg12[%c0_82, %c0_83] : memref<1x128xf32, #tpu.memory_space<vmem>>, vector<1x128xf32>
    %316 = vector.broadcast %315 : vector<1x128xf32> to vector<16x128xf32>
    %317 = arith.mulf %314, %316 : vector<16x128xf32>
    %cst_84 = arith.constant dense<0.000000e+00> : vector<16xf32>
    %318 = vector.multi_reduction <add>, %317, %cst_84 [1] : vector<16x128xf32> to vector<16xf32>
    %319 = vector.shape_cast %318 : vector<16xf32> to vector<16x1xf32>
    %c0_85 = arith.constant 0 : index
    %c0_86 = arith.constant 0 : index
    %320 = vector.load %arg13[%c0_85, %c0_86] : memref<1x1xf32, #tpu.memory_space<vmem>>, vector<1x1xf32>
    %321 = vector.broadcast %320 : vector<1x1xf32> to vector<16x1xf32>
    %322 = arith.addf %319, %321 : vector<16x1xf32>
    %c0_87 = arith.constant 0 : index
    %c0_88 = arith.constant 0 : index
    %323 = vector.load %arg14[%c0_87, %c0_88] : memref<16x1xf32, #tpu.memory_space<vmem>>, vector<16x1xf32>
    tpu.vector_store %arg14[%c0_87, %c0_88], %322 {strides = array<i32>} : memref<16x1xf32, #tpu.memory_space<vmem>>, vector<16x1xf32>,
    return
  }
  func.func @transform_0(%arg0: i32) -> (i32, i32, i32) {
    %c0_i32 = arith.constant 0 : i32
    %c0_i32_0 = arith.constant 0 : i32
    %c0_i32_1 = arith.constant 0 : i32
    return %arg0, %c0_i32, %c0_i32_0 : i32, i32, i32
  }
  func.func @transform_1(%arg0: i32) -> (i32, i32) {
    %c0_i32 = arith.constant 0 : i32
    %c0_i32_0 = arith.constant 0 : i32
    return %arg0, %c0_i32 : i32, i32
  }
  func.func @transform_2(%arg0: i32) -> (i32, i32) {
    %c0_i32 = arith.constant 0 : i32
    %c0_i32_0 = arith.constant 0 : i32
    return %arg0, %c0_i32 : i32, i32
  }
  func.func @transform_3(%arg0: i32) -> (i32, i32) {
    %c0_i32 = arith.constant 0 : i32
    %c0_i32_0 = arith.constant 0 : i32
    return %arg0, %c0_i32 : i32, i32
  }
  func.func @transform_4(%arg0: i32) -> (i32, i32) {
    %c0_i32 = arith.constant 0 : i32
    %c0_i32_0 = arith.constant 0 : i32
    %c0_i32_1 = arith.constant 0 : i32
    return %c0_i32, %c0_i32_0 : i32, i32
  }
  func.func @transform_5(%arg0: i32) -> (i32, i32) {
    %c0_i32 = arith.constant 0 : i32
    %c0_i32_0 = arith.constant 0 : i32
    %c0_i32_1 = arith.constant 0 : i32
    return %c0_i32, %c0_i32_0 : i32, i32
  }
  func.func @transform_6(%arg0: i32) -> (i32, i32) {
    %c0_i32 = arith.constant 0 : i32
    %c0_i32_0 = arith.constant 0 : i32
    %c0_i32_1 = arith.constant 0 : i32
    return %c0_i32, %c0_i32_0 : i32, i32
  }
  func.func @transform_7(%arg0: i32) -> (i32, i32) {
    %c0_i32 = arith.constant 0 : i32
    %c0_i32_0 = arith.constant 0 : i32
    return %arg0, %c0_i32 : i32, i32
  }
  func.func @transform_8(%arg0: i32) -> (i32, i32) {
    %c0_i32 = arith.constant 0 : i32
    %c0_i32_0 = arith.constant 0 : i32
    %c0_i32_1 = arith.constant 0 : i32
    return %c0_i32, %c0_i32_0 : i32, i32
  }
  func.func @transform_9(%arg0: i32) -> (i32, i32) {
    %c0_i32 = arith.constant 0 : i32
    %c0_i32_0 = arith.constant 0 : i32
    %c0_i32_1 = arith.constant 0 : i32
    return %c0_i32, %c0_i32_0 : i32, i32
  }
  func.func @transform_10(%arg0: i32) -> (i32, i32) {
    %c0_i32 = arith.constant 0 : i32
    %c0_i32_0 = arith.constant 0 : i32
    %c0_i32_1 = arith.constant 0 : i32
    return %c0_i32, %c0_i32_0 : i32, i32
  }
  func.func @transform_11(%arg0: i32) -> (i32, i32) {
    %c0_i32 = arith.constant 0 : i32
    %c0_i32_0 = arith.constant 0 : i32
    %c0_i32_1 = arith.constant 0 : i32
    return %c0_i32, %c0_i32_0 : i32, i32
  }
  func.func @transform_12(%arg0: i32) -> (i32, i32) {
    %c0_i32 = arith.constant 0 : i32
    %c0_i32_0 = arith.constant 0 : i32
    %c0_i32_1 = arith.constant 0 : i32
    return %c0_i32, %c0_i32_0 : i32, i32
  }
  func.func @transform_13(%arg0: i32) -> (i32, i32) {
    %c0_i32 = arith.constant 0 : i32
    %c0_i32_0 = arith.constant 0 : i32
    return %arg0, %c0_i32 : i32, i32
  }
}

</mosaic_0001>

<llo_original>
// kernel: tpu_custom_call.1
$region0: #{tpu_custom_call.1}
  #allocation0 [shape = 'u32[]', space=smem, size = 0x4, offset = 0x4, fixed_abs, tag = 'smem constant byte address 0x4 - core index']
  #allocation1 [shape = 'u32[144,128]{1,0:T(1,128)}', space=vmem, size = 0x12000, scoped, tag = 'internal scratch']
  #allocation2 [shape = 'f32[128,512]{1,0:T(8,128)}', space=vmem, size = 0x40000, scoped, tag = 'scratch operand']
  #allocation3 [shape = 'f32[1,1]{1,0:T(1,128)S(1)}', space=vmem, size = 0x200, scoped, tag = 'scoped memory for tpu_custom_call.1']
  %s0 = inlined_call_operand.vmem [shape: f32[1,128,16], index: 0, kind: input, shape index: {}]
  %s1 = inlined_call_operand.vmem [shape: s32[16,1], index: 1, kind: input, shape index: {}]
  %s2 = inlined_call_operand.hbm [shape: f32[16,128], index: 2, kind: input, shape index: {}]
  %s3 = inlined_call_operand.hbm [shape: f32[16,128], index: 3, kind: input, shape index: {}]
  %s4 = inlined_call_operand.vmem [shape: f32[16,512], index: 4, kind: input, shape index: {}]
  %s5 = inlined_call_operand.hbm [shape: f32[128,512], index: 5, kind: input, shape index: {}]
  %s6 = inlined_call_operand.hbm [shape: f32[1,512], index: 6, kind: input, shape index: {}]
  %s7 = inlined_call_operand.vmem [shape: f32[16,8], index: 7, kind: input, shape index: {}]
  %s8 = inlined_call_operand.vmem [shape: f32[128,128], index: 8, kind: input, shape index: {}]
  %s9 = inlined_call_operand.vmem [shape: f32[8,128], index: 9, kind: input, shape index: {}]
  %s10 = inlined_call_operand.vmem [shape: f32[1,128], index: 10, kind: input, shape index: {}]
  %s11 = inlined_call_operand.vmem [shape: f32[1,128], index: 11, kind: input, shape index: {}]
  %s12 = inlined_call_operand.<no memory space> [shape: f32[1,1], index: 12, kind: input, shape index: {}]
  %s13 = inlined_call_operand.vmem [shape: f32[16,1], index: 13, kind: output, shape index: {}]
  %s14 = sld [smem:[#allocation0]]
  $region78: #{tpu_custom_call.1} parent=0
    _
  %s16 = ssub.s32 1, %s14
  %s17 = scalar_select 0, %s16, %s14
  %v18 = vstv %s12
  %19 = vst [vmem:[#allocation3] sm:$0x1] %v18
  $region1: #{tpu_custom_call.1} parent=0
    #allocation4 [shape = 'u8[8192]{0}', space=vmem, size = 0x2000, scoped, tag = 'input window, operand 2, single buffered']
    #allocation5 [shape = 's32[1]{0}', space=sflag, size = 0x4, scoped, tag = 'scoped memory for tpu_custom_call.1']
    #allocation6 [shape = 'u8[8192]{0}', space=vmem, size = 0x2000, scoped, tag = 'input window, operand 3, single buffered']
    #allocation7 [shape = 's32[1]{0}', space=sflag, size = 0x4, scoped, tag = 'scoped memory for tpu_custom_call.1']
    #allocation8 [shape = 'u8[262144]{0}', space=vmem, size = 0x40000, scoped, tag = 'input window, operand 5, single buffered']
    #allocation9 [shape = 'u8[2048]{0}', space=vmem, size = 0x800, scoped, tag = 'input window, operand 6, single buffered']
    #allocation10 [shape = 's32[1]{0}', space=sflag, size = 0x4, scoped, tag = 'scoped memory for tpu_custom_call.1']
    %20 = vsyncpa [#allocation5], 0
    %21 = vsyncpa [#allocation7], 0
    %22 = vsyncpa [#allocation10], 0
    // Predicated region
    $region2: #{tpu_custom_call.1} parent=1 // pred_check
      _
    $region3: #{tpu_custom_call.1} parent=1 // pred_check_branch
      %24 = sbr.rel (0) target = $region5
    $region4: #{tpu_custom_call.1} parent=1 // pred_region
      _
    $region5: #{tpu_custom_call.1} parent=1 // pred_fallthru
      _
    // Predicated region
    $region6: #{tpu_custom_call.1} parent=1 // pred_check
      _
    $region7: #{tpu_custom_call.1} parent=1 // pred_check_branch
      %26 = sbr.rel (0) target = $region9
    $region8: #{tpu_custom_call.1} parent=1 // pred_region
      _
    $region9: #{tpu_custom_call.1} parent=1 // pred_fallthru
      _
    // Predicated region
    $region10: #{tpu_custom_call.1} parent=1 // pred_check
      _
    $region11: #{tpu_custom_call.1} parent=1 // pred_check_branch
      %28 = sbr.rel (0) target = $region13
    $region12: #{tpu_custom_call.1} parent=1 // pred_region
      %s30 = ssub.s32 256, 256
      %31 = vsyncadd [#allocation5], %s30
      %s32 = sshll.u32 [#allocation4], 4
      %s33 = int_to_ptr.vmem [resolvable:$true] %s32
      %38 = dma.hbm_to_vmem [thread:$0]  %s2, 256, %s33, [#allocation5], 128, 128, 8
    $region13: #{tpu_custom_call.1} parent=1 // pred_fallthru
      _
    // Predicated region
    $region14: #{tpu_custom_call.1} parent=1 // pred_check
      _
    $region15: #{tpu_custom_call.1} parent=1 // pred_check_branch
      %40 = sbr.rel (0) target = $region17
    $region16: #{tpu_custom_call.1} parent=1 // pred_region
      %s42 = ssub.s32 256, 256
      %43 = vsyncadd [#allocation7], %s42
      %s44 = sshll.u32 [#allocation6], 4
      %s45 = int_to_ptr.vmem [resolvable:$true] %s44
      %50 = dma.hbm_to_vmem [thread:$0]  %s3, 256, %s45, [#allocation7], 128, 128, 8
    $region17: #{tpu_custom_call.1} parent=1 // pred_fallthru
      _
    // Predicated region
    $region18: #{tpu_custom_call.1} parent=1 // pred_check
      _
    $region19: #{tpu_custom_call.1} parent=1 // pred_check_branch
      %52 = sbr.rel (0) target = $region21
    $region20: #{tpu_custom_call.1} parent=1 // pred_region
      _
    $region21: #{tpu_custom_call.1} parent=1 // pred_fallthru
      _
    // Predicated region
    $region22: #{tpu_custom_call.1} parent=1 // pred_check
      _
    $region23: #{tpu_custom_call.1} parent=1 // pred_check_branch
      %54 = sbr.rel (0) target = $region25
    $region24: #{tpu_custom_call.1} parent=1 // pred_region
      %s56 = ssub.s32 8192, 8192
      %57 = vsyncadd [#allocation7], %s56
      %s58 = sshll.u32 [#allocation8], 4
      %s59 = int_to_ptr.vmem [resolvable:$true] %s58
      %64 = dma.hbm_to_vmem [thread:$0]  %s5, 8192, %s59, [#allocation7], 512, 512, 32
    $region25: #{tpu_custom_call.1} parent=1 // pred_fallthru
      _
    // Predicated region
    $region26: #{tpu_custom_call.1} parent=1 // pred_check
      _
    $region27: #{tpu_custom_call.1} parent=1 // pred_check_branch
      %66 = sbr.rel (0) target = $region29
    $region28: #{tpu_custom_call.1} parent=1 // pred_region
      %s68 = ssub.s32 64, 64
      %69 = vsyncadd [#allocation10], %s68
      %s71 = sshll.u32 [#allocation9], 4
      %s72 = int_to_ptr.vmem [resolvable:$true] %s71
      %74 = dma.hbm_to_vmem [thread:$0]  %s6, 64, %s72, [#allocation10]
    $region29: #{tpu_custom_call.1} parent=1 // pred_fallthru
      _
    // Predicated region
    $region30: #{tpu_custom_call.1} parent=1 // pred_check
      _
    $region31: #{tpu_custom_call.1} parent=1 // pred_check_branch
      %76 = sbr.rel (0) target = $region33
    $region32: #{tpu_custom_call.1} parent=1 // pred_region
      _
    $region33: #{tpu_custom_call.1} parent=1 // pred_fallthru
      _
    // Predicated region
    $region34: #{tpu_custom_call.1} parent=1 // pred_check
      _
    $region35: #{tpu_custom_call.1} parent=1 // pred_check_branch
      %78 = sbr.rel (0) target = $region37
    $region36: #{tpu_custom_call.1} parent=1 // pred_region
      _
    $region37: #{tpu_custom_call.1} parent=1 // pred_fallthru
      _
    // Predicated region
    $region38: #{tpu_custom_call.1} parent=1 // pred_check
      _
    $region39: #{tpu_custom_call.1} parent=1 // pred_check_branch
      %80 = sbr.rel (0) target = $region41
    $region40: #{tpu_custom_call.1} parent=1 // pred_region
      _
    $region41: #{tpu_custom_call.1} parent=1 // pred_fallthru
      _
    // Predicated region
    $region42: #{tpu_custom_call.1} parent=1 // pred_check
      _
    $region43: #{tpu_custom_call.1} parent=1 // pred_check_branch
      %82 = sbr.rel (0) target = $region45
    $region44: #{tpu_custom_call.1} parent=1 // pred_region
      _
    $region45: #{tpu_custom_call.1} parent=1 // pred_fallthru
      _
    // Predicated region
    $region46: #{tpu_custom_call.1} parent=1 // pred_check
      _
    $region47: #{tpu_custom_call.1} parent=1 // pred_check_branch
      %84 = sbr.rel (0) target = $region49
    $region48: #{tpu_custom_call.1} parent=1 // pred_region
      _
    $region49: #{tpu_custom_call.1} parent=1 // pred_fallthru
      _
    // Predicated region
    $region50: #{tpu_custom_call.1} parent=1 // pred_check
      _
    $region51: #{tpu_custom_call.1} parent=1 // pred_check_branch
      %86 = sbr.rel (0) target = $region53
    $region52: #{tpu_custom_call.1} parent=1 // pred_region
      _
    $region53: #{tpu_custom_call.1} parent=1 // pred_fallthru
      _
    // Predicated region
    $region54: #{tpu_custom_call.1} parent=1 // pred_check
      _
    $region55: #{tpu_custom_call.1} parent=1 // pred_check_branch
      %88 = sbr.rel (0) target = $region57
    $region56: #{tpu_custom_call.1} parent=1 // pred_region
      %89 = dma.done [#allocation5], 256
    $region57: #{tpu_custom_call.1} parent=1 // pred_fallthru
      _
    // Predicated region
    $region58: #{tpu_custom_call.1} parent=1 // pred_check
      _
    $region59: #{tpu_custom_call.1} parent=1 // pred_check_branch
      %91 = sbr.rel (0) target = $region61
    $region60: #{tpu_custom_call.1} parent=1 // pred_region
      %92 = dma.done [#allocation7], 256
    $region61: #{tpu_custom_call.1} parent=1 // pred_fallthru
      _
    // Predicated region
    $region62: #{tpu_custom_call.1} parent=1 // pred_check
      _
    $region63: #{tpu_custom_call.1} parent=1 // pred_check_branch
      %94 = sbr.rel (0) target = $region65
    $region64: #{tpu_custom_call.1} parent=1 // pred_region
      %95 = dma.done [#allocation7], 8192
    $region65: #{tpu_custom_call.1} parent=1 // pred_fallthru
      _
    // Predicated region
    $region66: #{tpu_custom_call.1} parent=1 // pred_check
      _
    $region67: #{tpu_custom_call.1} parent=1 // pred_check_branch
      %97 = sbr.rel (0) target = $region69
    $region68: #{tpu_custom_call.1} parent=1 // pred_region
      %98 = dma.done [#allocation10], 64
    $region69: #{tpu_custom_call.1} parent=1 // pred_fallthru
      _
    %v99 = vld [vmem:[%s0] sm:$0xff]
    %v100 = vld [vmem:[%s0 + $0x8] sm:$0xff]
    %v101 = vld [vmem:[%s0 + $0x10] sm:$0xff]
    %v102 = vld [vmem:[%s0 + $0x18] sm:$0xff]
    %v103 = vld [vmem:[%s0 + $0x20] sm:$0xff]
    %v104 = vld [vmem:[%s0 + $0x28] sm:$0xff]
    %v105 = vld [vmem:[%s0 + $0x30] sm:$0xff]
    %v106 = vld [vmem:[%s0 + $0x38] sm:$0xff]
    %v107 = vld [vmem:[%s0 + $0x40] sm:$0xff]
    %v108 = vld [vmem:[%s0 + $0x48] sm:$0xff]
    %v109 = vld [vmem:[%s0 + $0x50] sm:$0xff]
    %v110 = vld [vmem:[%s0 + $0x58] sm:$0xff]
    %v111 = vld [vmem:[%s0 + $0x60] sm:$0xff]
    %v112 = vld [vmem:[%s0 + $0x68] sm:$0xff]
    %v113 = vld [vmem:[%s0 + $0x70] sm:$0xff]
    %v114 = vld [vmem:[%s0 + $0x78] sm:$0xff]
    %v115 = vld [vmem:[%s4] sm:$0xff]
    %v116 = vld [vmem:[%s4 + $0x8] sm:$0xff]
    %v117 = vld [vmem:[%s4 + $0x10] sm:$0xff]
    %v118 = vld [vmem:[%s4 + $0x18] sm:$0xff]
    %v119 = vld [vmem:[%s4 + $0x20] sm:$0xff]
    %v120 = vld [vmem:[%s4 + $0x28] sm:$0xff]
    %v121 = vld [vmem:[%s4 + $0x30] sm:$0xff]
    %v122 = vld [vmem:[%s4 + $0x38] sm:$0xff]
    %v123 = vld [vmem:[#allocation9] sm:$0xf]
    %v125 = vlaneseq
    %v126 = vshrl.u32 %v125, 7
    %v127 = vsub.s32 0, %v126
    %v128 = vrot.slane %v123, %v127
    %v129 = vlaneseq
    %v130 = vshrl.u32 %v129, 7
    %v131 = vsub.s32 1, %v130
    %v132 = vrot.slane %v123, %v131
    %v133 = vlaneseq
    %v134 = vshrl.u32 %v133, 7
    %v135 = vsub.s32 2, %v134
    %v136 = vrot.slane %v123, %v135
    %v137 = vlaneseq
    %v138 = vshrl.u32 %v137, 7
    %v139 = vsub.s32 3, %v138
    %v140 = vrot.slane %v123, %v139
    %vm145 = vcmask 130048
    %v147 = vsel %vm145, %v99, 0
    %v150 = vsel %vm145, %v100, 0
    %v153 = vsel %vm145, %v101, 0
    %v156 = vsel %vm145, %v102, 0
    %v159 = vsel %vm145, %v103, 0
    %v162 = vsel %vm145, %v104, 0
    %v165 = vsel %vm145, %v105, 0
    %v168 = vsel %vm145, %v106, 0
    %v171 = vsel %vm145, %v107, 0
    %v174 = vsel %vm145, %v108, 0
    %v177 = vsel %vm145, %v109, 0
    %v180 = vsel %vm145, %v110, 0
    %v183 = vsel %vm145, %v111, 0
    %v186 = vsel %vm145, %v112, 0
    %v189 = vsel %vm145, %v113, 0
    %v192 = vsel %vm145, %v114, 0
    %194 = vmatprep.subr.mxu0 0.0
    %195 = vmatpush1.msra.mxu0 0.0
    %196 = vmatprep.subr.mxu0 0.0
    %197 = vmatpush1.msra.mxu0 0.0
    %198 = vmatprep.subr.mxu0 0.0
    %199 = vmatpush1.msra.mxu0 0.0
    %200 = vmatprep.subr.mxu0 0.0
    %201 = vmatpush1.msra.mxu0 0.0
    %202 = vmatprep.subr.mxu0 0.0
    %203 = vmatpush1.msra.mxu0 0.0
    %204 = vmatprep.subr.mxu0 0.0
    %205 = vmatpush1.msra.mxu0 0.0
    %206 = vmatprep.subr.mxu0 0.0
    %207 = vmatpush1.msra.mxu0 0.0
    %208 = vmatprep.subr.mxu0 0.0
    %209 = vmatpush1.msra.mxu0 0.0
    %210 = vmatprep.subr.mxu0 0.0
    %211 = vmatpush1.msra.mxu0 0.0
    %212 = vmatprep.subr.mxu0 0.0
    %213 = vmatpush1.msra.mxu0 0.0
    %214 = vmatprep.subr.mxu0 0.0
    %215 = vmatpush1.msra.mxu0 0.0
    %216 = vmatprep.subr.mxu0 0.0
    %217 = vmatpush1.msra.mxu0 0.0
    %218 = vmatprep.subr.mxu0 0.0
    %219 = vmatpush1.msra.mxu0 0.0
    %220 = vmatprep.subr.mxu0 0.0
    %221 = vmatpush1.msra.mxu0 0.0
    %222 = vmatprep.subr.mxu0 %v120
    %223 = vmatpush1.msra.mxu0 %v119
    %224 = vmatprep.subr.mxu0 %v116
    %225 = vmatpush1.msra.mxu0 %v115
    %226 = vmatprep.subr.mxu0 0.0
    %227 = vmatpush2.msra.mxu0 0.0
    %228 = vmatprep.subr.mxu0 0.0
    %229 = vmatpush2.msra.mxu0 0.0
    %230 = vmatprep.subr.mxu0 0.0
    %231 = vmatpush2.msra.mxu0 0.0
    %232 = vmatprep.subr.mxu0 0.0
    %233 = vmatpush2.msra.mxu0 0.0
    %234 = vmatprep.subr.mxu0 0.0
    %235 = vmatpush2.msra.mxu0 0.0
    %236 = vmatprep.subr.mxu0 0.0
    %237 = vmatpush2.msra.mxu0 0.0
    %238 = vmatprep.subr.mxu0 0.0
    %239 = vmatpush2.msra.mxu0 0.0
    %240 = vmatprep.subr.mxu0 0.0
    %241 = vmatpush2.msra.mxu0 0.0
    %242 = vmatprep.subr.mxu0 0.0
    %243 = vmatpush2.msra.mxu0 0.0
    %244 = vmatprep.subr.mxu0 0.0
    %245 = vmatpush2.msra.mxu0 0.0
    %246 = vmatprep.subr.mxu0 0.0
    %247 = vmatpush2.msra.mxu0 0.0
    %248 = vmatprep.subr.mxu0 0.0
    %249 = vmatpush2.msra.mxu0 0.0
    %250 = vmatprep.subr.mxu0 0.0
    %251 = vmatpush2.msra.mxu0 0.0
    %252 = vmatprep.subr.mxu0 0.0
    %253 = vmatpush2.msra.mxu0 0.0
    %254 = vmatprep.subr.mxu0 0.0
    %255 = vmatpush2.msra.mxu0 0.0
    %256 = vmatprep.subr.mxu0 0.0
    %257 = vmatpush2.msra.mxu0 0.0
    %258 = vmatprep.mubr.f32.mxu0 0.0
    %259 = vmatmul.mubr.f32.gmra.mxu0 %v147
    %v260 = vpop.f32.mrf.mxu0
    %v261 = vadd.f32 %v128, %v260
    %v262 = vpop.f32.mrf.mxu0
    %v263 = vadd.f32 %v132, %v262
    %264 = vmatprep.mubr.f32.mxu0 0.0
    %265 = vmatmul.mubr.f32.gmra.mxu0 %v150
    %v266 = vpop.f32.mrf.mxu0
    %v267 = vadd.f32 %v128, %v266
    %v268 = vpop.f32.mrf.mxu0
    %v269 = vadd.f32 %v132, %v268
    %270 = vmatprep.mubr.f32.mxu0 0.0
    %271 = vmatmul.mubr.f32.gmra.mxu0 %v153
    %v272 = vpop.f32.mrf.mxu0
    %v273 = vadd.f32 %v128, %v272
    %v274 = vpop.f32.mrf.mxu0
    %v275 = vadd.f32 %v132, %v274
    %276 = vmatprep.mubr.f32.mxu0 0.0
    %277 = vmatmul.mubr.f32.gmra.mxu0 %v156
    %v278 = vpop.f32.mrf.mxu0
    %v279 = vadd.f32 %v128, %v278
    %v280 = vpop.f32.mrf.mxu0
    %v281 = vadd.f32 %v132, %v280
    %282 = vmatprep.mubr.f32.mxu0 0.0
    %283 = vmatmul.mubr.f32.gmra.mxu0 %v159
    %v284 = vpop.f32.mrf.mxu0
    %v285 = vadd.f32 %v128, %v284
    %v286 = vpop.f32.mrf.mxu0
    %v287 = vadd.f32 %v132, %v286
    %288 = vmatprep.mubr.f32.mxu0 0.0
    %289 = vmatmul.mubr.f32.gmra.mxu0 %v162
    %v290 = vpop.f32.mrf.mxu0
    %v291 = vadd.f32 %v128, %v290
    %v292 = vpop.f32.mrf.mxu0
    %v293 = vadd.f32 %v132, %v292
    %294 = vmatprep.mubr.f32.mxu0 0.0
    %295 = vmatmul.mubr.f32.gmra.mxu0 %v165
    %v296 = vpop.f32.mrf.mxu0
    %v297 = vadd.f32 %v128, %v296
    %v298 = vpop.f32.mrf.mxu0
    %v299 = vadd.f32 %v132, %v298
    %300 = vmatprep.mubr.f32.mxu0 0.0
    %301 = vmatmul.mubr.f32.gmra.mxu0 %v168
    %v302 = vpop.f32.mrf.mxu0
    %v303 = vadd.f32 %v128, %v302
    %v304 = vpop.f32.mrf.mxu0
    %v305 = vadd.f32 %v132, %v304
    %306 = vmatprep.mubr.f32.mxu0 0.0
    %307 = vmatmul.mubr.f32.gmra.mxu0 %v171
    %v308 = vpop.f32.mrf.mxu0
    %v309 = vadd.f32 %v128, %v308
    %v310 = vpop.f32.mrf.mxu0
    %v311 = vadd.f32 %v132, %v310
    %312 = vmatprep.mubr.f32.mxu0 0.0
    %313 = vmatmul.mubr.f32.gmra.mxu0 %v174
    %v314 = vpop.f32.mrf.mxu0
    %v315 = vadd.f32 %v128, %v314
    %v316 = vpop.f32.mrf.mxu0
    %v317 = vadd.f32 %v132, %v316
    %318 = vmatprep.mubr.f32.mxu0 0.0
    %319 = vmatmul.mubr.f32.gmra.mxu0 %v177
    %v320 = vpop.f32.mrf.mxu0
    %v321 = vadd.f32 %v128, %v320
    %v322 = vpop.f32.mrf.mxu0
    %v323 = vadd.f32 %v132, %v322
    %324 = vmatprep.mubr.f32.mxu0 0.0
    %325 = vmatmul.mubr.f32.gmra.mxu0 %v180
    %v326 = vpop.f32.mrf.mxu0
    %v327 = vadd.f32 %v128, %v326
    %v328 = vpop.f32.mrf.mxu0
    %v329 = vadd.f32 %v132, %v328
    %330 = vmatprep.mubr.f32.mxu0 0.0
    %331 = vmatmul.mubr.f32.gmra.mxu0 %v183
    %v332 = vpop.f32.mrf.mxu0
    %v333 = vadd.f32 %v128, %v332
    %v334 = vpop.f32.mrf.mxu0
    %v335 = vadd.f32 %v132, %v334
    %336 = vmatprep.mubr.f32.mxu0 0.0
    %337 = vmatmul.mubr.f32.gmra.mxu0 %v186
    %v338 = vpop.f32.mrf.mxu0
    %v339 = vadd.f32 %v128, %v338
    %v340 = vpop.f32.mrf.mxu0
    %v341 = vadd.f32 %v132, %v340
    %342 = vmatprep.mubr.f32.mxu0 0.0
    %343 = vmatmul.mubr.f32.gmra.mxu0 %v189
    %v344 = vpop.f32.mrf.mxu0
    %v345 = vadd.f32 %v128, %v344
    %v346 = vpop.f32.mrf.mxu0
    %v347 = vadd.f32 %v132, %v346
    %348 = vmatprep.mubr.f32.mxu0 0.0
    %349 = vmatmul.mubr.f32.gmra.mxu0 %v192
    %v350 = vpop.f32.mrf.mxu0
    %v351 = vadd.f32 %v128, %v350
    %v352 = vpop.f32.mrf.mxu0
    %v353 = vadd.f32 %v132, %v352
    %354 = vdwg.mxu0
    %355 = vmatprep.subr.mxu0 0.0
    %356 = vmatpush1.msra.mxu0 0.0
    %357 = vmatprep.subr.mxu0 0.0
    %358 = vmatpush1.msra.mxu0 0.0
    %359 = vmatprep.subr.mxu0 0.0
    %360 = vmatpush1.msra.mxu0 0.0
    %361 = vmatprep.subr.mxu0 0.0
    %362 = vmatpush1.msra.mxu0 0.0
    %363 = vmatprep.subr.mxu0 0.0
    %364 = vmatpush1.msra.mxu0 0.0
    %365 = vmatprep.subr.mxu0 0.0
    %366 = vmatpush1.msra.mxu0 0.0
    %367 = vmatprep.subr.mxu0 0.0
    %368 = vmatpush1.msra.mxu0 0.0
    %369 = vmatprep.subr.mxu0 0.0
    %370 = vmatpush1.msra.mxu0 0.0
    %371 = vmatprep.subr.mxu0 0.0
    %372 = vmatpush1.msra.mxu0 0.0
    %373 = vmatprep.subr.mxu0 0.0
    %374 = vmatpush1.msra.mxu0 0.0
    %375 = vmatprep.subr.mxu0 0.0
    %376 = vmatpush1.msra.mxu0 0.0
    %377 = vmatprep.subr.mxu0 0.0
    %378 = vmatpush1.msra.mxu0 0.0
    %379 = vmatprep.subr.mxu0 0.0
    %380 = vmatpush1.msra.mxu0 0.0
    %381 = vmatprep.subr.mxu0 0.0
    %382 = vmatpush1.msra.mxu0 0.0
    %383 = vmatprep.subr.mxu0 %v122
    %384 = vmatpush1.msra.mxu0 %v121
    %385 = vmatprep.subr.mxu0 %v118
    %386 = vmatpush1.msra.mxu0 %v117
    %387 = vmatprep.subr.mxu0 0.0
    %388 = vmatpush2.msra.mxu0 0.0
    %389 = vmatprep.subr.mxu0 0.0
    %390 = vmatpush2.msra.mxu0 0.0
    %391 = vmatprep.subr.mxu0 0.0
    %392 = vmatpush2.msra.mxu0 0.0
    %393 = vmatprep.subr.mxu0 0.0
    %394 = vmatpush2.msra.mxu0 0.0
    %395 = vmatprep.subr.mxu0 0.0
    %396 = vmatpush2.msra.mxu0 0.0
    %397 = vmatprep.subr.mxu0 0.0
    %398 = vmatpush2.msra.mxu0 0.0
    %399 = vmatprep.subr.mxu0 0.0
    %400 = vmatpush2.msra.mxu0 0.0
    %401 = vmatprep.subr.mxu0 0.0
    %402 = vmatpush2.msra.mxu0 0.0
    %403 = vmatprep.subr.mxu0 0.0
    %404 = vmatpush2.msra.mxu0 0.0
    %405 = vmatprep.subr.mxu0 0.0
    %406 = vmatpush2.msra.mxu0 0.0
    %407 = vmatprep.subr.mxu0 0.0
    %408 = vmatpush2.msra.mxu0 0.0
    %409 = vmatprep.subr.mxu0 0.0
    %410 = vmatpush2.msra.mxu0 0.0
    %411 = vmatprep.subr.mxu0 0.0
    %412 = vmatpush2.msra.mxu0 0.0
    %413 = vmatprep.subr.mxu0 0.0
    %414 = vmatpush2.msra.mxu0 0.0
    %415 = vmatprep.subr.mxu0 0.0
    %416 = vmatpush2.msra.mxu0 0.0
    %417 = vmatprep.subr.mxu0 0.0
    %418 = vmatpush2.msra.mxu0 0.0
    %419 = vmatprep.mubr.f32.mxu0 0.0
    %420 = vmatmul.mubr.f32.gmra.mxu0 %v147
    %v421 = vpop.f32.mrf.mxu0
    %v422 = vadd.f32 %v136, %v421
    %v423 = vpop.f32.mrf.mxu0
    %v424 = vadd.f32 %v140, %v423
    %425 = vmatprep.mubr.f32.mxu0 0.0
    %426 = vmatmul.mubr.f32.gmra.mxu0 %v150
    %v427 = vpop.f32.mrf.mxu0
    %v428 = vadd.f32 %v136, %v427
    %v429 = vpop.f32.mrf.mxu0
    %v430 = vadd.f32 %v140, %v429
    %431 = vmatprep.mubr.f32.mxu0 0.0
    %432 = vmatmul.mubr.f32.gmra.mxu0 %v153
    %v433 = vpop.f32.mrf.mxu0
    %v434 = vadd.f32 %v136, %v433
    %v435 = vpop.f32.mrf.mxu0
    %v436 = vadd.f32 %v140, %v435
    %437 = vmatprep.mubr.f32.mxu0 0.0
    %438 = vmatmul.mubr.f32.gmra.mxu0 %v156
    %v439 = vpop.f32.mrf.mxu0
    %v440 = vadd.f32 %v136, %v439
    %v441 = vpop.f32.mrf.mxu0
    %v442 = vadd.f32 %v140, %v441
    %443 = vmatprep.mubr.f32.mxu0 0.0
    %444 = vmatmul.mubr.f32.gmra.mxu0 %v159
    %v445 = vpop.f32.mrf.mxu0
    %v446 = vadd.f32 %v136, %v445
    %v447 = vpop.f32.mrf.mxu0
    %v448 = vadd.f32 %v140, %v447
    %449 = vmatprep.mubr.f32.mxu0 0.0
    %450 = vmatmul.mubr.f32.gmra.mxu0 %v162
    %v451 = vpop.f32.mrf.mxu0
    %v452 = vadd.f32 %v136, %v451
    %v453 = vpop.f32.mrf.mxu0
    %v454 = vadd.f32 %v140, %v453
    %455 = vmatprep.mubr.f32.mxu0 0.0
    %456 = vmatmul.mubr.f32.gmra.mxu0 %v165
    %v457 = vpop.f32.mrf.mxu0
    %v458 = vadd.f32 %v136, %v457
    %v459 = vpop.f32.mrf.mxu0
    %v460 = vadd.f32 %v140, %v459
    %461 = vmatprep.mubr.f32.mxu0 0.0
    %462 = vmatmul.mubr.f32.gmra.mxu0 %v168
    %v463 = vpop.f32.mrf.mxu0
    %v464 = vadd.f32 %v136, %v463
    %v465 = vpop.f32.mrf.mxu0
    %v466 = vadd.f32 %v140, %v465
    %467 = vmatprep.mubr.f32.mxu0 0.0
    %468 = vmatmul.mubr.f32.gmra.mxu0 %v171
    %v469 = vpop.f32.mrf.mxu0
    %v470 = vadd.f32 %v136, %v469
    %v471 = vpop.f32.mrf.mxu0
    %v472 = vadd.f32 %v140, %v471
    %473 = vmatprep.mubr.f32.mxu0 0.0
    %474 = vmatmul.mubr.f32.gmra.mxu0 %v174
    %v475 = vpop.f32.mrf.mxu0
    %v476 = vadd.f32 %v136, %v475
    %v477 = vpop.f32.mrf.mxu0
    %v478 = vadd.f32 %v140, %v477
    %479 = vmatprep.mubr.f32.mxu0 0.0
    %480 = vmatmul.mubr.f32.gmra.mxu0 %v177
    %v481 = vpop.f32.mrf.mxu0
    %v482 = vadd.f32 %v136, %v481
    %v483 = vpop.f32.mrf.mxu0
    %v484 = vadd.f32 %v140, %v483
    %485 = vmatprep.mubr.f32.mxu0 0.0
    %486 = vmatmul.mubr.f32.gmra.mxu0 %v180
    %v487 = vpop.f32.mrf.mxu0
    %v488 = vadd.f32 %v136, %v487
    %v489 = vpop.f32.mrf.mxu0
    %v490 = vadd.f32 %v140, %v489
    %491 = vmatprep.mubr.f32.mxu0 0.0
    %492 = vmatmul.mubr.f32.gmra.mxu0 %v183
    %v493 = vpop.f32.mrf.mxu0
    %v494 = vadd.f32 %v136, %v493
    %v495 = vpop.f32.mrf.mxu0
    %v496 = vadd.f32 %v140, %v495
    %497 = vmatprep.mubr.f32.mxu0 0.0
    %498 = vmatmul.mubr.f32.gmra.mxu0 %v186
    %v499 = vpop.f32.mrf.mxu0
    %v500 = vadd.f32 %v136, %v499
    %v501 = vpop.f32.mrf.mxu0
    %v502 = vadd.f32 %v140, %v501
    %503 = vmatprep.mubr.f32.mxu0 0.0
    %504 = vmatmul.mubr.f32.gmra.mxu0 %v189
    %v505 = vpop.f32.mrf.mxu0
    %v506 = vadd.f32 %v136, %v505
    %v507 = vpop.f32.mrf.mxu0
    %v508 = vadd.f32 %v140, %v507
    %509 = vmatprep.mubr.f32.mxu0 0.0
    %510 = vmatmul.mubr.f32.gmra.mxu0 %v192
    %v511 = vpop.f32.mrf.mxu0
    %v512 = vadd.f32 %v136, %v511
    %v513 = vpop.f32.mrf.mxu0
    %v514 = vadd.f32 %v140, %v513
    %515 = vdwg.mxu0
    %516 = vst [vmem:[#allocation2] sm:$0xff] %v261
    %517 = vst [vmem:[#allocation2 + $0x8] sm:$0xff] %v263
    %518 = vst [vmem:[#allocation2 + $0x10] sm:$0xff] %v422
    %519 = vst [vmem:[#allocation2 + $0x18] sm:$0xff] %v424
    %520 = vst [vmem:[#allocation2 + $0x20] sm:$0xff] %v267
    %521 = vst [vmem:[#allocation2 + $0x28] sm:$0xff] %v269
    %522 = vst [vmem:[#allocation2 + $0x30] sm:$0xff] %v428
    %523 = vst [vmem:[#allocation2 + $0x38] sm:$0xff] %v430
    %524 = vst [vmem:[#allocation2 + $0x40] sm:$0xff] %v273
    %525 = vst [vmem:[#allocation2 + $0x48] sm:$0xff] %v275
    %526 = vst [vmem:[#allocation2 + $0x50] sm:$0xff] %v434
    %527 = vst [vmem:[#allocation2 + $0x58] sm:$0xff] %v436
    %528 = vst [vmem:[#allocation2 + $0x60] sm:$0xff] %v279
    %529 = vst [vmem:[#allocation2 + $0x68] sm:$0xff] %v281
    %530 = vst [vmem:[#allocation2 + $0x70] sm:$0xff] %v440
    %531 = vst [vmem:[#allocation2 + $0x78] sm:$0xff] %v442
    %532 = vst [vmem:[#allocation2 + $0x80] sm:$0xff] %v285
    %533 = vst [vmem:[#allocation2 + $0x88] sm:$0xff] %v287
    %534 = vst [vmem:[#allocation2 + $0x90] sm:$0xff] %v446
    %535 = vst [vmem:[#allocation2 + $0x98] sm:$0xff] %v448
    %536 = vst [vmem:[#allocation2 + $0xa0] sm:$0xff] %v291
    %537 = vst [vmem:[#allocation2 + $0xa8] sm:$0xff] %v293
    %538 = vst [vmem:[#allocation2 + $0xb0] sm:$0xff] %v452
    %539 = vst [vmem:[#allocation2 + $0xb8] sm:$0xff] %v454
    %540 = vst [vmem:[#allocation2 + $0xc0] sm:$0xff] %v297
    %541 = vst [vmem:[#allocation2 + $0xc8] sm:$0xff] %v299
    %542 = vst [vmem:[#allocation2 + $0xd0] sm:$0xff] %v458
    %543 = vst [vmem:[#allocation2 + $0xd8] sm:$0xff] %v460
    %544 = vst [vmem:[#allocation2 + $0xe0] sm:$0xff] %v303
    %545 = vst [vmem:[#allocation2 + $0xe8] sm:$0xff] %v305
    %546 = vst [vmem:[#allocation2 + $0xf0] sm:$0xff] %v464
    %547 = vst [vmem:[#allocation2 + $0xf8] sm:$0xff] %v466
    %548 = vst [vmem:[#allocation2 + $0x100] sm:$0xff] %v309
    %549 = vst [vmem:[#allocation2 + $0x108] sm:$0xff] %v311
    %550 = vst [vmem:[#allocation2 + $0x110] sm:$0xff] %v470
    %551 = vst [vmem:[#allocation2 + $0x118] sm:$0xff] %v472
    %552 = vst [vmem:[#allocation2 + $0x120] sm:$0xff] %v315
    %553 = vst [vmem:[#allocation2 + $0x128] sm:$0xff] %v317
    %554 = vst [vmem:[#allocation2 + $0x130] sm:$0xff] %v476
    %555 = vst [vmem:[#allocation2 + $0x138] sm:$0xff] %v478
    %556 = vst [vmem:[#allocation2 + $0x140] sm:$0xff] %v321
    %557 = vst [vmem:[#allocation2 + $0x148] sm:$0xff] %v323
    %558 = vst [vmem:[#allocation2 + $0x150] sm:$0xff] %v482
    %559 = vst [vmem:[#allocation2 + $0x158] sm:$0xff] %v484
    %560 = vst [vmem:[#allocation2 + $0x160] sm:$0xff] %v327
    %561 = vst [vmem:[#allocation2 + $0x168] sm:$0xff] %v329
    %562 = vst [vmem:[#allocation2 + $0x170] sm:$0xff] %v488
    %563 = vst [vmem:[#allocation2 + $0x178] sm:$0xff] %v490
    %564 = vst [vmem:[#allocation2 + $0x180] sm:$0xff] %v333
    %565 = vst [vmem:[#allocation2 + $0x188] sm:$0xff] %v335
    %566 = vst [vmem:[#allocation2 + $0x190] sm:$0xff] %v494
    %567 = vst [vmem:[#allocation2 + $0x198] sm:$0xff] %v496
    %568 = vst [vmem:[#allocation2 + $0x1a0] sm:$0xff] %v339
    %569 = vst [vmem:[#allocation2 + $0x1a8] sm:$0xff] %v341
    %570 = vst [vmem:[#allocation2 + $0x1b0] sm:$0xff] %v500
    %571 = vst [vmem:[#allocation2 + $0x1b8] sm:$0xff] %v502
    %572 = vst [vmem:[#allocation2 + $0x1c0] sm:$0xff] %v345
    %573 = vst [vmem:[#allocation2 + $0x1c8] sm:$0xff] %v347
    %574 = vst [vmem:[#allocation2 + $0x1d0] sm:$0xff] %v506
    %575 = vst [vmem:[#allocation2 + $0x1d8] sm:$0xff] %v508
    %576 = vst [vmem:[#allocation2 + $0x1e0] sm:$0xff] %v351
    %577 = vst [vmem:[#allocation2 + $0x1e8] sm:$0xff] %v353
    %578 = vst [vmem:[#allocation2 + $0x1f0] sm:$0xff] %v512
    %579 = vst [vmem:[#allocation2 + $0x1f8] sm:$0xff] %v514
    %v580 = vld [vmem:[%s1] sm:$0xff]
    %v581 = vld [vmem:[%s1 + $0x8] sm:$0xff]
    %v582 = vld [vmem:[#allocation4] sm:$0xff]
    %v583 = vld [vmem:[#allocation4 + $0x8] sm:$0xff]
    %v584 = vld [vmem:[#allocation6] sm:$0xff]
    %v585 = vld [vmem:[#allocation6 + $0x8] sm:$0xff]
    %v586 = vld [vmem:[#allocation2] sm:$0xff]
    %v587 = vld [vmem:[#allocation2 + $0x8] sm:$0xff]
    %v588 = vld [vmem:[#allocation2 + $0x10] sm:$0xff]
    %v589 = vld [vmem:[#allocation2 + $0x18] sm:$0xff]
    %v590 = vld [vmem:[#allocation2 + $0x20] sm:$0xff]
    %v591 = vld [vmem:[#allocation2 + $0x28] sm:$0xff]
    %v592 = vld [vmem:[#allocation2 + $0x30] sm:$0xff]
    %v593 = vld [vmem:[#allocation2 + $0x38] sm:$0xff]
    %v594 = vld [vmem:[#allocation8] sm:$0xff]
    %v595 = vld [vmem:[#allocation8 + $0x8] sm:$0xff]
    %v596 = vld [vmem:[#allocation8 + $0x10] sm:$0xff]
    %v597 = vld [vmem:[#allocation8 + $0x18] sm:$0xff]
    %v598 = vld [vmem:[#allocation8 + $0x20] sm:$0xff]
    %v599 = vld [vmem:[#allocation8 + $0x28] sm:$0xff]
    %v600 = vld [vmem:[#allocation8 + $0x30] sm:$0xff]
    %v601 = vld [vmem:[#allocation8 + $0x38] sm:$0xff]
    %v602 = vld [vmem:[#allocation8 + $0x40] sm:$0xff]
    %v603 = vld [vmem:[#allocation8 + $0x48] sm:$0xff]
    %v604 = vld [vmem:[#allocation8 + $0x50] sm:$0xff]
    %v605 = vld [vmem:[#allocation8 + $0x58] sm:$0xff]
    %v606 = vld [vmem:[#allocation8 + $0x60] sm:$0xff]
    %v607 = vld [vmem:[#allocation8 + $0x68] sm:$0xff]
    %v608 = vld [vmem:[#allocation8 + $0x70] sm:$0xff]
    %v609 = vld [vmem:[#allocation8 + $0x78] sm:$0xff]
    %v610 = vld [vmem:[#allocation8 + $0x80] sm:$0xff]
    %v611 = vld [vmem:[#allocation8 + $0x88] sm:$0xff]
    %v612 = vld [vmem:[#allocation8 + $0x90] sm:$0xff]
    %v613 = vld [vmem:[#allocation8 + $0x98] sm:$0xff]
    %v614 = vld [vmem:[#allocation8 + $0xa0] sm:$0xff]
    %v615 = vld [vmem:[#allocation8 + $0xa8] sm:$0xff]
    %v616 = vld [vmem:[#allocation8 + $0xb0] sm:$0xff]
    %v617 = vld [vmem:[#allocation8 + $0xb8] sm:$0xff]
    %v618 = vld [vmem:[#allocation8 + $0xc0] sm:$0xff]
    %v619 = vld [vmem:[#allocation8 + $0xc8] sm:$0xff]
    %v620 = vld [vmem:[#allocation8 + $0xd0] sm:$0xff]
    %v621 = vld [vmem:[#allocation8 + $0xd8] sm:$0xff]
    %v622 = vld [vmem:[#allocation8 + $0xe0] sm:$0xff]
    %v623 = vld [vmem:[#allocation8 + $0xe8] sm:$0xff]
    %v624 = vld [vmem:[#allocation8 + $0xf0] sm:$0xff]
    %v625 = vld [vmem:[#allocation8 + $0xf8] sm:$0xff]
    %v626 = vld [vmem:[#allocation8 + $0x100] sm:$0xff]
    %v627 = vld [vmem:[#allocation8 + $0x108] sm:$0xff]
    %v628 = vld [vmem:[#allocation8 + $0x110] sm:$0xff]
    %v629 = vld [vmem:[#allocation8 + $0x118] sm:$0xff]
    %v630 = vld [vmem:[#allocation8 + $0x120] sm:$0xff]
    %v631 = vld [vmem:[#allocation8 + $0x128] sm:$0xff]
    %v632 = vld [vmem:[#allocation8 + $0x130] sm:$0xff]
    %v633 = vld [vmem:[#allocation8 + $0x138] sm:$0xff]
    %v634 = vld [vmem:[#allocation8 + $0x140] sm:$0xff]
    %v635 = vld [vmem:[#allocation8 + $0x148] sm:$0xff]
    %v636 = vld [vmem:[#allocation8 + $0x150] sm:$0xff]
    %v637 = vld [vmem:[#allocation8 + $0x158] sm:$0xff]
    %v638 = vld [vmem:[#allocation8 + $0x160] sm:$0xff]
    %v639 = vld [vmem:[#allocation8 + $0x168] sm:$0xff]
    %v640 = vld [vmem:[#allocation8 + $0x170] sm:$0xff]
    %v641 = vld [vmem:[#allocation8 + $0x178] sm:$0xff]
    %v642 = vld [vmem:[#allocation8 + $0x180] sm:$0xff]
    %v643 = vld [vmem:[#allocation8 + $0x188] sm:$0xff]
    %v644 = vld [vmem:[#allocation8 + $0x190] sm:$0xff]
    %v645 = vld [vmem:[#allocation8 + $0x198] sm:$0xff]
    %v646 = vld [vmem:[#allocation8 + $0x1a0] sm:$0xff]
    %v647 = vld [vmem:[#allocation8 + $0x1a8] sm:$0xff]
    %v648 = vld [vmem:[#allocation8 + $0x1b0] sm:$0xff]
    %v649 = vld [vmem:[#allocation8 + $0x1b8] sm:$0xff]
    %v650 = vld [vmem:[#allocation8 + $0x1c0] sm:$0xff]
    %v651 = vld [vmem:[#allocation8 + $0x1c8] sm:$0xff]
    %v652 = vld [vmem:[#allocation8 + $0x1d0] sm:$0xff]
    %v653 = vld [vmem:[#allocation8 + $0x1d8] sm:$0xff]
    %v654 = vld [vmem:[#allocation8 + $0x1e0] sm:$0xff]
    %v655 = vld [vmem:[#allocation8 + $0x1e8] sm:$0xff]
    %v656 = vld [vmem:[#allocation8 + $0x1f0] sm:$0xff]
    %v657 = vld [vmem:[#allocation8 + $0x1f8] sm:$0xff]
    %658 = vmatprep.subr.mxu0 %v655
    %659 = vmatpush1.msra.mxu0 %v654
    %660 = vmatprep.subr.mxu0 %v651
    %661 = vmatpush1.msra.mxu0 %v650
    %662 = vmatprep.subr.mxu0 %v647
    %663 = vmatpush1.msra.mxu0 %v646
    %664 = vmatprep.subr.mxu0 %v643
    %665 = vmatpush1.msra.mxu0 %v642
    %666 = vmatprep.subr.mxu0 %v639
    %667 = vmatpush1.msra.mxu0 %v638
    %668 = vmatprep.subr.mxu0 %v635
    %669 = vmatpush1.msra.mxu0 %v634
    %670 = vmatprep.subr.mxu0 %v631
    %671 = vmatpush1.msra.mxu0 %v630
    %672 = vmatprep.subr.mxu0 %v627
    %673 = vmatpush1.msra.mxu0 %v626
    %674 = vmatprep.subr.mxu0 %v623
    %675 = vmatpush1.msra.mxu0 %v622
    %676 = vmatprep.subr.mxu0 %v619
    %677 = vmatpush1.msra.mxu0 %v618
    %678 = vmatprep.subr.mxu0 %v615
    %679 = vmatpush1.msra.mxu0 %v614
    %680 = vmatprep.subr.mxu0 %v611
    %681 = vmatpush1.msra.mxu0 %v610
    %682 = vmatprep.subr.mxu0 %v607
    %683 = vmatpush1.msra.mxu0 %v606
    %684 = vmatprep.subr.mxu0 %v603
    %685 = vmatpush1.msra.mxu0 %v602
    %686 = vmatprep.subr.mxu0 %v599
    %687 = vmatpush1.msra.mxu0 %v598
    %688 = vmatprep.subr.mxu0 %v595
    %689 = vmatpush1.msra.mxu0 %v594
    %690 = vmatprep.subr.mxu0 0.0
    %691 = vmatpush2.msra.mxu0 0.0
    %692 = vmatprep.subr.mxu0 0.0
    %693 = vmatpush2.msra.mxu0 0.0
    %694 = vmatprep.subr.mxu0 0.0
    %695 = vmatpush2.msra.mxu0 0.0
    %696 = vmatprep.subr.mxu0 0.0
    %697 = vmatpush2.msra.mxu0 0.0
    %698 = vmatprep.subr.mxu0 0.0
    %699 = vmatpush2.msra.mxu0 0.0
    %700 = vmatprep.subr.mxu0 0.0
    %701 = vmatpush2.msra.mxu0 0.0
    %702 = vmatprep.subr.mxu0 0.0
    %703 = vmatpush2.msra.mxu0 0.0
    %704 = vmatprep.subr.mxu0 0.0
    %705 = vmatpush2.msra.mxu0 0.0
    %706 = vmatprep.subr.mxu0 0.0
    %707 = vmatpush2.msra.mxu0 0.0
    %708 = vmatprep.subr.mxu0 0.0
    %709 = vmatpush2.msra.mxu0 0.0
    %710 = vmatprep.subr.mxu0 0.0
    %711 = vmatpush2.msra.mxu0 0.0
    %712 = vmatprep.subr.mxu0 0.0
    %713 = vmatpush2.msra.mxu0 0.0
    %714 = vmatprep.subr.mxu0 0.0
    %715 = vmatpush2.msra.mxu0 0.0
    %716 = vmatprep.subr.mxu0 0.0
    %717 = vmatpush2.msra.mxu0 0.0
    %718 = vmatprep.subr.mxu0 0.0
    %719 = vmatpush2.msra.mxu0 0.0
    %720 = vmatprep.subr.mxu0 0.0
    %721 = vmatpush2.msra.mxu0 0.0
    %722 = vmatprep.mubr.f32.mxu0 0.0
    %723 = vmatmul.mubr.f32.gmra.mxu0 %v582
    %v724 = vpop.f32.mrf.mxu0
    %v725 = vadd.f32 0.0, %v724
    %v726 = vpop.f32.mrf.mxu0
    %v727 = vadd.f32 0.0, %v726
    %728 = vmatprep.mubr.f32.mxu0 0.0
    %729 = vmatmul.mubr.f32.gmra.mxu0 %v583
    %v730 = vpop.f32.mrf.mxu0
    %v731 = vadd.f32 0.0, %v730
    %v732 = vpop.f32.mrf.mxu0
    %v733 = vadd.f32 0.0, %v732
    %734 = vdwg.mxu0
    %735 = vmatprep.subr.mxu0 %v657
    %736 = vmatpush1.msra.mxu0 %v656
    %737 = vmatprep.subr.mxu0 %v653
    %738 = vmatpush1.msra.mxu0 %v652
    %739 = vmatprep.subr.mxu0 %v649
    %740 = vmatpush1.msra.mxu0 %v648
    %741 = vmatprep.subr.mxu0 %v645
    %742 = vmatpush1.msra.mxu0 %v644
    %743 = vmatprep.subr.mxu0 %v641
    %744 = vmatpush1.msra.mxu0 %v640
    %745 = vmatprep.subr.mxu0 %v637
    %746 = vmatpush1.msra.mxu0 %v636
    %747 = vmatprep.subr.mxu0 %v633
    %748 = vmatpush1.msra.mxu0 %v632
    %749 = vmatprep.subr.mxu0 %v629
    %750 = vmatpush1.msra.mxu0 %v628
    %751 = vmatprep.subr.mxu0 %v625
    %752 = vmatpush1.msra.mxu0 %v624
    %753 = vmatprep.subr.mxu0 %v621
    %754 = vmatpush1.msra.mxu0 %v620
    %755 = vmatprep.subr.mxu0 %v617
    %756 = vmatpush1.msra.mxu0 %v616
    %757 = vmatprep.subr.mxu0 %v613
    %758 = vmatpush1.msra.mxu0 %v612
    %759 = vmatprep.subr.mxu0 %v609
    %760 = vmatpush1.msra.mxu0 %v608
    %761 = vmatprep.subr.mxu0 %v605
    %762 = vmatpush1.msra.mxu0 %v604
    %763 = vmatprep.subr.mxu0 %v601
    %764 = vmatpush1.msra.mxu0 %v600
    %765 = vmatprep.subr.mxu0 %v597
    %766 = vmatpush1.msra.mxu0 %v596
    %767 = vmatprep.subr.mxu0 0.0
    %768 = vmatpush2.msra.mxu0 0.0
    %769 = vmatprep.subr.mxu0 0.0
    %770 = vmatpush2.msra.mxu0 0.0
    %771 = vmatprep.subr.mxu0 0.0
    %772 = vmatpush2.msra.mxu0 0.0
    %773 = vmatprep.subr.mxu0 0.0
    %774 = vmatpush2.msra.mxu0 0.0
    %775 = vmatprep.subr.mxu0 0.0
    %776 = vmatpush2.msra.mxu0 0.0
    %777 = vmatprep.subr.mxu0 0.0
    %778 = vmatpush2.msra.mxu0 0.0
    %779 = vmatprep.subr.mxu0 0.0
    %780 = vmatpush2.msra.mxu0 0.0
    %781 = vmatprep.subr.mxu0 0.0
    %782 = vmatpush2.msra.mxu0 0.0
    %783 = vmatprep.subr.mxu0 0.0
    %784 = vmatpush2.msra.mxu0 0.0
    %785 = vmatprep.subr.mxu0 0.0
    %786 = vmatpush2.msra.mxu0 0.0
    %787 = vmatprep.subr.mxu0 0.0
    %788 = vmatpush2.msra.mxu0 0.0
    %789 = vmatprep.subr.mxu0 0.0
    %790 = vmatpush2.msra.mxu0 0.0
    %791 = vmatprep.subr.mxu0 0.0
    %792 = vmatpush2.msra.mxu0 0.0
    %793 = vmatprep.subr.mxu0 0.0
    %794 = vmatpush2.msra.mxu0 0.0
    %795 = vmatprep.subr.mxu0 0.0
    %796 = vmatpush2.msra.mxu0 0.0
    %797 = vmatprep.subr.mxu0 0.0
    %798 = vmatpush2.msra.mxu0 0.0
    %799 = vmatprep.mubr.f32.mxu0 0.0
    %800 = vmatmul.mubr.f32.gmra.mxu0 %v582
    %v801 = vpop.f32.mrf.mxu0
    %v802 = vadd.f32 0.0, %v801
    %v803 = vpop.f32.mrf.mxu0
    %v804 = vadd.f32 0.0, %v803
    %805 = vmatprep.mubr.f32.mxu0 0.0
    %806 = vmatmul.mubr.f32.gmra.mxu0 %v583
    %v807 = vpop.f32.mrf.mxu0
    %v808 = vadd.f32 0.0, %v807
    %v809 = vpop.f32.mrf.mxu0
    %v810 = vadd.f32 0.0, %v809
    %811 = vdwg.mxu0
    %v812 = vadd.f32 %v586, %v725
    %v813 = vadd.f32 %v587, %v727
    %v814 = vadd.f32 %v588, %v802
    %v815 = vadd.f32 %v589, %v804
    %v816 = vadd.f32 %v590, %v731
    %v817 = vadd.f32 %v591, %v733
    %v818 = vadd.f32 %v592, %v808
    %v819 = vadd.f32 %v593, %v810
    %v820 = vxor.u32 %v812, 2147483648
    %v821 = vxor.u32 %v816, 2147483648
    %v822 = vmul.f32 %v820, 1.442695
    %v823 = vpow.pop %v822
    %v824 = vmul.f32 %v821, 1.442695
    %v825 = vpow.pop %v824
    %v826 = vadd.f32 %v823, 1.0
    %v827 = vadd.f32 %v825, 1.0
    %v828 = vrcp.pop %v826
    %v829 = vmul.f32 1.0, %v828
    %v830 = vrcp.pop %v827
    %v831 = vmul.f32 1.0, %v830
    %v832 = vxor.u32 %v813, 2147483648
    %v833 = vxor.u32 %v817, 2147483648
    %v834 = vmul.f32 %v832, 1.442695
    %v835 = vpow.pop %v834
    %v836 = vmul.f32 %v833, 1.442695
    %v837 = vpow.pop %v836
    %v838 = vadd.f32 %v835, 1.0
    %v839 = vadd.f32 %v837, 1.0
    %v840 = vrcp.pop %v838
    %v841 = vmul.f32 1.0, %v840
    %v842 = vrcp.pop %v839
    %v843 = vmul.f32 1.0, %v842
    %v844 = vtanh.pop %v814
    %v845 = vtanh.pop %v818
    %v846 = vxor.u32 %v815, 2147483648
    %v847 = vxor.u32 %v819, 2147483648
    %v848 = vmul.f32 %v846, 1.442695
    %v849 = vpow.pop %v848
    %v850 = vmul.f32 %v847, 1.442695
    %v851 = vpow.pop %v850
    %v852 = vadd.f32 %v849, 1.0
    %v853 = vadd.f32 %v851, 1.0
    %v854 = vrcp.pop %v852
    %v855 = vmul.f32 1.0, %v854
    %v856 = vrcp.pop %v853
    %v857 = vmul.f32 1.0, %v856
    %v858 = vmul.f32 %v841, %v584
    %v859 = vmul.f32 %v843, %v585
    %v860 = vmul.f32 %v829, %v844
    %v861 = vmul.f32 %v831, %v845
    %v862 = vadd.f32 %v858, %v860
    %v863 = vadd.f32 %v859, %v861
    %v864 = vtanh.pop %v862
    %v865 = vtanh.pop %v863
    %v866 = vmul.f32 %v855, %v864
    %v867 = vmul.f32 %v857, %v865
    %vm868 = vcmp.gt.s32.totalorder %v580, 0
    %vm869 = vcmp.gt.s32.totalorder %v581, 0
    %v870 = vsel %vm868, 1, 0
    %v871 = vsel %vm869, 1, 0
    %872 = vset.pattern.permute.xlu0 0
    %873 = vperm.xlu0 %872, %v870
    %v874 = vpop.permute.xlu0 %873
    %875 = vset.pattern.permute.xlu0 0
    %876 = vperm.xlu0 %875, %v871
    %v877 = vpop.permute.xlu0 %876
    %vm878 = vcmp.eq.s32.totalorder %v874, 1
    %vm879 = vcmp.eq.s32.totalorder %v877, 1
    %v880 = vsel %vm878, %v866, %v582
    %v881 = vsel %vm879, %v867, %v583
    %v882 = vsel %vm878, %v862, %v584
    %v883 = vsel %vm879, %v863, %v585
    %v884 = vld [vmem:[#allocation2 + $0x40] sm:$0xff]
    %v885 = vld [vmem:[#allocation2 + $0x48] sm:$0xff]
    %v886 = vld [vmem:[#allocation2 + $0x50] sm:$0xff]
    %v887 = vld [vmem:[#allocation2 + $0x58] sm:$0xff]
    %v888 = vld [vmem:[#allocation2 + $0x60] sm:$0xff]
    %v889 = vld [vmem:[#allocation2 + $0x68] sm:$0xff]
    %v890 = vld [vmem:[#allocation2 + $0x70] sm:$0xff]
    %v891 = vld [vmem:[#allocation2 + $0x78] sm:$0xff]
    %892 = vmatprep.subr.mxu0 %v655
    %893 = vmatpush1.msra.mxu0 %v654
    %894 = vmatprep.subr.mxu0 %v651
    %895 = vmatpush1.msra.mxu0 %v650
    %896 = vmatprep.subr.mxu0 %v647
    %897 = vmatpush1.msra.mxu0 %v646
    %898 = vmatprep.subr.mxu0 %v643
    %899 = vmatpush1.msra.mxu0 %v642
    %900 = vmatprep.subr.mxu0 %v639
    %901 = vmatpush1.msra.mxu0 %v638
    %902 = vmatprep.subr.mxu0 %v635
    %903 = vmatpush1.msra.mxu0 %v634
    %904 = vmatprep.subr.mxu0 %v631
    %905 = vmatpush1.msra.mxu0 %v630
    %906 = vmatprep.subr.mxu0 %v627
    %907 = vmatpush1.msra.mxu0 %v626
    %908 = vmatprep.subr.mxu0 %v623
    %909 = vmatpush1.msra.mxu0 %v622
    %910 = vmatprep.subr.mxu0 %v619
    %911 = vmatpush1.msra.mxu0 %v618
    %912 = vmatprep.subr.mxu0 %v615
    %913 = vmatpush1.msra.mxu0 %v614
    %914 = vmatprep.subr.mxu0 %v611
    %915 = vmatpush1.msra.mxu0 %v610
    %916 = vmatprep.subr.mxu0 %v607
    %917 = vmatpush1.msra.mxu0 %v606
    %918 = vmatprep.subr.mxu0 %v603
    %919 = vmatpush1.msra.mxu0 %v602
    %920 = vmatprep.subr.mxu0 %v599
    %921 = vmatpush1.msra.mxu0 %v598
    %922 = vmatprep.subr.mxu0 %v595
    %923 = vmatpush1.msra.mxu0 %v594
    %924 = vmatprep.subr.mxu0 0.0
    %925 = vmatpush2.msra.mxu0 0.0
    %926 = vmatprep.subr.mxu0 0.0
    %927 = vmatpush2.msra.mxu0 0.0
    %928 = vmatprep.subr.mxu0 0.0
    %929 = vmatpush2.msra.mxu0 0.0
    %930 = vmatprep.subr.mxu0 0.0
    %931 = vmatpush2.msra.mxu0 0.0
    %932 = vmatprep.subr.mxu0 0.0
    %933 = vmatpush2.msra.mxu0 0.0
    %934 = vmatprep.subr.mxu0 0.0
    %935 = vmatpush2.msra.mxu0 0.0
    %936 = vmatprep.subr.mxu0 0.0
    %937 = vmatpush2.msra.mxu0 0.0
    %938 = vmatprep.subr.mxu0 0.0
    %939 = vmatpush2.msra.mxu0 0.0
    %940 = vmatprep.subr.mxu0 0.0
    %941 = vmatpush2.msra.mxu0 0.0
    %942 = vmatprep.subr.mxu0 0.0
    %943 = vmatpush2.msra.mxu0 0.0
    %944 = vmatprep.subr.mxu0 0.0
    %945 = vmatpush2.msra.mxu0 0.0
    %946 = vmatprep.subr.mxu0 0.0
    %947 = vmatpush2.msra.mxu0 0.0
    %948 = vmatprep.subr.mxu0 0.0
    %949 = vmatpush2.msra.mxu0 0.0
    %950 = vmatprep.subr.mxu0 0.0
    %951 = vmatpush2.msra.mxu0 0.0
    %952 = vmatprep.subr.mxu0 0.0
    %953 = vmatpush2.msra.mxu0 0.0
    %954 = vmatprep.subr.mxu0 0.0
    %955 = vmatpush2.msra.mxu0 0.0
    %956 = vmatprep.mubr.f32.mxu0 0.0
    %957 = vmatmul.mubr.f32.gmra.mxu0 %v880
    %v958 = vpop.f32.mrf.mxu0
    %v959 = vadd.f32 0.0, %v958
    %v960 = vpop.f32.mrf.mxu0
    %v961 = vadd.f32 0.0, %v960
    %962 = vmatprep.mubr.f32.mxu0 0.0
    %963 = vmatmul.mubr.f32.gmra.mxu0 %v881
    %v964 = vpop.f32.mrf.mxu0
    %v965 = vadd.f32 0.0, %v964
    %v966 = vpop.f32.mrf.mxu0
    %v967 = vadd.f32 0.0, %v966
    %968 = vdwg.mxu0
    %969 = vmatprep.subr.mxu0 %v657
    %970 = vmatpush1.msra.mxu0 %v656
    %971 = vmatprep.subr.mxu0 %v653
    %972 = vmatpush1.msra.mxu0 %v652
    %973 = vmatprep.subr.mxu0 %v649
    %974 = vmatpush1.msra.mxu0 %v648
    %975 = vmatprep.subr.mxu0 %v645
    %976 = vmatpush1.msra.mxu0 %v644
    %977 = vmatprep.subr.mxu0 %v641
    %978 = vmatpush1.msra.mxu0 %v640
    %979 = vmatprep.subr.mxu0 %v637
    %980 = vmatpush1.msra.mxu0 %v636
    %981 = vmatprep.subr.mxu0 %v633
    %982 = vmatpush1.msra.mxu0 %v632
    %983 = vmatprep.subr.mxu0 %v629
    %984 = vmatpush1.msra.mxu0 %v628
    %985 = vmatprep.subr.mxu0 %v625
    %986 = vmatpush1.msra.mxu0 %v624
    %987 = vmatprep.subr.mxu0 %v621
    %988 = vmatpush1.msra.mxu0 %v620
    %989 = vmatprep.subr.mxu0 %v617
    %990 = vmatpush1.msra.mxu0 %v616
    %991 = vmatprep.subr.mxu0 %v613
    %992 = vmatpush1.msra.mxu0 %v612
    %993 = vmatprep.subr.mxu0 %v609
    %994 = vmatpush1.msra.mxu0 %v608
    %995 = vmatprep.subr.mxu0 %v605
    %996 = vmatpush1.msra.mxu0 %v604
    %997 = vmatprep.subr.mxu0 %v601
    %998 = vmatpush1.msra.mxu0 %v600
    %999 = vmatprep.subr.mxu0 %v597
    %1000 = vmatpush1.msra.mxu0 %v596
    %1001 = vmatprep.subr.mxu0 0.0
    %1002 = vmatpush2.msra.mxu0 0.0
    %1003 = vmatprep.subr.mxu0 0.0
    %1004 = vmatpush2.msra.mxu0 0.0
    %1005 = vmatprep.subr.mxu0 0.0
    %1006 = vmatpush2.msra.mxu0 0.0
    %1007 = vmatprep.subr.mxu0 0.0
    %1008 = vmatpush2.msra.mxu0 0.0
    %1009 = vmatprep.subr.mxu0 0.0
    %1010 = vmatpush2.msra.mxu0 0.0
    %1011 = vmatprep.subr.mxu0 0.0
    %1012 = vmatpush2.msra.mxu0 0.0
    %1013 = vmatprep.subr.mxu0 0.0
    %1014 = vmatpush2.msra.mxu0 0.0
    %1015 = vmatprep.subr.mxu0 0.0
    %1016 = vmatpush2.msra.mxu0 0.0
    %1017 = vmatprep.subr.mxu0 0.0
    %1018 = vmatpush2.msra.mxu0 0.0
    %1019 = vmatprep.subr.mxu0 0.0
    %1020 = vmatpush2.msra.mxu0 0.0
    %1021 = vmatprep.subr.mxu0 0.0
    %1022 = vmatpush2.msra.mxu0 0.0
    %1023 = vmatprep.subr.mxu0 0.0
    %1024 = vmatpush2.msra.mxu0 0.0
    %1025 = vmatprep.subr.mxu0 0.0
    %1026 = vmatpush2.msra.mxu0 0.0
    %1027 = vmatprep.subr.mxu0 0.0
    %1028 = vmatpush2.msra.mxu0 0.0
    %1029 = vmatprep.subr.mxu0 0.0
    %1030 = vmatpush2.msra.mxu0 0.0
    %1031 = vmatprep.subr.mxu0 0.0
    %1032 = vmatpush2.msra.mxu0 0.0
    %1033 = vmatprep.mubr.f32.mxu0 0.0
    %1034 = vmatmul.mubr.f32.gmra.mxu0 %v880
    %v1035 = vpop.f32.mrf.mxu0
    %v1036 = vadd.f32 0.0, %v1035
    %v1037 = vpop.f32.mrf.mxu0
    %v1038 = vadd.f32 0.0, %v1037
    %1039 = vmatprep.mubr.f32.mxu0 0.0
    %1040 = vmatmul.mubr.f32.gmra.mxu0 %v881
    %v1041 = vpop.f32.mrf.mxu0
    %v1042 = vadd.f32 0.0, %v1041
    %v1043 = vpop.f32.mrf.mxu0
    %v1044 = vadd.f32 0.0, %v1043
    %1045 = vdwg.mxu0
    %v1046 = vadd.f32 %v884, %v959
    %v1047 = vadd.f32 %v885, %v961
    %v1048 = vadd.f32 %v886, %v1036
    %v1049 = vadd.f32 %v887, %v1038
    %v1050 = vadd.f32 %v888, %v965
    %v1051 = vadd.f32 %v889, %v967
    %v1052 = vadd.f32 %v890, %v1042
    %v1053 = vadd.f32 %v891, %v1044
    %v1054 = vxor.u32 %v1046, 2147483648
    %v1055 = vxor.u32 %v1050, 2147483648
    %v1056 = vmul.f32 %v1054, 1.442695
    %v1057 = vpow.pop %v1056
    %v1058 = vmul.f32 %v1055, 1.442695
    %v1059 = vpow.pop %v1058
    %v1060 = vadd.f32 %v1057, 1.0
    %v1061 = vadd.f32 %v1059, 1.0
    %v1062 = vrcp.pop %v1060
    %v1063 = vmul.f32 1.0, %v1062
    %v1064 = vrcp.pop %v1061
    %v1065 = vmul.f32 1.0, %v1064
    %v1066 = vxor.u32 %v1047, 2147483648
    %v1067 = vxor.u32 %v1051, 2147483648
    %v1068 = vmul.f32 %v1066, 1.442695
    %v1069 = vpow.pop %v1068
    %v1070 = vmul.f32 %v1067, 1.442695
    %v1071 = vpow.pop %v1070
    %v1072 = vadd.f32 %v1069, 1.0
    %v1073 = vadd.f32 %v1071, 1.0
    %v1074 = vrcp.pop %v1072
    %v1075 = vmul.f32 1.0, %v1074
    %v1076 = vrcp.pop %v1073
    %v1077 = vmul.f32 1.0, %v1076
    %v1078 = vtanh.pop %v1048
    %v1079 = vtanh.pop %v1052
    %v1080 = vxor.u32 %v1049, 2147483648
    %v1081 = vxor.u32 %v1053, 2147483648
    %v1082 = vmul.f32 %v1080, 1.442695
    %v1083 = vpow.pop %v1082
    %v1084 = vmul.f32 %v1081, 1.442695
    %v1085 = vpow.pop %v1084
    %v1086 = vadd.f32 %v1083, 1.0
    %v1087 = vadd.f32 %v1085, 1.0
    %v1088 = vrcp.pop %v1086
    %v1089 = vmul.f32 1.0, %v1088
    %v1090 = vrcp.pop %v1087
    %v1091 = vmul.f32 1.0, %v1090
    %v1092 = vmul.f32 %v1075, %v882
    %v1093 = vmul.f32 %v1077, %v883
    %v1094 = vmul.f32 %v1063, %v1078
    %v1095 = vmul.f32 %v1065, %v1079
    %v1096 = vadd.f32 %v1092, %v1094
    %v1097 = vadd.f32 %v1093, %v1095
    %v1098 = vtanh.pop %v1096
    %v1099 = vtanh.pop %v1097
    %v1100 = vmul.f32 %v1089, %v1098
    %v1101 = vmul.f32 %v1091, %v1099
    %vm1102 = vcmp.gt.s32.totalorder %v580, 1
    %vm1103 = vcmp.gt.s32.totalorder %v581, 1
    %v1104 = vsel %vm1102, 1, 0
    %v1105 = vsel %vm1103, 1, 0
    %1106 = vset.pattern.permute.xlu0 0
    %1107 = vperm.xlu0 %1106, %v1104
    %v1108 = vpop.permute.xlu0 %1107
    %1109 = vset.pattern.permute.xlu0 0
    %1110 = vperm.xlu0 %1109, %v1105
    %v1111 = vpop.permute.xlu0 %1110
    %vm1112 = vcmp.eq.s32.totalorder %v1108, 1
    %vm1113 = vcmp.eq.s32.totalorder %v1111, 1
    %v1114 = vsel %vm1112, %v1100, %v880
    %v1115 = vsel %vm1113, %v1101, %v881
    %v1116 = vsel %vm1112, %v1096, %v882
    %v1117 = vsel %vm1113, %v1097, %v883
    %v1118 = vld [vmem:[#allocation2 + $0x80] sm:$0xff]
    %v1119 = vld [vmem:[#allocation2 + $0x88] sm:$0xff]
    %v1120 = vld [vmem:[#allocation2 + $0x90] sm:$0xff]
    %v1121 = vld [vmem:[#allocation2 + $0x98] sm:$0xff]
    %v1122 = vld [vmem:[#allocation2 + $0xa0] sm:$0xff]
    %v1123 = vld [vmem:[#allocation2 + $0xa8] sm:$0xff]
    %v1124 = vld [vmem:[#allocation2 + $0xb0] sm:$0xff]
    %v1125 = vld [vmem:[#allocation2 + $0xb8] sm:$0xff]
    %1126 = vmatprep.subr.mxu0 %v655
    %1127 = vmatpush1.msra.mxu0 %v654
    %1128 = vmatprep.subr.mxu0 %v651
    %1129 = vmatpush1.msra.mxu0 %v650
    %1130 = vmatprep.subr.mxu0 %v647
    %1131 = vmatpush1.msra.mxu0 %v646
    %1132 = vmatprep.subr.mxu0 %v643
    %1133 = vmatpush1.msra.mxu0 %v642
    %1134 = vmatprep.subr.mxu0 %v639
    %1135 = vmatpush1.msra.mxu0 %v638
    %1136 = vmatprep.subr.mxu0 %v635
    %1137 = vmatpush1.msra.mxu0 %v634
    %1138 = vmatprep.subr.mxu0 %v631
    %1139 = vmatpush1.msra.mxu0 %v630
    %1140 = vmatprep.subr.mxu0 %v627
    %1141 = vmatpush1.msra.mxu0 %v626
    %1142 = vmatprep.subr.mxu0 %v623
    %1143 = vmatpush1.msra.mxu0 %v622
    %1144 = vmatprep.subr.mxu0 %v619
    %1145 = vmatpush1.msra.mxu0 %v618
    %1146 = vmatprep.subr.mxu0 %v615
    %1147 = vmatpush1.msra.mxu0 %v614
    %1148 = vmatprep.subr.mxu0 %v611
    %1149 = vmatpush1.msra.mxu0 %v610
    %1150 = vmatprep.subr.mxu0 %v607
    %1151 = vmatpush1.msra.mxu0 %v606
    %1152 = vmatprep.subr.mxu0 %v603
    %1153 = vmatpush1.msra.mxu0 %v602
    %1154 = vmatprep.subr.mxu0 %v599
    %1155 = vmatpush1.msra.mxu0 %v598
    %1156 = vmatprep.subr.mxu0 %v595
    %1157 = vmatpush1.msra.mxu0 %v594
    %1158 = vmatprep.subr.mxu0 0.0
    %1159 = vmatpush2.msra.mxu0 0.0
    %1160 = vmatprep.subr.mxu0 0.0
    %1161 = vmatpush2.msra.mxu0 0.0
    %1162 = vmatprep.subr.mxu0 0.0
    %1163 = vmatpush2.msra.mxu0 0.0
    %1164 = vmatprep.subr.mxu0 0.0
    %1165 = vmatpush2.msra.mxu0 0.0
    %1166 = vmatprep.subr.mxu0 0.0
    %1167 = vmatpush2.msra.mxu0 0.0
    %1168 = vmatprep.subr.mxu0 0.0
    %1169 = vmatpush2.msra.mxu0 0.0
    %1170 = vmatprep.subr.mxu0 0.0
    %1171 = vmatpush2.msra.mxu0 0.0
    %1172 = vmatprep.subr.mxu0 0.0
    %1173 = vmatpush2.msra.mxu0 0.0
    %1174 = vmatprep.subr.mxu0 0.0
    %1175 = vmatpush2.msra.mxu0 0.0
    %1176 = vmatprep.subr.mxu0 0.0
    %1177 = vmatpush2.msra.mxu0 0.0
    %1178 = vmatprep.subr.mxu0 0.0
    %1179 = vmatpush2.msra.mxu0 0.0
    %1180 = vmatprep.subr.mxu0 0.0
    %1181 = vmatpush2.msra.mxu0 0.0
    %1182 = vmatprep.subr.mxu0 0.0
    %1183 = vmatpush2.msra.mxu0 0.0
    %1184 = vmatprep.subr.mxu0 0.0
    %1185 = vmatpush2.msra.mxu0 0.0
    %1186 = vmatprep.subr.mxu0 0.0
    %1187 = vmatpush2.msra.mxu0 0.0
    %1188 = vmatprep.subr.mxu0 0.0
    %1189 = vmatpush2.msra.mxu0 0.0
    %1190 = vmatprep.mubr.f32.mxu0 0.0
    %1191 = vmatmul.mubr.f32.gmra.mxu0 %v1114
    %v1192 = vpop.f32.mrf.mxu0
    %v1193 = vadd.f32 0.0, %v1192
    %v1194 = vpop.f32.mrf.mxu0
    %v1195 = vadd.f32 0.0, %v1194
    %1196 = vmatprep.mubr.f32.mxu0 0.0
    %1197 = vmatmul.mubr.f32.gmra.mxu0 %v1115
    %v1198 = vpop.f32.mrf.mxu0
    %v1199 = vadd.f32 0.0, %v1198
    %v1200 = vpop.f32.mrf.mxu0
    %v1201 = vadd.f32 0.0, %v1200
    %1202 = vdwg.mxu0
    %1203 = vmatprep.subr.mxu0 %v657
    %1204 = vmatpush1.msra.mxu0 %v656
    %1205 = vmatprep.subr.mxu0 %v653
    %1206 = vmatpush1.msra.mxu0 %v652
    %1207 = vmatprep.subr.mxu0 %v649
    %1208 = vmatpush1.msra.mxu0 %v648
    %1209 = vmatprep.subr.mxu0 %v645
    %1210 = vmatpush1.msra.mxu0 %v644
    %1211 = vmatprep.subr.mxu0 %v641
    %1212 = vmatpush1.msra.mxu0 %v640
    %1213 = vmatprep.subr.mxu0 %v637
    %1214 = vmatpush1.msra.mxu0 %v636
    %1215 = vmatprep.subr.mxu0 %v633
    %1216 = vmatpush1.msra.mxu0 %v632
    %1217 = vmatprep.subr.mxu0 %v629
    %1218 = vmatpush1.msra.mxu0 %v628
    %1219 = vmatprep.subr.mxu0 %v625
    %1220 = vmatpush1.msra.mxu0 %v624
    %1221 = vmatprep.subr.mxu0 %v621
    %1222 = vmatpush1.msra.mxu0 %v620
    %1223 = vmatprep.subr.mxu0 %v617
    %1224 = vmatpush1.msra.mxu0 %v616
    %1225 = vmatprep.subr.mxu0 %v613
    %1226 = vmatpush1.msra.mxu0 %v612
    %1227 = vmatprep.subr.mxu0 %v609
    %1228 = vmatpush1.msra.mxu0 %v608
    %1229 = vmatprep.subr.mxu0 %v605
    %1230 = vmatpush1.msra.mxu0 %v604
    %1231 = vmatprep.subr.mxu0 %v601
    %1232 = vmatpush1.msra.mxu0 %v600
    %1233 = vmatprep.subr.mxu0 %v597
    %1234 = vmatpush1.msra.mxu0 %v596
    %1235 = vmatprep.subr.mxu0 0.0
    %1236 = vmatpush2.msra.mxu0 0.0
    %1237 = vmatprep.subr.mxu0 0.0
    %1238 = vmatpush2.msra.mxu0 0.0
    %1239 = vmatprep.subr.mxu0 0.0
    %1240 = vmatpush2.msra.mxu0 0.0
    %1241 = vmatprep.subr.mxu0 0.0
    %1242 = vmatpush2.msra.mxu0 0.0
    %1243 = vmatprep.subr.mxu0 0.0
    %1244 = vmatpush2.msra.mxu0 0.0
    %1245 = vmatprep.subr.mxu0 0.0
    %1246 = vmatpush2.msra.mxu0 0.0
    %1247 = vmatprep.subr.mxu0 0.0
    %1248 = vmatpush2.msra.mxu0 0.0
    %1249 = vmatprep.subr.mxu0 0.0
    %1250 = vmatpush2.msra.mxu0 0.0
    %1251 = vmatprep.subr.mxu0 0.0
    %1252 = vmatpush2.msra.mxu0 0.0
    %1253 = vmatprep.subr.mxu0 0.0
    %1254 = vmatpush2.msra.mxu0 0.0
    %1255 = vmatprep.subr.mxu0 0.0
    %1256 = vmatpush2.msra.mxu0 0.0
    %1257 = vmatprep.subr.mxu0 0.0
    %1258 = vmatpush2.msra.mxu0 0.0
    %1259 = vmatprep.subr.mxu0 0.0
    %1260 = vmatpush2.msra.mxu0 0.0
    %1261 = vmatprep.subr.mxu0 0.0
    %1262 = vmatpush2.msra.mxu0 0.0
    %1263 = vmatprep.subr.mxu0 0.0
    %1264 = vmatpush2.msra.mxu0 0.0
    %1265 = vmatprep.subr.mxu0 0.0
    %1266 = vmatpush2.msra.mxu0 0.0
    %1267 = vmatprep.mubr.f32.mxu0 0.0
    %1268 = vmatmul.mubr.f32.gmra.mxu0 %v1114
    %v1269 = vpop.f32.mrf.mxu0
    %v1270 = vadd.f32 0.0, %v1269
    %v1271 = vpop.f32.mrf.mxu0
    %v1272 = vadd.f32 0.0, %v1271
    %1273 = vmatprep.mubr.f32.mxu0 0.0
    %1274 = vmatmul.mubr.f32.gmra.mxu0 %v1115
    %v1275 = vpop.f32.mrf.mxu0
    %v1276 = vadd.f32 0.0, %v1275
    %v1277 = vpop.f32.mrf.mxu0
    %v1278 = vadd.f32 0.0, %v1277
    %1279 = vdwg.mxu0
    %v1280 = vadd.f32 %v1118, %v1193
    %v1281 = vadd.f32 %v1119, %v1195
    %v1282 = vadd.f32 %v1120, %v1270
    %v1283 = vadd.f32 %v1121, %v1272
    %v1284 = vadd.f32 %v1122, %v1199
    %v1285 = vadd.f32 %v1123, %v1201
    %v1286 = vadd.f32 %v1124, %v1276
    %v1287 = vadd.f32 %v1125, %v1278
    %v1288 = vxor.u32 %v1280, 2147483648
    %v1289 = vxor.u32 %v1284, 2147483648
    %v1290 = vmul.f32 %v1288, 1.442695
    %v1291 = vpow.pop %v1290
    %v1292 = vmul.f32 %v1289, 1.442695
    %v1293 = vpow.pop %v1292
    %v1294 = vadd.f32 %v1291, 1.0
    %v1295 = vadd.f32 %v1293, 1.0
    %v1296 = vrcp.pop %v1294
    %v1297 = vmul.f32 1.0, %v1296
    %v1298 = vrcp.pop %v1295
    %v1299 = vmul.f32 1.0, %v1298
    %v1300 = vxor.u32 %v1281, 2147483648
    %v1301 = vxor.u32 %v1285, 2147483648
    %v1302 = vmul.f32 %v1300, 1.442695
    %v1303 = vpow.pop %v1302
    %v1304 = vmul.f32 %v1301, 1.442695
    %v1305 = vpow.pop %v1304
    %v1306 = vadd.f32 %v1303, 1.0
    %v1307 = vadd.f32 %v1305, 1.0
    %v1308 = vrcp.pop %v1306
    %v1309 = vmul.f32 1.0, %v1308
    %v1310 = vrcp.pop %v1307
    %v1311 = vmul.f32 1.0, %v1310
    %v1312 = vtanh.pop %v1282
    %v1313 = vtanh.pop %v1286
    %v1314 = vxor.u32 %v1283, 2147483648
    %v1315 = vxor.u32 %v1287, 2147483648
    %v1316 = vmul.f32 %v1314, 1.442695
    %v1317 = vpow.pop %v1316
    %v1318 = vmul.f32 %v1315, 1.442695
    %v1319 = vpow.pop %v1318
    %v1320 = vadd.f32 %v1317, 1.0
    %v1321 = vadd.f32 %v1319, 1.0
    %v1322 = vrcp.pop %v1320
    %v1323 = vmul.f32 1.0, %v1322
    %v1324 = vrcp.pop %v1321
    %v1325 = vmul.f32 1.0, %v1324
    %v1326 = vmul.f32 %v1309, %v1116
    %v1327 = vmul.f32 %v1311, %v1117
    %v1328 = vmul.f32 %v1297, %v1312
    %v1329 = vmul.f32 %v1299, %v1313
    %v1330 = vadd.f32 %v1326, %v1328
    %v1331 = vadd.f32 %v1327, %v1329
    %v1332 = vtanh.pop %v1330
    %v1333 = vtanh.pop %v1331
    %v1334 = vmul.f32 %v1323, %v1332
    %v1335 = vmul.f32 %v1325, %v1333
    %vm1336 = vcmp.gt.s32.totalorder %v580, 2
    %vm1337 = vcmp.gt.s32.totalorder %v581, 2
    %v1338 = vsel %vm1336, 1, 0
    %v1339 = vsel %vm1337, 1, 0
    %1340 = vset.pattern.permute.xlu0 0
    %1341 = vperm.xlu0 %1340, %v1338
    %v1342 = vpop.permute.xlu0 %1341
    %1343 = vset.pattern.permute.xlu0 0
    %1344 = vperm.xlu0 %1343, %v1339
    %v1345 = vpop.permute.xlu0 %1344
    %vm1346 = vcmp.eq.s32.totalorder %v1342, 1
    %vm1347 = vcmp.eq.s32.totalorder %v1345, 1
    %v1348 = vsel %vm1346, %v1334, %v1114
    %v1349 = vsel %vm1347, %v1335, %v1115
    %v1350 = vsel %vm1346, %v1330, %v1116
    %v1351 = vsel %vm1347, %v1331, %v1117
    %v1352 = vld [vmem:[#allocation2 + $0xc0] sm:$0xff]
    %v1353 = vld [vmem:[#allocation2 + $0xc8] sm:$0xff]
    %v1354 = vld [vmem:[#allocation2 + $0xd0] sm:$0xff]
    %v1355 = vld [vmem:[#allocation2 + $0xd8] sm:$0xff]
    %v1356 = vld [vmem:[#allocation2 + $0xe0] sm:$0xff]
    %v1357 = vld [vmem:[#allocation2 + $0xe8] sm:$0xff]
    %v1358 = vld [vmem:[#allocation2 + $0xf0] sm:$0xff]
    %v1359 = vld [vmem:[#allocation2 + $0xf8] sm:$0xff]
    %1360 = vmatprep.subr.mxu0 %v655
    %1361 = vmatpush1.msra.mxu0 %v654
    %1362 = vmatprep.subr.mxu0 %v651
    %1363 = vmatpush1.msra.mxu0 %v650
    %1364 = vmatprep.subr.mxu0 %v647
    %1365 = vmatpush1.msra.mxu0 %v646
    %1366 = vmatprep.subr.mxu0 %v643
    %1367 = vmatpush1.msra.mxu0 %v642
    %1368 = vmatprep.subr.mxu0 %v639
    %1369 = vmatpush1.msra.mxu0 %v638
    %1370 = vmatprep.subr.mxu0 %v635
    %1371 = vmatpush1.msra.mxu0 %v634
    %1372 = vmatprep.subr.mxu0 %v631
    %1373 = vmatpush1.msra.mxu0 %v630
    %1374 = vmatprep.subr.mxu0 %v627
    %1375 = vmatpush1.msra.mxu0 %v626
    %1376 = vmatprep.subr.mxu0 %v623
    %1377 = vmatpush1.msra.mxu0 %v622
    %1378 = vmatprep.subr.mxu0 %v619
    %1379 = vmatpush1.msra.mxu0 %v618
    %1380 = vmatprep.subr.mxu0 %v615
    %1381 = vmatpush1.msra.mxu0 %v614
    %1382 = vmatprep.subr.mxu0 %v611
    %1383 = vmatpush1.msra.mxu0 %v610
    %1384 = vmatprep.subr.mxu0 %v607
    %1385 = vmatpush1.msra.mxu0 %v606
    %1386 = vmatprep.subr.mxu0 %v603
    %1387 = vmatpush1.msra.mxu0 %v602
    %1388 = vmatprep.subr.mxu0 %v599
    %1389 = vmatpush1.msra.mxu0 %v598
    %1390 = vmatprep.subr.mxu0 %v595
    %1391 = vmatpush1.msra.mxu0 %v594
    %1392 = vmatprep.subr.mxu0 0.0
    %1393 = vmatpush2.msra.mxu0 0.0
    %1394 = vmatprep.subr.mxu0 0.0
    %1395 = vmatpush2.msra.mxu0 0.0
    %1396 = vmatprep.subr.mxu0 0.0
    %1397 = vmatpush2.msra.mxu0 0.0
    %1398 = vmatprep.subr.mxu0 0.0
    %1399 = vmatpush2.msra.mxu0 0.0
    %1400 = vmatprep.subr.mxu0 0.0
    %1401 = vmatpush2.msra.mxu0 0.0
    %1402 = vmatprep.subr.mxu0 0.0
    %1403 = vmatpush2.msra.mxu0 0.0
    %1404 = vmatprep.subr.mxu0 0.0
    %1405 = vmatpush2.msra.mxu0 0.0
    %1406 = vmatprep.subr.mxu0 0.0
    %1407 = vmatpush2.msra.mxu0 0.0
    %1408 = vmatprep.subr.mxu0 0.0
    %1409 = vmatpush2.msra.mxu0 0.0
    %1410 = vmatprep.subr.mxu0 0.0
    %1411 = vmatpush2.msra.mxu0 0.0
    %1412 = vmatprep.subr.mxu0 0.0
    %1413 = vmatpush2.msra.mxu0 0.0
    %1414 = vmatprep.subr.mxu0 0.0
    %1415 = vmatpush2.msra.mxu0 0.0
    %1416 = vmatprep.subr.mxu0 0.0
    %1417 = vmatpush2.msra.mxu0 0.0
    %1418 = vmatprep.subr.mxu0 0.0
    %1419 = vmatpush2.msra.mxu0 0.0
    %1420 = vmatprep.subr.mxu0 0.0
    %1421 = vmatpush2.msra.mxu0 0.0
    %1422 = vmatprep.subr.mxu0 0.0
    %1423 = vmatpush2.msra.mxu0 0.0
    %1424 = vmatprep.mubr.f32.mxu0 0.0
    %1425 = vmatmul.mubr.f32.gmra.mxu0 %v1348
    %v1426 = vpop.f32.mrf.mxu0
    %v1427 = vadd.f32 0.0, %v1426
    %v1428 = vpop.f32.mrf.mxu0
    %v1429 = vadd.f32 0.0, %v1428
    %1430 = vmatprep.mubr.f32.mxu0 0.0
    %1431 = vmatmul.mubr.f32.gmra.mxu0 %v1349
    %v1432 = vpop.f32.mrf.mxu0
    %v1433 = vadd.f32 0.0, %v1432
    %v1434 = vpop.f32.mrf.mxu0
    %v1435 = vadd.f32 0.0, %v1434
    %1436 = vdwg.mxu0
    %1437 = vmatprep.subr.mxu0 %v657
    %1438 = vmatpush1.msra.mxu0 %v656
    %1439 = vmatprep.subr.mxu0 %v653
    %1440 = vmatpush1.msra.mxu0 %v652
    %1441 = vmatprep.subr.mxu0 %v649
    %1442 = vmatpush1.msra.mxu0 %v648
    %1443 = vmatprep.subr.mxu0 %v645
    %1444 = vmatpush1.msra.mxu0 %v644
    %1445 = vmatprep.subr.mxu0 %v641
    %1446 = vmatpush1.msra.mxu0 %v640
    %1447 = vmatprep.subr.mxu0 %v637
    %1448 = vmatpush1.msra.mxu0 %v636
    %1449 = vmatprep.subr.mxu0 %v633
    %1450 = vmatpush1.msra.mxu0 %v632
    %1451 = vmatprep.subr.mxu0 %v629
    %1452 = vmatpush1.msra.mxu0 %v628
    %1453 = vmatprep.subr.mxu0 %v625
    %1454 = vmatpush1.msra.mxu0 %v624
    %1455 = vmatprep.subr.mxu0 %v621
    %1456 = vmatpush1.msra.mxu0 %v620
    %1457 = vmatprep.subr.mxu0 %v617
    %1458 = vmatpush1.msra.mxu0 %v616
    %1459 = vmatprep.subr.mxu0 %v613
    %1460 = vmatpush1.msra.mxu0 %v612
    %1461 = vmatprep.subr.mxu0 %v609
    %1462 = vmatpush1.msra.mxu0 %v608
    %1463 = vmatprep.subr.mxu0 %v605
    %1464 = vmatpush1.msra.mxu0 %v604
    %1465 = vmatprep.subr.mxu0 %v601
    %1466 = vmatpush1.msra.mxu0 %v600
    %1467 = vmatprep.subr.mxu0 %v597
    %1468 = vmatpush1.msra.mxu0 %v596
    %1469 = vmatprep.subr.mxu0 0.0
    %1470 = vmatpush2.msra.mxu0 0.0
    %1471 = vmatprep.subr.mxu0 0.0
    %1472 = vmatpush2.msra.mxu0 0.0
    %1473 = vmatprep.subr.mxu0 0.0
    %1474 = vmatpush2.msra.mxu0 0.0
    %1475 = vmatprep.subr.mxu0 0.0
    %1476 = vmatpush2.msra.mxu0 0.0
    %1477 = vmatprep.subr.mxu0 0.0
    %1478 = vmatpush2.msra.mxu0 0.0
    %1479 = vmatprep.subr.mxu0 0.0
    %1480 = vmatpush2.msra.mxu0 0.0
    %1481 = vmatprep.subr.mxu0 0.0
    %1482 = vmatpush2.msra.mxu0 0.0
    %1483 = vmatprep.subr.mxu0 0.0
    %1484 = vmatpush2.msra.mxu0 0.0
    %1485 = vmatprep.subr.mxu0 0.0
    %1486 = vmatpush2.msra.mxu0 0.0
    %1487 = vmatprep.subr.mxu0 0.0
    %1488 = vmatpush2.msra.mxu0 0.0
    %1489 = vmatprep.subr.mxu0 0.0
    %1490 = vmatpush2.msra.mxu0 0.0
    %1491 = vmatprep.subr.mxu0 0.0
    %1492 = vmatpush2.msra.mxu0 0.0
    %1493 = vmatprep.subr.mxu0 0.0
    %1494 = vmatpush2.msra.mxu0 0.0
    %1495 = vmatprep.subr.mxu0 0.0
    %1496 = vmatpush2.msra.mxu0 0.0
    %1497 = vmatprep.subr.mxu0 0.0
    %1498 = vmatpush2.msra.mxu0 0.0
    %1499 = vmatprep.subr.mxu0 0.0
    %1500 = vmatpush2.msra.mxu0 0.0
    %1501 = vmatprep.mubr.f32.mxu0 0.0
    %1502 = vmatmul.mubr.f32.gmra.mxu0 %v1348
    %v1503 = vpop.f32.mrf.mxu0
    %v1504 = vadd.f32 0.0, %v1503
    %v1505 = vpop.f32.mrf.mxu0
    %v1506 = vadd.f32 0.0, %v1505
    %1507 = vmatprep.mubr.f32.mxu0 0.0
    %1508 = vmatmul.mubr.f32.gmra.mxu0 %v1349
    %v1509 = vpop.f32.mrf.mxu0
    %v1510 = vadd.f32 0.0, %v1509
    %v1511 = vpop.f32.mrf.mxu0
    %v1512 = vadd.f32 0.0, %v1511
    %1513 = vdwg.mxu0
    %v1514 = vadd.f32 %v1352, %v1427
    %v1515 = vadd.f32 %v1353, %v1429
    %v1516 = vadd.f32 %v1354, %v1504
    %v1517 = vadd.f32 %v1355, %v1506
    %v1518 = vadd.f32 %v1356, %v1433
    %v1519 = vadd.f32 %v1357, %v1435
    %v1520 = vadd.f32 %v1358, %v1510
    %v1521 = vadd.f32 %v1359, %v1512
    %v1522 = vxor.u32 %v1514, 2147483648
    %v1523 = vxor.u32 %v1518, 2147483648
    %v1524 = vmul.f32 %v1522, 1.442695
    %v1525 = vpow.pop %v1524
    %v1526 = vmul.f32 %v1523, 1.442695
    %v1527 = vpow.pop %v1526
    %v1528 = vadd.f32 %v1525, 1.0
    %v1529 = vadd.f32 %v1527, 1.0
    %v1530 = vrcp.pop %v1528
    %v1531 = vmul.f32 1.0, %v1530
    %v1532 = vrcp.pop %v1529
    %v1533 = vmul.f32 1.0, %v1532
    %v1534 = vxor.u32 %v1515, 2147483648
    %v1535 = vxor.u32 %v1519, 2147483648
    %v1536 = vmul.f32 %v1534, 1.442695
    %v1537 = vpow.pop %v1536
    %v1538 = vmul.f32 %v1535, 1.442695
    %v1539 = vpow.pop %v1538
    %v1540 = vadd.f32 %v1537, 1.0
    %v1541 = vadd.f32 %v1539, 1.0
    %v1542 = vrcp.pop %v1540
    %v1543 = vmul.f32 1.0, %v1542
    %v1544 = vrcp.pop %v1541
    %v1545 = vmul.f32 1.0, %v1544
    %v1546 = vtanh.pop %v1516
    %v1547 = vtanh.pop %v1520
    %v1548 = vxor.u32 %v1517, 2147483648
    %v1549 = vxor.u32 %v1521, 2147483648
    %v1550 = vmul.f32 %v1548, 1.442695
    %v1551 = vpow.pop %v1550
    %v1552 = vmul.f32 %v1549, 1.442695
    %v1553 = vpow.pop %v1552
    %v1554 = vadd.f32 %v1551, 1.0
    %v1555 = vadd.f32 %v1553, 1.0
    %v1556 = vrcp.pop %v1554
    %v1557 = vmul.f32 1.0, %v1556
    %v1558 = vrcp.pop %v1555
    %v1559 = vmul.f32 1.0, %v1558
    %v1560 = vmul.f32 %v1543, %v1350
    %v1561 = vmul.f32 %v1545, %v1351
    %v1562 = vmul.f32 %v1531, %v1546
    %v1563 = vmul.f32 %v1533, %v1547
    %v1564 = vadd.f32 %v1560, %v1562
    %v1565 = vadd.f32 %v1561, %v1563
    %v1566 = vtanh.pop %v1564
    %v1567 = vtanh.pop %v1565
    %v1568 = vmul.f32 %v1557, %v1566
    %v1569 = vmul.f32 %v1559, %v1567
    %vm1570 = vcmp.gt.s32.totalorder %v580, 3
    %vm1571 = vcmp.gt.s32.totalorder %v581, 3
    %v1572 = vsel %vm1570, 1, 0
    %v1573 = vsel %vm1571, 1, 0
    %1574 = vset.pattern.permute.xlu0 0
    %1575 = vperm.xlu0 %1574, %v1572
    %v1576 = vpop.permute.xlu0 %1575
    %1577 = vset.pattern.permute.xlu0 0
    %1578 = vperm.xlu0 %1577, %v1573
    %v1579 = vpop.permute.xlu0 %1578
    %vm1580 = vcmp.eq.s32.totalorder %v1576, 1
    %vm1581 = vcmp.eq.s32.totalorder %v1579, 1
    %v1582 = vsel %vm1580, %v1568, %v1348
    %v1583 = vsel %vm1581, %v1569, %v1349
    %v1584 = vsel %vm1580, %v1564, %v1350
    %v1585 = vsel %vm1581, %v1565, %v1351
    %v1586 = vld [vmem:[#allocation2 + $0x100] sm:$0xff]
    %v1587 = vld [vmem:[#allocation2 + $0x108] sm:$0xff]
    %v1588 = vld [vmem:[#allocation2 + $0x110] sm:$0xff]
    %v1589 = vld [vmem:[#allocation2 + $0x118] sm:$0xff]
    %v1590 = vld [vmem:[#allocation2 + $0x120] sm:$0xff]
    %v1591 = vld [vmem:[#allocation2 + $0x128] sm:$0xff]
    %v1592 = vld [vmem:[#allocation2 + $0x130] sm:$0xff]
    %v1593 = vld [vmem:[#allocation2 + $0x138] sm:$0xff]
    %1594 = vmatprep.subr.mxu0 %v655
    %1595 = vmatpush1.msra.mxu0 %v654
    %1596 = vmatprep.subr.mxu0 %v651
    %1597 = vmatpush1.msra.mxu0 %v650
    %1598 = vmatprep.subr.mxu0 %v647
    %1599 = vmatpush1.msra.mxu0 %v646
    %1600 = vmatprep.subr.mxu0 %v643
    %1601 = vmatpush1.msra.mxu0 %v642
    %1602 = vmatprep.subr.mxu0 %v639
    %1603 = vmatpush1.msra.mxu0 %v638
    %1604 = vmatprep.subr.mxu0 %v635
    %1605 = vmatpush1.msra.mxu0 %v634
    %1606 = vmatprep.subr.mxu0 %v631
    %1607 = vmatpush1.msra.mxu0 %v630
    %1608 = vmatprep.subr.mxu0 %v627
    %1609 = vmatpush1.msra.mxu0 %v626
    %1610 = vmatprep.subr.mxu0 %v623
    %1611 = vmatpush1.msra.mxu0 %v622
    %1612 = vmatprep.subr.mxu0 %v619
    %1613 = vmatpush1.msra.mxu0 %v618
    %1614 = vmatprep.subr.mxu0 %v615
    %1615 = vmatpush1.msra.mxu0 %v614
    %1616 = vmatprep.subr.mxu0 %v611
    %1617 = vmatpush1.msra.mxu0 %v610
    %1618 = vmatprep.subr.mxu0 %v607
    %1619 = vmatpush1.msra.mxu0 %v606
    %1620 = vmatprep.subr.mxu0 %v603
    %1621 = vmatpush1.msra.mxu0 %v602
    %1622 = vmatprep.subr.mxu0 %v599
    %1623 = vmatpush1.msra.mxu0 %v598
    %1624 = vmatprep.subr.mxu0 %v595
    %1625 = vmatpush1.msra.mxu0 %v594
    %1626 = vmatprep.subr.mxu0 0.0
    %1627 = vmatpush2.msra.mxu0 0.0
    %1628 = vmatprep.subr.mxu0 0.0
    %1629 = vmatpush2.msra.mxu0 0.0
    %1630 = vmatprep.subr.mxu0 0.0
    %1631 = vmatpush2.msra.mxu0 0.0
    %1632 = vmatprep.subr.mxu0 0.0
    %1633 = vmatpush2.msra.mxu0 0.0
    %1634 = vmatprep.subr.mxu0 0.0
    %1635 = vmatpush2.msra.mxu0 0.0
    %1636 = vmatprep.subr.mxu0 0.0
    %1637 = vmatpush2.msra.mxu0 0.0
    %1638 = vmatprep.subr.mxu0 0.0
    %1639 = vmatpush2.msra.mxu0 0.0
    %1640 = vmatprep.subr.mxu0 0.0
    %1641 = vmatpush2.msra.mxu0 0.0
    %1642 = vmatprep.subr.mxu0 0.0
    %1643 = vmatpush2.msra.mxu0 0.0
    %1644 = vmatprep.subr.mxu0 0.0
    %1645 = vmatpush2.msra.mxu0 0.0
    %1646 = vmatprep.subr.mxu0 0.0
    %1647 = vmatpush2.msra.mxu0 0.0
    %1648 = vmatprep.subr.mxu0 0.0
    %1649 = vmatpush2.msra.mxu0 0.0
    %1650 = vmatprep.subr.mxu0 0.0
    %1651 = vmatpush2.msra.mxu0 0.0
    %1652 = vmatprep.subr.mxu0 0.0
    %1653 = vmatpush2.msra.mxu0 0.0
    %1654 = vmatprep.subr.mxu0 0.0
    %1655 = vmatpush2.msra.mxu0 0.0
    %1656 = vmatprep.subr.mxu0 0.0
    %1657 = vmatpush2.msra.mxu0 0.0
    %1658 = vmatprep.mubr.f32.mxu0 0.0
    %1659 = vmatmul.mubr.f32.gmra.mxu0 %v1582
    %v1660 = vpop.f32.mrf.mxu0
    %v1661 = vadd.f32 0.0, %v1660
    %v1662 = vpop.f32.mrf.mxu0
    %v1663 = vadd.f32 0.0, %v1662
    %1664 = vmatprep.mubr.f32.mxu0 0.0
    %1665 = vmatmul.mubr.f32.gmra.mxu0 %v1583
    %v1666 = vpop.f32.mrf.mxu0
    %v1667 = vadd.f32 0.0, %v1666
    %v1668 = vpop.f32.mrf.mxu0
    %v1669 = vadd.f32 0.0, %v1668
    %1670 = vdwg.mxu0
    %1671 = vmatprep.subr.mxu0 %v657
    %1672 = vmatpush1.msra.mxu0 %v656
    %1673 = vmatprep.subr.mxu0 %v653
    %1674 = vmatpush1.msra.mxu0 %v652
    %1675 = vmatprep.subr.mxu0 %v649
    %1676 = vmatpush1.msra.mxu0 %v648
    %1677 = vmatprep.subr.mxu0 %v645
    %1678 = vmatpush1.msra.mxu0 %v644
    %1679 = vmatprep.subr.mxu0 %v641
    %1680 = vmatpush1.msra.mxu0 %v640
    %1681 = vmatprep.subr.mxu0 %v637
    %1682 = vmatpush1.msra.mxu0 %v636
    %1683 = vmatprep.subr.mxu0 %v633
    %1684 = vmatpush1.msra.mxu0 %v632
    %1685 = vmatprep.subr.mxu0 %v629
    %1686 = vmatpush1.msra.mxu0 %v628
    %1687 = vmatprep.subr.mxu0 %v625
    %1688 = vmatpush1.msra.mxu0 %v624
    %1689 = vmatprep.subr.mxu0 %v621
    %1690 = vmatpush1.msra.mxu0 %v620
    %1691 = vmatprep.subr.mxu0 %v617
    %1692 = vmatpush1.msra.mxu0 %v616
    %1693 = vmatprep.subr.mxu0 %v613
    %1694 = vmatpush1.msra.mxu0 %v612
    %1695 = vmatprep.subr.mxu0 %v609
    %1696 = vmatpush1.msra.mxu0 %v608
    %1697 = vmatprep.subr.mxu0 %v605
    %1698 = vmatpush1.msra.mxu0 %v604
    %1699 = vmatprep.subr.mxu0 %v601
    %1700 = vmatpush1.msra.mxu0 %v600
    %1701 = vmatprep.subr.mxu0 %v597
    %1702 = vmatpush1.msra.mxu0 %v596
    %1703 = vmatprep.subr.mxu0 0.0
    %1704 = vmatpush2.msra.mxu0 0.0
    %1705 = vmatprep.subr.mxu0 0.0
    %1706 = vmatpush2.msra.mxu0 0.0
    %1707 = vmatprep.subr.mxu0 0.0
    %1708 = vmatpush2.msra.mxu0 0.0
    %1709 = vmatprep.subr.mxu0 0.0
    %1710 = vmatpush2.msra.mxu0 0.0
    %1711 = vmatprep.subr.mxu0 0.0
    %1712 = vmatpush2.msra.mxu0 0.0
    %1713 = vmatprep.subr.mxu0 0.0
    %1714 = vmatpush2.msra.mxu0 0.0
    %1715 = vmatprep.subr.mxu0 0.0
    %1716 = vmatpush2.msra.mxu0 0.0
    %1717 = vmatprep.subr.mxu0 0.0
    %1718 = vmatpush2.msra.mxu0 0.0
    %1719 = vmatprep.subr.mxu0 0.0
    %1720 = vmatpush2.msra.mxu0 0.0
    %1721 = vmatprep.subr.mxu0 0.0
    %1722 = vmatpush2.msra.mxu0 0.0
    %1723 = vmatprep.subr.mxu0 0.0
    %1724 = vmatpush2.msra.mxu0 0.0
    %1725 = vmatprep.subr.mxu0 0.0
    %1726 = vmatpush2.msra.mxu0 0.0
    %1727 = vmatprep.subr.mxu0 0.0
    %1728 = vmatpush2.msra.mxu0 0.0
    %1729 = vmatprep.subr.mxu0 0.0
    %1730 = vmatpush2.msra.mxu0 0.0
    %1731 = vmatprep.subr.mxu0 0.0
    %1732 = vmatpush2.msra.mxu0 0.0
    %1733 = vmatprep.subr.mxu0 0.0
    %1734 = vmatpush2.msra.mxu0 0.0
    %1735 = vmatprep.mubr.f32.mxu0 0.0
    %1736 = vmatmul.mubr.f32.gmra.mxu0 %v1582
    %v1737 = vpop.f32.mrf.mxu0
    %v1738 = vadd.f32 0.0, %v1737
    %v1739 = vpop.f32.mrf.mxu0
    %v1740 = vadd.f32 0.0, %v1739
    %1741 = vmatprep.mubr.f32.mxu0 0.0
    %1742 = vmatmul.mubr.f32.gmra.mxu0 %v1583
    %v1743 = vpop.f32.mrf.mxu0
    %v1744 = vadd.f32 0.0, %v1743
    %v1745 = vpop.f32.mrf.mxu0
    %v1746 = vadd.f32 0.0, %v1745
    %1747 = vdwg.mxu0
    %v1748 = vadd.f32 %v1586, %v1661
    %v1749 = vadd.f32 %v1587, %v1663
    %v1750 = vadd.f32 %v1588, %v1738
    %v1751 = vadd.f32 %v1589, %v1740
    %v1752 = vadd.f32 %v1590, %v1667
    %v1753 = vadd.f32 %v1591, %v1669
    %v1754 = vadd.f32 %v1592, %v1744
    %v1755 = vadd.f32 %v1593, %v1746
    %v1756 = vxor.u32 %v1748, 2147483648
    %v1757 = vxor.u32 %v1752, 2147483648
    %v1758 = vmul.f32 %v1756, 1.442695
    %v1759 = vpow.pop %v1758
    %v1760 = vmul.f32 %v1757, 1.442695
    %v1761 = vpow.pop %v1760
    %v1762 = vadd.f32 %v1759, 1.0
    %v1763 = vadd.f32 %v1761, 1.0
    %v1764 = vrcp.pop %v1762
    %v1765 = vmul.f32 1.0, %v1764
    %v1766 = vrcp.pop %v1763
    %v1767 = vmul.f32 1.0, %v1766
    %v1768 = vxor.u32 %v1749, 2147483648
    %v1769 = vxor.u32 %v1753, 2147483648
    %v1770 = vmul.f32 %v1768, 1.442695
    %v1771 = vpow.pop %v1770
    %v1772 = vmul.f32 %v1769, 1.442695
    %v1773 = vpow.pop %v1772
    %v1774 = vadd.f32 %v1771, 1.0
    %v1775 = vadd.f32 %v1773, 1.0
    %v1776 = vrcp.pop %v1774
    %v1777 = vmul.f32 1.0, %v1776
    %v1778 = vrcp.pop %v1775
    %v1779 = vmul.f32 1.0, %v1778
    %v1780 = vtanh.pop %v1750
    %v1781 = vtanh.pop %v1754
    %v1782 = vxor.u32 %v1751, 2147483648
    %v1783 = vxor.u32 %v1755, 2147483648
    %v1784 = vmul.f32 %v1782, 1.442695
    %v1785 = vpow.pop %v1784
    %v1786 = vmul.f32 %v1783, 1.442695
    %v1787 = vpow.pop %v1786
    %v1788 = vadd.f32 %v1785, 1.0
    %v1789 = vadd.f32 %v1787, 1.0
    %v1790 = vrcp.pop %v1788
    %v1791 = vmul.f32 1.0, %v1790
    %v1792 = vrcp.pop %v1789
    %v1793 = vmul.f32 1.0, %v1792
    %v1794 = vmul.f32 %v1777, %v1584
    %v1795 = vmul.f32 %v1779, %v1585
    %v1796 = vmul.f32 %v1765, %v1780
    %v1797 = vmul.f32 %v1767, %v1781
    %v1798 = vadd.f32 %v1794, %v1796
    %v1799 = vadd.f32 %v1795, %v1797
    %v1800 = vtanh.pop %v1798
    %v1801 = vtanh.pop %v1799
    %v1802 = vmul.f32 %v1791, %v1800
    %v1803 = vmul.f32 %v1793, %v1801
    %vm1804 = vcmp.gt.s32.totalorder %v580, 4
    %vm1805 = vcmp.gt.s32.totalorder %v581, 4
    %v1806 = vsel %vm1804, 1, 0
    %v1807 = vsel %vm1805, 1, 0
    %1808 = vset.pattern.permute.xlu0 0
    %1809 = vperm.xlu0 %1808, %v1806
    %v1810 = vpop.permute.xlu0 %1809
    %1811 = vset.pattern.permute.xlu0 0
    %1812 = vperm.xlu0 %1811, %v1807
    %v1813 = vpop.permute.xlu0 %1812
    %vm1814 = vcmp.eq.s32.totalorder %v1810, 1
    %vm1815 = vcmp.eq.s32.totalorder %v1813, 1
    %v1816 = vsel %vm1814, %v1802, %v1582
    %v1817 = vsel %vm1815, %v1803, %v1583
    %v1818 = vsel %vm1814, %v1798, %v1584
    %v1819 = vsel %vm1815, %v1799, %v1585
    %v1820 = vld [vmem:[#allocation2 + $0x140] sm:$0xff]
    %v1821 = vld [vmem:[#allocation2 + $0x148] sm:$0xff]
    %v1822 = vld [vmem:[#allocation2 + $0x150] sm:$0xff]
    %v1823 = vld [vmem:[#allocation2 + $0x158] sm:$0xff]
    %v1824 = vld [vmem:[#allocation2 + $0x160] sm:$0xff]
    %v1825 = vld [vmem:[#allocation2 + $0x168] sm:$0xff]
    %v1826 = vld [vmem:[#allocation2 + $0x170] sm:$0xff]
    %v1827 = vld [vmem:[#allocation2 + $0x178] sm:$0xff]
    %1828 = vmatprep.subr.mxu0 %v655
    %1829 = vmatpush1.msra.mxu0 %v654
    %1830 = vmatprep.subr.mxu0 %v651
    %1831 = vmatpush1.msra.mxu0 %v650
    %1832 = vmatprep.subr.mxu0 %v647
    %1833 = vmatpush1.msra.mxu0 %v646
    %1834 = vmatprep.subr.mxu0 %v643
    %1835 = vmatpush1.msra.mxu0 %v642
    %1836 = vmatprep.subr.mxu0 %v639
    %1837 = vmatpush1.msra.mxu0 %v638
    %1838 = vmatprep.subr.mxu0 %v635
    %1839 = vmatpush1.msra.mxu0 %v634
    %1840 = vmatprep.subr.mxu0 %v631
    %1841 = vmatpush1.msra.mxu0 %v630
    %1842 = vmatprep.subr.mxu0 %v627
    %1843 = vmatpush1.msra.mxu0 %v626
    %1844 = vmatprep.subr.mxu0 %v623
    %1845 = vmatpush1.msra.mxu0 %v622
    %1846 = vmatprep.subr.mxu0 %v619
    %1847 = vmatpush1.msra.mxu0 %v618
    %1848 = vmatprep.subr.mxu0 %v615
    %1849 = vmatpush1.msra.mxu0 %v614
    %1850 = vmatprep.subr.mxu0 %v611
    %1851 = vmatpush1.msra.mxu0 %v610
    %1852 = vmatprep.subr.mxu0 %v607
    %1853 = vmatpush1.msra.mxu0 %v606
    %1854 = vmatprep.subr.mxu0 %v603
    %1855 = vmatpush1.msra.mxu0 %v602
    %1856 = vmatprep.subr.mxu0 %v599
    %1857 = vmatpush1.msra.mxu0 %v598
    %1858 = vmatprep.subr.mxu0 %v595
    %1859 = vmatpush1.msra.mxu0 %v594
    %1860 = vmatprep.subr.mxu0 0.0
    %1861 = vmatpush2.msra.mxu0 0.0
    %1862 = vmatprep.subr.mxu0 0.0
    %1863 = vmatpush2.msra.mxu0 0.0
    %1864 = vmatprep.subr.mxu0 0.0
    %1865 = vmatpush2.msra.mxu0 0.0
    %1866 = vmatprep.subr.mxu0 0.0
    %1867 = vmatpush2.msra.mxu0 0.0
    %1868 = vmatprep.subr.mxu0 0.0
    %1869 = vmatpush2.msra.mxu0 0.0
    %1870 = vmatprep.subr.mxu0 0.0
    %1871 = vmatpush2.msra.mxu0 0.0
    %1872 = vmatprep.subr.mxu0 0.0
    %1873 = vmatpush2.msra.mxu0 0.0
    %1874 = vmatprep.subr.mxu0 0.0
    %1875 = vmatpush2.msra.mxu0 0.0
    %1876 = vmatprep.subr.mxu0 0.0
    %1877 = vmatpush2.msra.mxu0 0.0
    %1878 = vmatprep.subr.mxu0 0.0
    %1879 = vmatpush2.msra.mxu0 0.0
    %1880 = vmatprep.subr.mxu0 0.0
    %1881 = vmatpush2.msra.mxu0 0.0
    %1882 = vmatprep.subr.mxu0 0.0
    %1883 = vmatpush2.msra.mxu0 0.0
    %1884 = vmatprep.subr.mxu0 0.0
    %1885 = vmatpush2.msra.mxu0 0.0
    %1886 = vmatprep.subr.mxu0 0.0
    %1887 = vmatpush2.msra.mxu0 0.0
    %1888 = vmatprep.subr.mxu0 0.0
    %1889 = vmatpush2.msra.mxu0 0.0
    %1890 = vmatprep.subr.mxu0 0.0
    %1891 = vmatpush2.msra.mxu0 0.0
    %1892 = vmatprep.mubr.f32.mxu0 0.0
    %1893 = vmatmul.mubr.f32.gmra.mxu0 %v1816
    %v1894 = vpop.f32.mrf.mxu0
    %v1895 = vadd.f32 0.0, %v1894
    %v1896 = vpop.f32.mrf.mxu0
    %v1897 = vadd.f32 0.0, %v1896
    %1898 = vmatprep.mubr.f32.mxu0 0.0
    %1899 = vmatmul.mubr.f32.gmra.mxu0 %v1817
    %v1900 = vpop.f32.mrf.mxu0
    %v1901 = vadd.f32 0.0, %v1900
    %v1902 = vpop.f32.mrf.mxu0
    %v1903 = vadd.f32 0.0, %v1902
    %1904 = vdwg.mxu0
    %1905 = vmatprep.subr.mxu0 %v657
    %1906 = vmatpush1.msra.mxu0 %v656
    %1907 = vmatprep.subr.mxu0 %v653
    %1908 = vmatpush1.msra.mxu0 %v652
    %1909 = vmatprep.subr.mxu0 %v649
    %1910 = vmatpush1.msra.mxu0 %v648
    %1911 = vmatprep.subr.mxu0 %v645
    %1912 = vmatpush1.msra.mxu0 %v644
    %1913 = vmatprep.subr.mxu0 %v641
    %1914 = vmatpush1.msra.mxu0 %v640
    %1915 = vmatprep.subr.mxu0 %v637
    %1916 = vmatpush1.msra.mxu0 %v636
    %1917 = vmatprep.subr.mxu0 %v633
    %1918 = vmatpush1.msra.mxu0 %v632
    %1919 = vmatprep.subr.mxu0 %v629
    %1920 = vmatpush1.msra.mxu0 %v628
    %1921 = vmatprep.subr.mxu0 %v625
    %1922 = vmatpush1.msra.mxu0 %v624
    %1923 = vmatprep.subr.mxu0 %v621
    %1924 = vmatpush1.msra.mxu0 %v620
    %1925 = vmatprep.subr.mxu0 %v617
    %1926 = vmatpush1.msra.mxu0 %v616
    %1927 = vmatprep.subr.mxu0 %v613
    %1928 = vmatpush1.msra.mxu0 %v612
    %1929 = vmatprep.subr.mxu0 %v609
    %1930 = vmatpush1.msra.mxu0 %v608
    %1931 = vmatprep.subr.mxu0 %v605
    %1932 = vmatpush1.msra.mxu0 %v604
    %1933 = vmatprep.subr.mxu0 %v601
    %1934 = vmatpush1.msra.mxu0 %v600
    %1935 = vmatprep.subr.mxu0 %v597
    %1936 = vmatpush1.msra.mxu0 %v596
    %1937 = vmatprep.subr.mxu0 0.0
    %1938 = vmatpush2.msra.mxu0 0.0
    %1939 = vmatprep.subr.mxu0 0.0
    %1940 = vmatpush2.msra.mxu0 0.0
    %1941 = vmatprep.subr.mxu0 0.0
    %1942 = vmatpush2.msra.mxu0 0.0
    %1943 = vmatprep.subr.mxu0 0.0
    %1944 = vmatpush2.msra.mxu0 0.0
    %1945 = vmatprep.subr.mxu0 0.0
    %1946 = vmatpush2.msra.mxu0 0.0
    %1947 = vmatprep.subr.mxu0 0.0
    %1948 = vmatpush2.msra.mxu0 0.0
    %1949 = vmatprep.subr.mxu0 0.0
    %1950 = vmatpush2.msra.mxu0 0.0
    %1951 = vmatprep.subr.mxu0 0.0
    %1952 = vmatpush2.msra.mxu0 0.0
    %1953 = vmatprep.subr.mxu0 0.0
    %1954 = vmatpush2.msra.mxu0 0.0
    %1955 = vmatprep.subr.mxu0 0.0
    %1956 = vmatpush2.msra.mxu0 0.0
    %1957 = vmatprep.subr.mxu0 0.0
    %1958 = vmatpush2.msra.mxu0 0.0
    %1959 = vmatprep.subr.mxu0 0.0
    %1960 = vmatpush2.msra.mxu0 0.0
    %1961 = vmatprep.subr.mxu0 0.0
    %1962 = vmatpush2.msra.mxu0 0.0
    %1963 = vmatprep.subr.mxu0 0.0
    %1964 = vmatpush2.msra.mxu0 0.0
    %1965 = vmatprep.subr.mxu0 0.0
    %1966 = vmatpush2.msra.mxu0 0.0
    %1967 = vmatprep.subr.mxu0 0.0
    %1968 = vmatpush2.msra.mxu0 0.0
    %1969 = vmatprep.mubr.f32.mxu0 0.0
    %1970 = vmatmul.mubr.f32.gmra.mxu0 %v1816
    %v1971 = vpop.f32.mrf.mxu0
    %v1972 = vadd.f32 0.0, %v1971
    %v1973 = vpop.f32.mrf.mxu0
    %v1974 = vadd.f32 0.0, %v1973
    %1975 = vmatprep.mubr.f32.mxu0 0.0
    %1976 = vmatmul.mubr.f32.gmra.mxu0 %v1817
    %v1977 = vpop.f32.mrf.mxu0
    %v1978 = vadd.f32 0.0, %v1977
    %v1979 = vpop.f32.mrf.mxu0
    %v1980 = vadd.f32 0.0, %v1979
    %1981 = vdwg.mxu0
    %v1982 = vadd.f32 %v1820, %v1895
    %v1983 = vadd.f32 %v1821, %v1897
    %v1984 = vadd.f32 %v1822, %v1972
    %v1985 = vadd.f32 %v1823, %v1974
    %v1986 = vadd.f32 %v1824, %v1901
    %v1987 = vadd.f32 %v1825, %v1903
    %v1988 = vadd.f32 %v1826, %v1978
    %v1989 = vadd.f32 %v1827, %v1980
    %v1990 = vxor.u32 %v1982, 2147483648
    %v1991 = vxor.u32 %v1986, 2147483648
    %v1992 = vmul.f32 %v1990, 1.442695
    %v1993 = vpow.pop %v1992
    %v1994 = vmul.f32 %v1991, 1.442695
    %v1995 = vpow.pop %v1994
    %v1996 = vadd.f32 %v1993, 1.0
    %v1997 = vadd.f32 %v1995, 1.0
    %v1998 = vrcp.pop %v1996
    %v1999 = vmul.f32 1.0, %v1998
    %v2000 = vrcp.pop %v1997
    %v2001 = vmul.f32 1.0, %v2000
    %v2002 = vxor.u32 %v1983, 2147483648
    %v2003 = vxor.u32 %v1987, 2147483648
    %v2004 = vmul.f32 %v2002, 1.442695
    %v2005 = vpow.pop %v2004
    %v2006 = vmul.f32 %v2003, 1.442695
    %v2007 = vpow.pop %v2006
    %v2008 = vadd.f32 %v2005, 1.0
    %v2009 = vadd.f32 %v2007, 1.0
    %v2010 = vrcp.pop %v2008
    %v2011 = vmul.f32 1.0, %v2010
    %v2012 = vrcp.pop %v2009
    %v2013 = vmul.f32 1.0, %v2012
    %v2014 = vtanh.pop %v1984
    %v2015 = vtanh.pop %v1988
    %v2016 = vxor.u32 %v1985, 2147483648
    %v2017 = vxor.u32 %v1989, 2147483648
    %v2018 = vmul.f32 %v2016, 1.442695
    %v2019 = vpow.pop %v2018
    %v2020 = vmul.f32 %v2017, 1.442695
    %v2021 = vpow.pop %v2020
    %v2022 = vadd.f32 %v2019, 1.0
    %v2023 = vadd.f32 %v2021, 1.0
    %v2024 = vrcp.pop %v2022
    %v2025 = vmul.f32 1.0, %v2024
    %v2026 = vrcp.pop %v2023
    %v2027 = vmul.f32 1.0, %v2026
    %v2028 = vmul.f32 %v2011, %v1818
    %v2029 = vmul.f32 %v2013, %v1819
    %v2030 = vmul.f32 %v1999, %v2014
    %v2031 = vmul.f32 %v2001, %v2015
    %v2032 = vadd.f32 %v2028, %v2030
    %v2033 = vadd.f32 %v2029, %v2031
    %v2034 = vtanh.pop %v2032
    %v2035 = vtanh.pop %v2033
    %v2036 = vmul.f32 %v2025, %v2034
    %v2037 = vmul.f32 %v2027, %v2035
    %vm2038 = vcmp.gt.s32.totalorder %v580, 5
    %vm2039 = vcmp.gt.s32.totalorder %v581, 5
    %v2040 = vsel %vm2038, 1, 0
    %v2041 = vsel %vm2039, 1, 0
    %2042 = vset.pattern.permute.xlu0 0
    %2043 = vperm.xlu0 %2042, %v2040
    %v2044 = vpop.permute.xlu0 %2043
    %2045 = vset.pattern.permute.xlu0 0
    %2046 = vperm.xlu0 %2045, %v2041
    %v2047 = vpop.permute.xlu0 %2046
    %vm2048 = vcmp.eq.s32.totalorder %v2044, 1
    %vm2049 = vcmp.eq.s32.totalorder %v2047, 1
    %v2050 = vsel %vm2048, %v2036, %v1816
    %v2051 = vsel %vm2049, %v2037, %v1817
    %v2052 = vsel %vm2048, %v2032, %v1818
    %v2053 = vsel %vm2049, %v2033, %v1819
    %v2054 = vld [vmem:[#allocation2 + $0x180] sm:$0xff]
    %v2055 = vld [vmem:[#allocation2 + $0x188] sm:$0xff]
    %v2056 = vld [vmem:[#allocation2 + $0x190] sm:$0xff]
    %v2057 = vld [vmem:[#allocation2 + $0x198] sm:$0xff]
    %v2058 = vld [vmem:[#allocation2 + $0x1a0] sm:$0xff]
    %v2059 = vld [vmem:[#allocation2 + $0x1a8] sm:$0xff]
    %v2060 = vld [vmem:[#allocation2 + $0x1b0] sm:$0xff]
    %v2061 = vld [vmem:[#allocation2 + $0x1b8] sm:$0xff]
    %2062 = vmatprep.subr.mxu0 %v655
    %2063 = vmatpush1.msra.mxu0 %v654
    %2064 = vmatprep.subr.mxu0 %v651
    %2065 = vmatpush1.msra.mxu0 %v650
    %2066 = vmatprep.subr.mxu0 %v647
    %2067 = vmatpush1.msra.mxu0 %v646
    %2068 = vmatprep.subr.mxu0 %v643
    %2069 = vmatpush1.msra.mxu0 %v642
    %2070 = vmatprep.subr.mxu0 %v639
    %2071 = vmatpush1.msra.mxu0 %v638
    %2072 = vmatprep.subr.mxu0 %v635
    %2073 = vmatpush1.msra.mxu0 %v634
    %2074 = vmatprep.subr.mxu0 %v631
    %2075 = vmatpush1.msra.mxu0 %v630
    %2076 = vmatprep.subr.mxu0 %v627
    %2077 = vmatpush1.msra.mxu0 %v626
    %2078 = vmatprep.subr.mxu0 %v623
    %2079 = vmatpush1.msra.mxu0 %v622
    %2080 = vmatprep.subr.mxu0 %v619
    %2081 = vmatpush1.msra.mxu0 %v618
    %2082 = vmatprep.subr.mxu0 %v615
    %2083 = vmatpush1.msra.mxu0 %v614
    %2084 = vmatprep.subr.mxu0 %v611
    %2085 = vmatpush1.msra.mxu0 %v610
    %2086 = vmatprep.subr.mxu0 %v607
    %2087 = vmatpush1.msra.mxu0 %v606
    %2088 = vmatprep.subr.mxu0 %v603
    %2089 = vmatpush1.msra.mxu0 %v602
    %2090 = vmatprep.subr.mxu0 %v599
    %2091 = vmatpush1.msra.mxu0 %v598
    %2092 = vmatprep.subr.mxu0 %v595
    %2093 = vmatpush1.msra.mxu0 %v594
    %2094 = vmatprep.subr.mxu0 0.0
    %2095 = vmatpush2.msra.mxu0 0.0
    %2096 = vmatprep.subr.mxu0 0.0
    %2097 = vmatpush2.msra.mxu0 0.0
    %2098 = vmatprep.subr.mxu0 0.0
    %2099 = vmatpush2.msra.mxu0 0.0
    %2100 = vmatprep.subr.mxu0 0.0
    %2101 = vmatpush2.msra.mxu0 0.0
    %2102 = vmatprep.subr.mxu0 0.0
    %2103 = vmatpush2.msra.mxu0 0.0
    %2104 = vmatprep.subr.mxu0 0.0
    %2105 = vmatpush2.msra.mxu0 0.0
    %2106 = vmatprep.subr.mxu0 0.0
    %2107 = vmatpush2.msra.mxu0 0.0
    %2108 = vmatprep.subr.mxu0 0.0
    %2109 = vmatpush2.msra.mxu0 0.0
    %2110 = vmatprep.subr.mxu0 0.0
    %2111 = vmatpush2.msra.mxu0 0.0
    %2112 = vmatprep.subr.mxu0 0.0
    %2113 = vmatpush2.msra.mxu0 0.0
    %2114 = vmatprep.subr.mxu0 0.0
    %2115 = vmatpush2.msra.mxu0 0.0
    %2116 = vmatprep.subr.mxu0 0.0
    %2117 = vmatpush2.msra.mxu0 0.0
    %2118 = vmatprep.subr.mxu0 0.0
    %2119 = vmatpush2.msra.mxu0 0.0
    %2120 = vmatprep.subr.mxu0 0.0
    %2121 = vmatpush2.msra.mxu0 0.0
    %2122 = vmatprep.subr.mxu0 0.0
    %2123 = vmatpush2.msra.mxu0 0.0
    %2124 = vmatprep.subr.mxu0 0.0
    %2125 = vmatpush2.msra.mxu0 0.0
    %2126 = vmatprep.mubr.f32.mxu0 0.0
    %2127 = vmatmul.mubr.f32.gmra.mxu0 %v2050
    %v2128 = vpop.f32.mrf.mxu0
    %v2129 = vadd.f32 0.0, %v2128
    %v2130 = vpop.f32.mrf.mxu0
    %v2131 = vadd.f32 0.0, %v2130
    %2132 = vmatprep.mubr.f32.mxu0 0.0
    %2133 = vmatmul.mubr.f32.gmra.mxu0 %v2051
    %v2134 = vpop.f32.mrf.mxu0
    %v2135 = vadd.f32 0.0, %v2134
    %v2136 = vpop.f32.mrf.mxu0
    %v2137 = vadd.f32 0.0, %v2136
    %2138 = vdwg.mxu0
    %2139 = vmatprep.subr.mxu0 %v657
    %2140 = vmatpush1.msra.mxu0 %v656
    %2141 = vmatprep.subr.mxu0 %v653
    %2142 = vmatpush1.msra.mxu0 %v652
    %2143 = vmatprep.subr.mxu0 %v649
    %2144 = vmatpush1.msra.mxu0 %v648
    %2145 = vmatprep.subr.mxu0 %v645
    %2146 = vmatpush1.msra.mxu0 %v644
    %2147 = vmatprep.subr.mxu0 %v641
    %2148 = vmatpush1.msra.mxu0 %v640
    %2149 = vmatprep.subr.mxu0 %v637
    %2150 = vmatpush1.msra.mxu0 %v636
    %2151 = vmatprep.subr.mxu0 %v633
    %2152 = vmatpush1.msra.mxu0 %v632
    %2153 = vmatprep.subr.mxu0 %v629
    %2154 = vmatpush1.msra.mxu0 %v628
    %2155 = vmatprep.subr.mxu0 %v625
    %2156 = vmatpush1.msra.mxu0 %v624
    %2157 = vmatprep.subr.mxu0 %v621
    %2158 = vmatpush1.msra.mxu0 %v620
    %2159 = vmatprep.subr.mxu0 %v617
    %2160 = vmatpush1.msra.mxu0 %v616
    %2161 = vmatprep.subr.mxu0 %v613
    %2162 = vmatpush1.msra.mxu0 %v612
    %2163 = vmatprep.subr.mxu0 %v609
    %2164 = vmatpush1.msra.mxu0 %v608
    %2165 = vmatprep.subr.mxu0 %v605
    %2166 = vmatpush1.msra.mxu0 %v604
    %2167 = vmatprep.subr.mxu0 %v601
    %2168 = vmatpush1.msra.mxu0 %v600
    %2169 = vmatprep.subr.mxu0 %v597
    %2170 = vmatpush1.msra.mxu0 %v596
    %2171 = vmatprep.subr.mxu0 0.0
    %2172 = vmatpush2.msra.mxu0 0.0
    %2173 = vmatprep.subr.mxu0 0.0
    %2174 = vmatpush2.msra.mxu0 0.0
    %2175 = vmatprep.subr.mxu0 0.0
    %2176 = vmatpush2.msra.mxu0 0.0
    %2177 = vmatprep.subr.mxu0 0.0
    %2178 = vmatpush2.msra.mxu0 0.0
    %2179 = vmatprep.subr.mxu0 0.0
    %2180 = vmatpush2.msra.mxu0 0.0
    %2181 = vmatprep.subr.mxu0 0.0
    %2182 = vmatpush2.msra.mxu0 0.0
    %2183 = vmatprep.subr.mxu0 0.0
    %2184 = vmatpush2.msra.mxu0 0.0
    %2185 = vmatprep.subr.mxu0 0.0
    %2186 = vmatpush2.msra.mxu0 0.0
    %2187 = vmatprep.subr.mxu0 0.0
    %2188 = vmatpush2.msra.mxu0 0.0
    %2189 = vmatprep.subr.mxu0 0.0
    %2190 = vmatpush2.msra.mxu0 0.0
    %2191 = vmatprep.subr.mxu0 0.0
    %2192 = vmatpush2.msra.mxu0 0.0
    %2193 = vmatprep.subr.mxu0 0.0
    %2194 = vmatpush2.msra.mxu0 0.0
    %2195 = vmatprep.subr.mxu0 0.0
    %2196 = vmatpush2.msra.mxu0 0.0
    %2197 = vmatprep.subr.mxu0 0.0
    %2198 = vmatpush2.msra.mxu0 0.0
    %2199 = vmatprep.subr.mxu0 0.0
    %2200 = vmatpush2.msra.mxu0 0.0
    %2201 = vmatprep.subr.mxu0 0.0
    %2202 = vmatpush2.msra.mxu0 0.0
    %2203 = vmatprep.mubr.f32.mxu0 0.0
    %2204 = vmatmul.mubr.f32.gmra.mxu0 %v2050
    %v2205 = vpop.f32.mrf.mxu0
    %v2206 = vadd.f32 0.0, %v2205
    %v2207 = vpop.f32.mrf.mxu0
    %v2208 = vadd.f32 0.0, %v2207
    %2209 = vmatprep.mubr.f32.mxu0 0.0
    %2210 = vmatmul.mubr.f32.gmra.mxu0 %v2051
    %v2211 = vpop.f32.mrf.mxu0
    %v2212 = vadd.f32 0.0, %v2211
    %v2213 = vpop.f32.mrf.mxu0
    %v2214 = vadd.f32 0.0, %v2213
    %2215 = vdwg.mxu0
    %v2216 = vadd.f32 %v2054, %v2129
    %v2217 = vadd.f32 %v2055, %v2131
    %v2218 = vadd.f32 %v2056, %v2206
    %v2219 = vadd.f32 %v2057, %v2208
    %v2220 = vadd.f32 %v2058, %v2135
    %v2221 = vadd.f32 %v2059, %v2137
    %v2222 = vadd.f32 %v2060, %v2212
    %v2223 = vadd.f32 %v2061, %v2214
    %v2224 = vxor.u32 %v2216, 2147483648
    %v2225 = vxor.u32 %v2220, 2147483648
    %v2226 = vmul.f32 %v2224, 1.442695
    %v2227 = vpow.pop %v2226
    %v2228 = vmul.f32 %v2225, 1.442695
    %v2229 = vpow.pop %v2228
    %v2230 = vadd.f32 %v2227, 1.0
    %v2231 = vadd.f32 %v2229, 1.0
    %v2232 = vrcp.pop %v2230
    %v2233 = vmul.f32 1.0, %v2232
    %v2234 = vrcp.pop %v2231
    %v2235 = vmul.f32 1.0, %v2234
    %v2236 = vxor.u32 %v2217, 2147483648
    %v2237 = vxor.u32 %v2221, 2147483648
    %v2238 = vmul.f32 %v2236, 1.442695
    %v2239 = vpow.pop %v2238
    %v2240 = vmul.f32 %v2237, 1.442695
    %v2241 = vpow.pop %v2240
    %v2242 = vadd.f32 %v2239, 1.0
    %v2243 = vadd.f32 %v2241, 1.0
    %v2244 = vrcp.pop %v2242
    %v2245 = vmul.f32 1.0, %v2244
    %v2246 = vrcp.pop %v2243
    %v2247 = vmul.f32 1.0, %v2246
    %v2248 = vtanh.pop %v2218
    %v2249 = vtanh.pop %v2222
    %v2250 = vxor.u32 %v2219, 2147483648
    %v2251 = vxor.u32 %v2223, 2147483648
    %v2252 = vmul.f32 %v2250, 1.442695
    %v2253 = vpow.pop %v2252
    %v2254 = vmul.f32 %v2251, 1.442695
    %v2255 = vpow.pop %v2254
    %v2256 = vadd.f32 %v2253, 1.0
    %v2257 = vadd.f32 %v2255, 1.0
    %v2258 = vrcp.pop %v2256
    %v2259 = vmul.f32 1.0, %v2258
    %v2260 = vrcp.pop %v2257
    %v2261 = vmul.f32 1.0, %v2260
    %v2262 = vmul.f32 %v2245, %v2052
    %v2263 = vmul.f32 %v2247, %v2053
    %v2264 = vmul.f32 %v2233, %v2248
    %v2265 = vmul.f32 %v2235, %v2249
    %v2266 = vadd.f32 %v2262, %v2264
    %v2267 = vadd.f32 %v2263, %v2265
    %v2268 = vtanh.pop %v2266
    %v2269 = vtanh.pop %v2267
    %v2270 = vmul.f32 %v2259, %v2268
    %v2271 = vmul.f32 %v2261, %v2269
    %vm2272 = vcmp.gt.s32.totalorder %v580, 6
    %vm2273 = vcmp.gt.s32.totalorder %v581, 6
    %v2274 = vsel %vm2272, 1, 0
    %v2275 = vsel %vm2273, 1, 0
    %2276 = vset.pattern.permute.xlu0 0
    %2277 = vperm.xlu0 %2276, %v2274
    %v2278 = vpop.permute.xlu0 %2277
    %2279 = vset.pattern.permute.xlu0 0
    %2280 = vperm.xlu0 %2279, %v2275
    %v2281 = vpop.permute.xlu0 %2280
    %vm2282 = vcmp.eq.s32.totalorder %v2278, 1
    %vm2283 = vcmp.eq.s32.totalorder %v2281, 1
    %v2284 = vsel %vm2282, %v2270, %v2050
    %v2285 = vsel %vm2283, %v2271, %v2051
    %v2286 = vsel %vm2282, %v2266, %v2052
    %v2287 = vsel %vm2283, %v2267, %v2053
    %v2288 = vld [vmem:[#allocation2 + $0x1c0] sm:$0xff]
    %v2289 = vld [vmem:[#allocation2 + $0x1c8] sm:$0xff]
    %v2290 = vld [vmem:[#allocation2 + $0x1d0] sm:$0xff]
    %v2291 = vld [vmem:[#allocation2 + $0x1d8] sm:$0xff]
    %v2292 = vld [vmem:[#allocation2 + $0x1e0] sm:$0xff]
    %v2293 = vld [vmem:[#allocation2 + $0x1e8] sm:$0xff]
    %v2294 = vld [vmem:[#allocation2 + $0x1f0] sm:$0xff]
    %v2295 = vld [vmem:[#allocation2 + $0x1f8] sm:$0xff]
    %2296 = vmatprep.subr.mxu0 %v655
    %2297 = vmatpush1.msra.mxu0 %v654
    %2298 = vmatprep.subr.mxu0 %v651
    %2299 = vmatpush1.msra.mxu0 %v650
    %2300 = vmatprep.subr.mxu0 %v647
    %2301 = vmatpush1.msra.mxu0 %v646
    %2302 = vmatprep.subr.mxu0 %v643
    %2303 = vmatpush1.msra.mxu0 %v642
    %2304 = vmatprep.subr.mxu0 %v639
    %2305 = vmatpush1.msra.mxu0 %v638
    %2306 = vmatprep.subr.mxu0 %v635
    %2307 = vmatpush1.msra.mxu0 %v634
    %2308 = vmatprep.subr.mxu0 %v631
    %2309 = vmatpush1.msra.mxu0 %v630
    %2310 = vmatprep.subr.mxu0 %v627
    %2311 = vmatpush1.msra.mxu0 %v626
    %2312 = vmatprep.subr.mxu0 %v623
    %2313 = vmatpush1.msra.mxu0 %v622
    %2314 = vmatprep.subr.mxu0 %v619
    %2315 = vmatpush1.msra.mxu0 %v618
    %2316 = vmatprep.subr.mxu0 %v615
    %2317 = vmatpush1.msra.mxu0 %v614
    %2318 = vmatprep.subr.mxu0 %v611
    %2319 = vmatpush1.msra.mxu0 %v610
    %2320 = vmatprep.subr.mxu0 %v607
    %2321 = vmatpush1.msra.mxu0 %v606
    %2322 = vmatprep.subr.mxu0 %v603
    %2323 = vmatpush1.msra.mxu0 %v602
    %2324 = vmatprep.subr.mxu0 %v599
    %2325 = vmatpush1.msra.mxu0 %v598
    %2326 = vmatprep.subr.mxu0 %v595
    %2327 = vmatpush1.msra.mxu0 %v594
    %2328 = vmatprep.subr.mxu0 0.0
    %2329 = vmatpush2.msra.mxu0 0.0
    %2330 = vmatprep.subr.mxu0 0.0
    %2331 = vmatpush2.msra.mxu0 0.0
    %2332 = vmatprep.subr.mxu0 0.0
    %2333 = vmatpush2.msra.mxu0 0.0
    %2334 = vmatprep.subr.mxu0 0.0
    %2335 = vmatpush2.msra.mxu0 0.0
    %2336 = vmatprep.subr.mxu0 0.0
    %2337 = vmatpush2.msra.mxu0 0.0
    %2338 = vmatprep.subr.mxu0 0.0
    %2339 = vmatpush2.msra.mxu0 0.0
    %2340 = vmatprep.subr.mxu0 0.0
    %2341 = vmatpush2.msra.mxu0 0.0
    %2342 = vmatprep.subr.mxu0 0.0
    %2343 = vmatpush2.msra.mxu0 0.0
    %2344 = vmatprep.subr.mxu0 0.0
    %2345 = vmatpush2.msra.mxu0 0.0
    %2346 = vmatprep.subr.mxu0 0.0
    %2347 = vmatpush2.msra.mxu0 0.0
    %2348 = vmatprep.subr.mxu0 0.0
    %2349 = vmatpush2.msra.mxu0 0.0
    %2350 = vmatprep.subr.mxu0 0.0
    %2351 = vmatpush2.msra.mxu0 0.0
    %2352 = vmatprep.subr.mxu0 0.0
    %2353 = vmatpush2.msra.mxu0 0.0
    %2354 = vmatprep.subr.mxu0 0.0
    %2355 = vmatpush2.msra.mxu0 0.0
    %2356 = vmatprep.subr.mxu0 0.0
    %2357 = vmatpush2.msra.mxu0 0.0
    %2358 = vmatprep.subr.mxu0 0.0
    %2359 = vmatpush2.msra.mxu0 0.0
    %2360 = vmatprep.mubr.f32.mxu0 0.0
    %2361 = vmatmul.mubr.f32.gmra.mxu0 %v2284
    %v2362 = vpop.f32.mrf.mxu0
    %v2363 = vadd.f32 0.0, %v2362
    %v2364 = vpop.f32.mrf.mxu0
    %v2365 = vadd.f32 0.0, %v2364
    %2366 = vmatprep.mubr.f32.mxu0 0.0
    %2367 = vmatmul.mubr.f32.gmra.mxu0 %v2285
    %v2368 = vpop.f32.mrf.mxu0
    %v2369 = vadd.f32 0.0, %v2368
    %v2370 = vpop.f32.mrf.mxu0
    %v2371 = vadd.f32 0.0, %v2370
    %2372 = vdwg.mxu0
    %2373 = vmatprep.subr.mxu0 %v657
    %2374 = vmatpush1.msra.mxu0 %v656
    %2375 = vmatprep.subr.mxu0 %v653
    %2376 = vmatpush1.msra.mxu0 %v652
    %2377 = vmatprep.subr.mxu0 %v649
    %2378 = vmatpush1.msra.mxu0 %v648
    %2379 = vmatprep.subr.mxu0 %v645
    %2380 = vmatpush1.msra.mxu0 %v644
    %2381 = vmatprep.subr.mxu0 %v641
    %2382 = vmatpush1.msra.mxu0 %v640
    %2383 = vmatprep.subr.mxu0 %v637
    %2384 = vmatpush1.msra.mxu0 %v636
    %2385 = vmatprep.subr.mxu0 %v633
    %2386 = vmatpush1.msra.mxu0 %v632
    %2387 = vmatprep.subr.mxu0 %v629
    %2388 = vmatpush1.msra.mxu0 %v628
    %2389 = vmatprep.subr.mxu0 %v625
    %2390 = vmatpush1.msra.mxu0 %v624
    %2391 = vmatprep.subr.mxu0 %v621
    %2392 = vmatpush1.msra.mxu0 %v620
    %2393 = vmatprep.subr.mxu0 %v617
    %2394 = vmatpush1.msra.mxu0 %v616
    %2395 = vmatprep.subr.mxu0 %v613
    %2396 = vmatpush1.msra.mxu0 %v612
    %2397 = vmatprep.subr.mxu0 %v609
    %2398 = vmatpush1.msra.mxu0 %v608
    %2399 = vmatprep.subr.mxu0 %v605
    %2400 = vmatpush1.msra.mxu0 %v604
    %2401 = vmatprep.subr.mxu0 %v601
    %2402 = vmatpush1.msra.mxu0 %v600
    %2403 = vmatprep.subr.mxu0 %v597
    %2404 = vmatpush1.msra.mxu0 %v596
    %2405 = vmatprep.subr.mxu0 0.0
    %2406 = vmatpush2.msra.mxu0 0.0
    %2407 = vmatprep.subr.mxu0 0.0
    %2408 = vmatpush2.msra.mxu0 0.0
    %2409 = vmatprep.subr.mxu0 0.0
    %2410 = vmatpush2.msra.mxu0 0.0
    %2411 = vmatprep.subr.mxu0 0.0
    %2412 = vmatpush2.msra.mxu0 0.0
    %2413 = vmatprep.subr.mxu0 0.0
    %2414 = vmatpush2.msra.mxu0 0.0
    %2415 = vmatprep.subr.mxu0 0.0
    %2416 = vmatpush2.msra.mxu0 0.0
    %2417 = vmatprep.subr.mxu0 0.0
    %2418 = vmatpush2.msra.mxu0 0.0
    %2419 = vmatprep.subr.mxu0 0.0
    %2420 = vmatpush2.msra.mxu0 0.0
    %2421 = vmatprep.subr.mxu0 0.0
    %2422 = vmatpush2.msra.mxu0 0.0
    %2423 = vmatprep.subr.mxu0 0.0
    %2424 = vmatpush2.msra.mxu0 0.0
    %2425 = vmatprep.subr.mxu0 0.0
    %2426 = vmatpush2.msra.mxu0 0.0
    %2427 = vmatprep.subr.mxu0 0.0
    %2428 = vmatpush2.msra.mxu0 0.0
    %2429 = vmatprep.subr.mxu0 0.0
    %2430 = vmatpush2.msra.mxu0 0.0
    %2431 = vmatprep.subr.mxu0 0.0
    %2432 = vmatpush2.msra.mxu0 0.0
    %2433 = vmatprep.subr.mxu0 0.0
    %2434 = vmatpush2.msra.mxu0 0.0
    %2435 = vmatprep.subr.mxu0 0.0
    %2436 = vmatpush2.msra.mxu0 0.0
    %2437 = vmatprep.mubr.f32.mxu0 0.0
    %2438 = vmatmul.mubr.f32.gmra.mxu0 %v2284
    %v2439 = vpop.f32.mrf.mxu0
    %v2440 = vadd.f32 0.0, %v2439
    %v2441 = vpop.f32.mrf.mxu0
    %v2442 = vadd.f32 0.0, %v2441
    %2443 = vmatprep.mubr.f32.mxu0 0.0
    %2444 = vmatmul.mubr.f32.gmra.mxu0 %v2285
    %v2445 = vpop.f32.mrf.mxu0
    %v2446 = vadd.f32 0.0, %v2445
    %v2447 = vpop.f32.mrf.mxu0
    %v2448 = vadd.f32 0.0, %v2447
    %2449 = vdwg.mxu0
    %v2450 = vadd.f32 %v2288, %v2363
    %v2451 = vadd.f32 %v2289, %v2365
    %v2452 = vadd.f32 %v2290, %v2440
    %v2453 = vadd.f32 %v2291, %v2442
    %v2454 = vadd.f32 %v2292, %v2369
    %v2455 = vadd.f32 %v2293, %v2371
    %v2456 = vadd.f32 %v2294, %v2446
    %v2457 = vadd.f32 %v2295, %v2448
    %v2458 = vxor.u32 %v2450, 2147483648
    %v2459 = vxor.u32 %v2454, 2147483648
    %v2460 = vmul.f32 %v2458, 1.442695
    %v2461 = vpow.pop %v2460
    %v2462 = vmul.f32 %v2459, 1.442695
    %v2463 = vpow.pop %v2462
    %v2464 = vadd.f32 %v2461, 1.0
    %v2465 = vadd.f32 %v2463, 1.0
    %v2466 = vrcp.pop %v2464
    %v2467 = vmul.f32 1.0, %v2466
    %v2468 = vrcp.pop %v2465
    %v2469 = vmul.f32 1.0, %v2468
    %v2470 = vxor.u32 %v2451, 2147483648
    %v2471 = vxor.u32 %v2455, 2147483648
    %v2472 = vmul.f32 %v2470, 1.442695
    %v2473 = vpow.pop %v2472
    %v2474 = vmul.f32 %v2471, 1.442695
    %v2475 = vpow.pop %v2474
    %v2476 = vadd.f32 %v2473, 1.0
    %v2477 = vadd.f32 %v2475, 1.0
    %v2478 = vrcp.pop %v2476
    %v2479 = vmul.f32 1.0, %v2478
    %v2480 = vrcp.pop %v2477
    %v2481 = vmul.f32 1.0, %v2480
    %v2482 = vtanh.pop %v2452
    %v2483 = vtanh.pop %v2456
    %v2484 = vxor.u32 %v2453, 2147483648
    %v2485 = vxor.u32 %v2457, 2147483648
    %v2486 = vmul.f32 %v2484, 1.442695
    %v2487 = vpow.pop %v2486
    %v2488 = vmul.f32 %v2485, 1.442695
    %v2489 = vpow.pop %v2488
    %v2490 = vadd.f32 %v2487, 1.0
    %v2491 = vadd.f32 %v2489, 1.0
    %v2492 = vrcp.pop %v2490
    %v2493 = vmul.f32 1.0, %v2492
    %v2494 = vrcp.pop %v2491
    %v2495 = vmul.f32 1.0, %v2494
    %v2496 = vmul.f32 %v2479, %v2286
    %v2497 = vmul.f32 %v2481, %v2287
    %v2498 = vmul.f32 %v2467, %v2482
    %v2499 = vmul.f32 %v2469, %v2483
    %v2500 = vadd.f32 %v2496, %v2498
    %v2501 = vadd.f32 %v2497, %v2499
    %v2502 = vtanh.pop %v2500
    %v2503 = vtanh.pop %v2501
    %v2504 = vmul.f32 %v2493, %v2502
    %v2505 = vmul.f32 %v2495, %v2503
    %vm2506 = vcmp.gt.s32.totalorder %v580, 7
    %vm2507 = vcmp.gt.s32.totalorder %v581, 7
    %v2508 = vsel %vm2506, 1, 0
    %v2509 = vsel %vm2507, 1, 0
    %2510 = vset.pattern.permute.xlu0 0
    %2511 = vperm.xlu0 %2510, %v2508
    %v2512 = vpop.permute.xlu0 %2511
    %2513 = vset.pattern.permute.xlu0 0
    %2514 = vperm.xlu0 %2513, %v2509
    %v2515 = vpop.permute.xlu0 %2514
    %vm2516 = vcmp.eq.s32.totalorder %v2512, 1
    %vm2517 = vcmp.eq.s32.totalorder %v2515, 1
    %v2518 = vsel %vm2516, %v2504, %v2284
    %v2519 = vsel %vm2517, %v2505, %v2285
    %v2520 = vld [vmem:[%s8] sm:$0xff]
    %v2521 = vld [vmem:[%s8 + $0x8] sm:$0xff]
    %v2522 = vld [vmem:[%s8 + $0x10] sm:$0xff]
    %v2523 = vld [vmem:[%s8 + $0x18] sm:$0xff]
    %v2524 = vld [vmem:[%s8 + $0x20] sm:$0xff]
    %v2525 = vld [vmem:[%s8 + $0x28] sm:$0xff]
    %v2526 = vld [vmem:[%s8 + $0x30] sm:$0xff]
    %v2527 = vld [vmem:[%s8 + $0x38] sm:$0xff]
    %v2528 = vld [vmem:[%s8 + $0x40] sm:$0xff]
    %v2529 = vld [vmem:[%s8 + $0x48] sm:$0xff]
    %v2530 = vld [vmem:[%s8 + $0x50] sm:$0xff]
    %v2531 = vld [vmem:[%s8 + $0x58] sm:$0xff]
    %v2532 = vld [vmem:[%s8 + $0x60] sm:$0xff]
    %v2533 = vld [vmem:[%s8 + $0x68] sm:$0xff]
    %v2534 = vld [vmem:[%s8 + $0x70] sm:$0xff]
    %v2535 = vld [vmem:[%s8 + $0x78] sm:$0xff]
    %v2536 = vld [vmem:[%s7] sm:$0xff]
    %v2537 = vld [vmem:[%s7 + $0x8] sm:$0xff]
    %v2538 = vld [vmem:[%s9] sm:$0xff]
    %vm2539 = vcmask 64512
    %v2541 = vsel %vm2539, %v2536, 0
    %v2544 = vsel %vm2539, %v2537, 0
    %2546 = vmatprep.subr.mxu0 0.0
    %2547 = vmatpush1.msra.mxu0 0.0
    %2548 = vmatprep.subr.mxu0 0.0
    %2549 = vmatpush1.msra.mxu0 0.0
    %2550 = vmatprep.subr.mxu0 0.0
    %2551 = vmatpush1.msra.mxu0 0.0
    %2552 = vmatprep.subr.mxu0 0.0
    %2553 = vmatpush1.msra.mxu0 0.0
    %2554 = vmatprep.subr.mxu0 0.0
    %2555 = vmatpush1.msra.mxu0 0.0
    %2556 = vmatprep.subr.mxu0 0.0
    %2557 = vmatpush1.msra.mxu0 0.0
    %2558 = vmatprep.subr.mxu0 0.0
    %2559 = vmatpush1.msra.mxu0 0.0
    %2560 = vmatprep.subr.mxu0 0.0
    %2561 = vmatpush1.msra.mxu0 0.0
    %2562 = vmatprep.subr.mxu0 0.0
    %2563 = vmatpush1.msra.mxu0 0.0
    %2564 = vmatprep.subr.mxu0 0.0
    %2565 = vmatpush1.msra.mxu0 0.0
    %2566 = vmatprep.subr.mxu0 0.0
    %2567 = vmatpush1.msra.mxu0 0.0
    %2568 = vmatprep.subr.mxu0 0.0
    %2569 = vmatpush1.msra.mxu0 0.0
    %2570 = vmatprep.subr.mxu0 0.0
    %2571 = vmatpush1.msra.mxu0 0.0
    %2572 = vmatprep.subr.mxu0 0.0
    %2573 = vmatpush1.msra.mxu0 0.0
    %2574 = vmatprep.subr.mxu0 0.0
    %2575 = vmatpush1.msra.mxu0 0.0
    %2576 = vmatprep.subr.mxu0 0.0
    %2577 = vmatpush1.msra.mxu0 %v2538
    %2578 = vmatprep.subr.mxu0 0.0
    %2579 = vmatpush2.msra.mxu0 0.0
    %2580 = vmatprep.subr.mxu0 0.0
    %2581 = vmatpush2.msra.mxu0 0.0
    %2582 = vmatprep.subr.mxu0 0.0
    %2583 = vmatpush2.msra.mxu0 0.0
    %2584 = vmatprep.subr.mxu0 0.0
    %2585 = vmatpush2.msra.mxu0 0.0
    %2586 = vmatprep.subr.mxu0 0.0
    %2587 = vmatpush2.msra.mxu0 0.0
    %2588 = vmatprep.subr.mxu0 0.0
    %2589 = vmatpush2.msra.mxu0 0.0
    %2590 = vmatprep.subr.mxu0 0.0
    %2591 = vmatpush2.msra.mxu0 0.0
    %2592 = vmatprep.subr.mxu0 0.0
    %2593 = vmatpush2.msra.mxu0 0.0
    %2594 = vmatprep.subr.mxu0 0.0
    %2595 = vmatpush2.msra.mxu0 0.0
    %2596 = vmatprep.subr.mxu0 0.0
    %2597 = vmatpush2.msra.mxu0 0.0
    %2598 = vmatprep.subr.mxu0 0.0
    %2599 = vmatpush2.msra.mxu0 0.0
    %2600 = vmatprep.subr.mxu0 0.0
    %2601 = vmatpush2.msra.mxu0 0.0
    %2602 = vmatprep.subr.mxu0 0.0
    %2603 = vmatpush2.msra.mxu0 0.0
    %2604 = vmatprep.subr.mxu0 0.0
    %2605 = vmatpush2.msra.mxu0 0.0
    %2606 = vmatprep.subr.mxu0 0.0
    %2607 = vmatpush2.msra.mxu0 0.0
    %2608 = vmatprep.subr.mxu0 0.0
    %2609 = vmatpush2.msra.mxu0 0.0
    %2610 = vmatprep.mubr.f32.mxu0 0.0
    %2611 = vmatmul.mubr.f32.gmra.mxu0 %v2541
    %v2612 = vpop.f32.mrf.mxu0
    %v2613 = vadd.f32 0.0, %v2612
    %v2614 = vpop.f32.mrf.mxu0
    %2615 = vmatprep.mubr.f32.mxu0 0.0
    %2616 = vmatmul.mubr.f32.gmra.mxu0 %v2544
    %v2617 = vpop.f32.mrf.mxu0
    %v2618 = vadd.f32 0.0, %v2617
    %v2619 = vpop.f32.mrf.mxu0
    %2620 = vdwg.mxu0
    %2621 = vmatprep.subr.mxu0 0.0
    %2622 = vmatpush1.msra.mxu0 %v2535
    %2623 = vmatprep.subr.mxu0 0.0
    %2624 = vmatpush1.msra.mxu0 %v2534
    %2625 = vmatprep.subr.mxu0 0.0
    %2626 = vmatpush1.msra.mxu0 %v2533
    %2627 = vmatprep.subr.mxu0 0.0
    %2628 = vmatpush1.msra.mxu0 %v2532
    %2629 = vmatprep.subr.mxu0 0.0
    %2630 = vmatpush1.msra.mxu0 %v2531
    %2631 = vmatprep.subr.mxu0 0.0
    %2632 = vmatpush1.msra.mxu0 %v2530
    %2633 = vmatprep.subr.mxu0 0.0
    %2634 = vmatpush1.msra.mxu0 %v2529
    %2635 = vmatprep.subr.mxu0 0.0
    %2636 = vmatpush1.msra.mxu0 %v2528
    %2637 = vmatprep.subr.mxu0 0.0
    %2638 = vmatpush1.msra.mxu0 %v2527
    %2639 = vmatprep.subr.mxu0 0.0
    %2640 = vmatpush1.msra.mxu0 %v2526
    %2641 = vmatprep.subr.mxu0 0.0
    %2642 = vmatpush1.msra.mxu0 %v2525
    %2643 = vmatprep.subr.mxu0 0.0
    %2644 = vmatpush1.msra.mxu0 %v2524
    %2645 = vmatprep.subr.mxu0 0.0
    %2646 = vmatpush1.msra.mxu0 %v2523
    %2647 = vmatprep.subr.mxu0 0.0
    %2648 = vmatpush1.msra.mxu0 %v2522
    %2649 = vmatprep.subr.mxu0 0.0
    %2650 = vmatpush1.msra.mxu0 %v2521
    %2651 = vmatprep.subr.mxu0 0.0
    %2652 = vmatpush1.msra.mxu0 %v2520
    %2653 = vmatprep.subr.mxu0 0.0
    %2654 = vmatpush2.msra.mxu0 0.0
    %2655 = vmatprep.subr.mxu0 0.0
    %2656 = vmatpush2.msra.mxu0 0.0
    %2657 = vmatprep.subr.mxu0 0.0
    %2658 = vmatpush2.msra.mxu0 0.0
    %2659 = vmatprep.subr.mxu0 0.0
    %2660 = vmatpush2.msra.mxu0 0.0
    %2661 = vmatprep.subr.mxu0 0.0
    %2662 = vmatpush2.msra.mxu0 0.0
    %2663 = vmatprep.subr.mxu0 0.0
    %2664 = vmatpush2.msra.mxu0 0.0
    %2665 = vmatprep.subr.mxu0 0.0
    %2666 = vmatpush2.msra.mxu0 0.0
    %2667 = vmatprep.subr.mxu0 0.0
    %2668 = vmatpush2.msra.mxu0 0.0
    %2669 = vmatprep.subr.mxu0 0.0
    %2670 = vmatpush2.msra.mxu0 0.0
    %2671 = vmatprep.subr.mxu0 0.0
    %2672 = vmatpush2.msra.mxu0 0.0
    %2673 = vmatprep.subr.mxu0 0.0
    %2674 = vmatpush2.msra.mxu0 0.0
    %2675 = vmatprep.subr.mxu0 0.0
    %2676 = vmatpush2.msra.mxu0 0.0
    %2677 = vmatprep.subr.mxu0 0.0
    %2678 = vmatpush2.msra.mxu0 0.0
    %2679 = vmatprep.subr.mxu0 0.0
    %2680 = vmatpush2.msra.mxu0 0.0
    %2681 = vmatprep.subr.mxu0 0.0
    %2682 = vmatpush2.msra.mxu0 0.0
    %2683 = vmatprep.subr.mxu0 0.0
    %2684 = vmatpush2.msra.mxu0 0.0
    %2685 = vmatprep.mubr.f32.mxu0 0.0
    %2686 = vmatmul.mubr.f32.gmra.mxu0 %v2518
    %v2687 = vpop.f32.mrf.mxu0
    %v2688 = vadd.f32 %v2613, %v2687
    %v2689 = vpop.f32.mrf.mxu0
    %2690 = vmatprep.mubr.f32.mxu0 0.0
    %2691 = vmatmul.mubr.f32.gmra.mxu0 %v2519
    %v2692 = vpop.f32.mrf.mxu0
    %v2693 = vadd.f32 %v2618, %v2692
    %v2694 = vpop.f32.mrf.mxu0
    %2695 = vdwg.mxu0
    %v2696 = vld [vmem:[%s10] sm:$0x1]
    %v2698 = vlaneseq
    %v2699 = vshrl.u32 %v2698, 7
    %v2700 = vsub.s32 0, %v2699
    %v2701 = vrot.slane %v2696, %v2700
    %v2703 = vadd.f32 %v2688, %v2701
    %v2704 = vadd.f32 %v2693, %v2701
    %v2705 = vmax.f32 %v2703, 0.0
    %v2706 = vmax.f32 %v2704, 0.0
    %v2707 = vld [vmem:[%s11] sm:$0x1]
    %v2709 = vlaneseq
    %v2710 = vshrl.u32 %v2709, 7
    %v2711 = vsub.s32 0, %v2710
    %v2712 = vrot.slane %v2707, %v2711
    %v2714 = vmul.f32 %v2705, %v2712
    %v2715 = vmul.f32 %v2706, %v2712
    %2716 = vadd.xlane.f32.xlu0 %v2714
    %v2717 = vpop.xlane.xlu0 %2716
    %2718 = vadd.xlane.f32.xlu0 %v2715
    %v2719 = vpop.xlane.xlu0 %2718
    %v2720 = vld [vmem:[#allocation3] sm:$0x1]
    %v2722 = vlaneseq
    %v2723 = vshrl.u32 %v2722, 7
    %v2724 = vsub.s32 0, %v2723
    %v2725 = vrot.slane %v2720, %v2724
    %v2727 = vadd.f32 %v2717, %v2725
    %v2728 = vadd.f32 %v2719, %v2725
    %vm2729 = vcmask 7168
    %2730 = vst.msk [vmem:[%s13] sm:$0xff] %vm2729, %v2727
    %2731 = vst.msk [vmem:[%s13 + $0x8] sm:$0xff] %vm2729, %v2728
    // Predicated region
    $region70: #{tpu_custom_call.1} parent=1 // pred_check
      _
    $region71: #{tpu_custom_call.1} parent=1 // pred_check_branch
      %2733 = sbr.rel (0) target = $region73
    $region72: #{tpu_custom_call.1} parent=1 // pred_region
      _
    $region73: #{tpu_custom_call.1} parent=1 // pred_fallthru
      _
    // Predicated region
    $region74: #{tpu_custom_call.1} parent=1 // pred_check
      _
    $region75: #{tpu_custom_call.1} parent=1 // pred_check_branch
      %2735 = sbr.rel (0) target = $region77
    $region76: #{tpu_custom_call.1} parent=1 // pred_region
      _
    $region77: #{tpu_custom_call.1} parent=1 // pred_fallthru
      _
    %2736 = vsyncpa [#allocation5], 1
    %2737 = vsyncpa [#allocation7], 1
    %2738 = vsyncpa [#allocation10], 1

</llo_original>
